<compile_context>
chip_gen: v5e
topology: v5e:2x2
jax: 0.10.0
libtpu: 0.0.40
codegen_flags: <defaults>
</compile_context>

<pallas_src>
import functools

import jax
import jax.numpy as jnp
from jax import lax
from jax.experimental import pallas as pl
from jax.experimental.pallas import tpu as pltpu

LN_EPS = 1e-5          # nn.LayerNorm default
MASK_VALUE = -1e9      # additive "-inf" for masked attention entries
UNROLL_LAYERS = 2      # static unroll threshold for the layer loop


def _layer_norm(x, gamma, beta):
    mu = jnp.mean(x, axis=-1, keepdims=True)
    xc = x - mu
    var = jnp.mean(xc * xc, axis=-1, keepdims=True)
    return xc * lax.rsqrt(var + LN_EPS) * gamma + beta


def transformer_encoder_kernel(x_ref, mask_ref, kpad_ref,
                               wqkv_ref, bqkv_ref, wo_ref, bo_ref,
                               w1_ref, b1_ref, w2_ref, b2_ref,
                               ln1g_ref, ln1b_ref, ln2g_ref, ln2b_ref,
                               o_ref, *, num_layers, num_heads, b_tile,
                               seq_len, compute_dtype):
    S = seq_len
    H = num_heads
    cd = compute_dtype

    x = x_ref[...]                      # (b_tile*S, E)  f32
    E = x.shape[-1]
    dh = E // H
    mask = mask_ref[...]                # (S, S)   additive src_mask, f32
    kpad = kpad_ref[...]                # (b_tile, 1, S) additive key-pad bias, f32

    def layer(l, x):
        # ---- fused QKV projection (one MXU pass, scale pre-folded into W_q) --
        qkv = jnp.dot(x.astype(cd), wqkv_ref[l],
                      preferred_element_type=jnp.float32) + bqkv_ref[l]  # (M, 3E) f32
        qkv_c = qkv.astype(cd)

        ctx_rows = []
        for b in range(b_tile):                      # static loop over sequences
            qkv_b = qkv_c[b * S:(b + 1) * S, :]      # (S, 3E)
            # head-batched tensors (H, S, dh)
            q3 = jnp.stack([qkv_b[:, h * dh:(h + 1) * dh] for h in range(H)], 0)
            k3 = jnp.stack([qkv_b[:, E + h * dh:E + (h + 1) * dh] for h in range(H)], 0)
            v3 = jnp.stack([qkv_b[:, 2 * E + h * dh:2 * E + (h + 1) * dh] for h in range(H)], 0)

            # scores for all heads in one batched dot_general (f32 accumulate)
            s = jnp.einsum('hqd,hkd->hqk', q3, k3,
                           preferred_element_type=jnp.float32)            # (H, S, S)
            s = s + (mask + kpad[b])[None, :, :]                          # f32 mask add
            m = jnp.max(s, axis=-1, keepdims=True)
            p = jnp.exp(s - m)
            denom = jnp.sum(p, axis=-1, keepdims=True)                    # (H, S, 1)
            ctx = jnp.einsum('hqk,hkd->hqd', p.astype(cd), v3,
                             preferred_element_type=jnp.float32)          # (H, S, dh)
            ctx = ctx * pl.reciprocal(denom, approx=True)                 # EUP vrcp
            # heads back to (S, E)
            ctx_rows.append(jnp.concatenate([ctx[h] for h in range(H)], axis=-1))

        ctx_all = jnp.concatenate(ctx_rows, axis=0) if b_tile > 1 else ctx_rows[0]

        # ---- single output projection per layer -----------------------------
        attn = jnp.dot(ctx_all.astype(cd), wo_ref[l],
                       preferred_element_type=jnp.float32) + bo_ref[l]
        x = _layer_norm(x + attn, ln1g_ref[l], ln1b_ref[l])               # post-LN

        # ---- feed-forward ----------------------------------------------------
        h1 = jnp.dot(x.astype(cd), w1_ref[l],
                     preferred_element_type=jnp.float32) + b1_ref[l]
        h1 = jnp.maximum(h1, 0.0)                                         # ReLU
        ffn = jnp.dot(h1.astype(cd), w2_ref[l],
                      preferred_element_type=jnp.float32) + b2_ref[l]
        return _layer_norm(x + ffn, ln2g_ref[l], ln2b_ref[l])

    if num_layers <= UNROLL_LAYERS:
        for l in range(num_layers):
            x = layer(l, x)
    else:
        x = lax.fori_loop(0, num_layers, layer, x)   # bounds live ranges for deep stacks

    o_ref[...] = x


def pack_params(params, num_heads, compute_dtype):
    """Fuse QKV, fold the 1/sqrt(dh) scale into W_q/b_q, cast matmul weights."""
    E = params["wq"].shape[1]
    dh = E // num_heads
    scale = 1.0 / float(dh) ** 0.5
    f32 = jnp.float32
    w_qkv = jnp.concatenate([params["wq"] * scale, params["wk"], params["wv"]], axis=-1)
    b_qkv = jnp.concatenate([params["bq"] * scale, params["bk"], params["bv"]], axis=-1)
    return dict(
        w_qkv=w_qkv.astype(compute_dtype), b_qkv=b_qkv.astype(f32),
        wo=params["wo"].astype(compute_dtype), bo=params["bo"].astype(f32),
        w1=params["w1"].astype(compute_dtype), b1=params["b1"].astype(f32),
        w2=params["w2"].astype(compute_dtype), b2=params["b2"].astype(f32),
        ln1_g=params["ln1_g"].astype(f32), ln1_b=params["ln1_b"].astype(f32),
        ln2_g=params["ln2_g"].astype(f32), ln2_b=params["ln2_b"].astype(f32),
    )


def transformer_encoder(src, src_mask, key_pad_bias, params, *, num_heads,
                        b_tile=None, compute_dtype=jnp.float32):
    """src: (B,S,E); src_mask: (S,S) additive; key_pad_bias: (B,S) additive."""
    B, S, E = src.shape
    L = params["wq"].shape[0]
    assert E % num_heads == 0

    if b_tile is None:   # biggest divisor of B that still leaves >=2 grid steps (v7x megacore)
        b_tile = 1
        for cand in range(min(B, 8), 0, -1):
            if B % cand == 0 and (B // cand >= 2 or B == 1):
                b_tile = cand
                break
    assert B % b_tile == 0

    packed = pack_params(params, num_heads, compute_dtype)
    weight_names = ("w_qkv", "b_qkv", "wo", "bo", "w1", "b1", "w2", "b2",
                    "ln1_g", "ln1_b", "ln2_g", "ln2_b")
    weights = tuple(packed[n] for n in weight_names)

    src2 = src.reshape(B * S, E).astype(jnp.float32)          # flat slab: M = b_tile*S per step
    mask = src_mask.astype(jnp.float32)                        # (S, S), shared across batch
    kpad = key_pad_bias.astype(jnp.float32).reshape(B, 1, S)   # thin per-sequence bias

    def resident(a):  # full-array block, constant index_map -> stays in VMEM across grid
        nd = a.ndim
        return pl.BlockSpec(a.shape, lambda i, _nd=nd: (0,) * _nd)

    in_specs = [pl.BlockSpec((b_tile * S, E), lambda i: (i, 0)),
                pl.BlockSpec((S, S), lambda i: (0, 0)),
                pl.BlockSpec((b_tile, 1, S), lambda i: (i, 0, 0))]
    in_specs += [resident(a) for a in weights]

    param_bytes = sum(int(a.size) * a.dtype.itemsize for a in weights)
    io_bytes = 4 * (2 * b_tile * S * E + S * S + b_tile * S)
    vmem_limit = int(min(96 << 20, max(8 << 20, 2 * param_bytes + 8 * io_bytes + (2 << 20))))

    kernel = functools.partial(
        transformer_encoder_kernel, num_layers=L, num_heads=num_heads,
        b_tile=b_tile, seq_len=S, compute_dtype=compute_dtype)

    out2 = pl.pallas_call(
        kernel,
        out_shape=jax.ShapeDtypeStruct((B * S, E), jnp.float32),
        grid=(B // b_tile,),
        in_specs=in_specs,
        out_specs=pl.BlockSpec((b_tile * S, E), lambda i: (i, 0)),
        compiler_params=pltpu.CompilerParams(
            dimension_semantics=("parallel",),
            vmem_limit_bytes=vmem_limit),
    )(src2, mask, kpad, *weights)
    return out2.reshape(B, S, E)


def transformer_model_forward(src, src_mask, src_key_padding_mask, params, *,
                              num_heads, b_tile=None, compute_dtype=jnp.float32):
    """Mirrors TransformerModel.forward(src, src_mask, src_key_padding_mask)."""
    key_pad_bias = jnp.where(src_key_padding_mask, MASK_VALUE, 0.0).astype(jnp.float32)
    return transformer_encoder(src, src_mask, key_pad_bias, params,
                               num_heads=num_heads, b_tile=b_tile,
                               compute_dtype=compute_dtype)


def init_params(key, E, Hff, L):
    ks = jax.random.split(key, 16)
    scale = 0.1

    def w(k, shape):
        return scale * jax.random.normal(k, shape, jnp.float32)

    # weights stored pre-transposed for right-multiplication (x @ W)
    return dict(
        wq=w(ks[0], (L, E, E)),  bq=w(ks[1], (L, 1, E)),
        wk=w(ks[2], (L, E, E)),  bk=w(ks[3], (L, 1, E)),
        wv=w(ks[4], (L, E, E)),  bv=w(ks[5], (L, 1, E)),
        wo=w(ks[6], (L, E, E)),  bo=w(ks[7], (L, 1, E)),
        w1=w(ks[8], (L, E, Hff)),  b1=w(ks[9], (L, 1, Hff)),
        w2=w(ks[10], (L, Hff, E)), b2=w(ks[11], (L, 1, E)),
        ln1_g=jnp.ones((L, 1, E), jnp.float32) + w(ks[12], (L, 1, E)),
        ln1_b=w(ks[13], (L, 1, E)),
        ln2_g=jnp.ones((L, 1, E), jnp.float32) + w(ks[14], (L, 1, E)),
        ln2_b=w(ks[15], (L, 1, E)),
    )


def reference(src, src_mask, key_pad_bias, params, num_heads):
    """Independent pure-JAX f32 reference (standard MHA encoder, post-LN, ReLU)."""
    B, S, E = src.shape
    L = params["wq"].shape[0]
    dh = E // num_heads
    bias = src_mask[None, None, :, :] + key_pad_bias[:, None, None, :]   # (B,1,S,S)
    x = src
    for l in range(L):
        q = x @ params["wq"][l] + params["bq"][l]
        k = x @ params["wk"][l] + params["bk"][l]
        v = x @ params["wv"][l] + params["bv"][l]
        q = q.reshape(B, S, num_heads, dh).transpose(0, 2, 1, 3)
        k = k.reshape(B, S, num_heads, dh).transpose(0, 2, 1, 3)
        v = v.reshape(B, S, num_heads, dh).transpose(0, 2, 1, 3)
        s = jnp.einsum("bhqd,bhkd->bhqk", q, k) / jnp.sqrt(float(dh)) + bias
        a = jax.nn.softmax(s, axis=-1)
        ctx = jnp.einsum("bhqk,bhkd->bhqd", a, v).transpose(0, 2, 1, 3).reshape(B, S, E)
        x = x + ctx @ params["wo"][l] + params["bo"][l]
        x = (x - jnp.mean(x, -1, keepdims=True)) / jnp.sqrt(
            jnp.var(x, -1, keepdims=True) + LN_EPS) * params["ln1_g"][l] + params["ln1_b"][l]
        ffn = jax.nn.relu(x @ params["w1"][l] + params["b1"][l]) @ params["w2"][l] + params["b2"][l]
        x = x + ffn
        x = (x - jnp.mean(x, -1, keepdims=True)) / jnp.sqrt(
            jnp.var(x, -1, keepdims=True) + LN_EPS) * params["ln2_g"][l] + params["ln2_b"][l]
    return x


if __name__ == "__main__":
    B, S = 4, 8
    input_size, num_heads, hidden_size, num_layers = 32, 4, 64, 2

    key = jax.random.PRNGKey(0)
    k_src, k_params = jax.random.split(key)

    src = jax.random.normal(k_src, (B, S, input_size), jnp.float32)

    # src_mask: causal additive float mask (S, S), shared across the batch
    rows = jnp.arange(S)
    src_mask = jnp.where(rows[None, :] <= rows[:, None], 0.0, MASK_VALUE).astype(jnp.float32)
    # src_key_padding_mask: (B, S) bool, True = padded key position
    src_key_padding_mask = (jnp.zeros((B, S), bool)
                            .at[1, S - 1].set(True)
                            .at[3, S - 2:].set(True))
    key_pad_bias = jnp.where(src_key_padding_mask, MASK_VALUE, 0.0).astype(jnp.float32)

    params = init_params(k_params, input_size, hidden_size, num_layers)

    # f32 run (matches PyTorch f32 semantics)
    out = transformer_model_forward(src, src_mask, src_key_padding_mask, params,
                                    num_heads=num_heads, b_tile=2)
    out = jax.block_until_ready(out)

    ref = jax.block_until_ready(reference(src, src_mask, key_pad_bias, params, num_heads))
    assert out.shape == (B, S, input_size)
    assert jnp.allclose(out, ref, atol=2e-3, rtol=2e-3), "f32 kernel mismatch vs reference"

    # bf16 matmul-operand variant (v6e/v7x MXU path); coarse check vs f32 reference
    out_bf16 = transformer_model_forward(src, src_mask, src_key_padding_mask, params,
                                         num_heads=num_heads, b_tile=2,
                                         compute_dtype=jnp.bfloat16)
    out_bf16 = jax.block_until_ready(out_bf16)
    assert jnp.all(jnp.isfinite(out_bf16))
    assert jnp.allclose(out_bf16, ref, atol=1e-1, rtol=1e-1), "bf16 kernel mismatch vs reference"

    print("KERNEL_OK")
</pallas_src>

<mosaic_0001>
module attributes {stable_mosaic.version = 11 : i64} {
  func.func @transformer_encoder_kernel(%arg0: i32, %arg1: memref<16x32xf32, #tpu.memory_space<vmem>>, %arg2: memref<8x8xf32, #tpu.memory_space<vmem>>, %arg3: memref<2x1x8xf32, #tpu.memory_space<vmem>>, %arg4: memref<2x32x96xf32, #tpu.memory_space<vmem>>, %arg5: memref<2x1x96xf32, #tpu.memory_space<vmem>>, %arg6: memref<2x32x32xf32, #tpu.memory_space<vmem>>, %arg7: memref<2x1x32xf32, #tpu.memory_space<vmem>>, %arg8: memref<2x32x64xf32, #tpu.memory_space<vmem>>, %arg9: memref<2x1x64xf32, #tpu.memory_space<vmem>>, %arg10: memref<2x64x32xf32, #tpu.memory_space<vmem>>, %arg11: memref<2x1x32xf32, #tpu.memory_space<vmem>>, %arg12: memref<2x1x32xf32, #tpu.memory_space<vmem>>, %arg13: memref<2x1x32xf32, #tpu.memory_space<vmem>>, %arg14: memref<2x1x32xf32, #tpu.memory_space<vmem>>, %arg15: memref<2x1x32xf32, #tpu.memory_space<vmem>>, %arg16: memref<16x32xf32, #tpu.memory_space<vmem>>) attributes {dimension_semantics = [#tpu.dimension_semantics<parallel>], iteration_bounds = array<i64: 2>, scalar_prefetch = 0 : i64, scratch_operands = 0 : i64, tpu.core_type = #tpu.core_type<tc>, window_params = [{transform_indices = @transform_0, window_bounds = array<i64: 16, 32>}, {pipeline_mode = #tpu.pipeline_mode<synchronous>, transform_indices = @transform_1, window_bounds = array<i64: 8, 8>}, {transform_indices = @transform_2, window_bounds = array<i64: 2, 1, 8>}, {pipeline_mode = #tpu.pipeline_mode<synchronous>, transform_indices = @transform_3, window_bounds = array<i64: 2, 32, 96>}, {pipeline_mode = #tpu.pipeline_mode<synchronous>, transform_indices = @transform_4, window_bounds = array<i64: 2, 1, 96>}, {pipeline_mode = #tpu.pipeline_mode<synchronous>, transform_indices = @transform_5, window_bounds = array<i64: 2, 32, 32>}, {pipeline_mode = #tpu.pipeline_mode<synchronous>, transform_indices = @transform_6, window_bounds = array<i64: 2, 1, 32>}, {pipeline_mode = #tpu.pipeline_mode<synchronous>, transform_indices = @transform_7, window_bounds = array<i64: 2, 32, 64>}, {pipeline_mode = #tpu.pipeline_mode<synchronous>, transform_indices = @transform_8, window_bounds = array<i64: 2, 1, 64>}, {pipeline_mode = #tpu.pipeline_mode<synchronous>, transform_indices = @transform_9, window_bounds = array<i64: 2, 64, 32>}, {pipeline_mode = #tpu.pipeline_mode<synchronous>, transform_indices = @transform_10, window_bounds = array<i64: 2, 1, 32>}, {pipeline_mode = #tpu.pipeline_mode<synchronous>, transform_indices = @transform_11, window_bounds = array<i64: 2, 1, 32>}, {pipeline_mode = #tpu.pipeline_mode<synchronous>, transform_indices = @transform_12, window_bounds = array<i64: 2, 1, 32>}, {pipeline_mode = #tpu.pipeline_mode<synchronous>, transform_indices = @transform_13, window_bounds = array<i64: 2, 1, 32>}, {pipeline_mode = #tpu.pipeline_mode<synchronous>, transform_indices = @transform_14, window_bounds = array<i64: 2, 1, 32>}, {transform_indices = @transform_15, window_bounds = array<i64: 16, 32>}]} {
    %c0 = arith.constant 0 : index
    %c0_0 = arith.constant 0 : index
    %0 = vector.load %arg1[%c0, %c0_0] : memref<16x32xf32, #tpu.memory_space<vmem>>, vector<16x32xf32>
    %c0_1 = arith.constant 0 : index
    %c0_2 = arith.constant 0 : index
    %1 = vector.load %arg2[%c0_1, %c0_2] : memref<8x8xf32, #tpu.memory_space<vmem>>, vector<8x8xf32>
    %c0_3 = arith.constant 0 : index
    %c0_4 = arith.constant 0 : index
    %c0_5 = arith.constant 0 : index
    %2 = vector.load %arg3[%c0_3, %c0_4, %c0_5] : memref<2x1x8xf32, #tpu.memory_space<vmem>>, vector<2x1x8xf32>
    %c0_6 = arith.constant 0 : index
    %c0_7 = arith.constant 0 : index
    %c0_8 = arith.constant 0 : index
    %3 = vector.load %arg4[%c0_6, %c0_7, %c0_8] : memref<2x32x96xf32, #tpu.memory_space<vmem>>, vector<1x32x96xf32>
    %4 = vector.shape_cast %3 : vector<1x32x96xf32> to vector<32x96xf32>
    %cst = arith.constant dense<0.000000e+00> : vector<16x96xf32>
    %5 = tpu.matmul %0, %4, %cst {dimension_numbers = #tpu.dot_dimension_numbers<[1], [0], [0], [1], [0, 0, 1, 1], [], []>} : vector<16x32xf32>, vector<32x96xf32>, vector<16x96xf32> -> vector<16x96xf32>
    %c0_9 = arith.constant 0 : index
    %c0_10 = arith.constant 0 : index
    %c0_11 = arith.constant 0 : index
    %6 = vector.load %arg5[%c0_9, %c0_10, %c0_11] : memref<2x1x96xf32, #tpu.memory_space<vmem>>, vector<1x1x96xf32>
    %7 = vector.shape_cast %6 : vector<1x1x96xf32> to vector<1x96xf32>
    %8 = vector.broadcast %7 : vector<1x96xf32> to vector<16x96xf32>
    %9 = arith.addf %5, %8 : vector<16x96xf32>
    %10 = vector.extract_strided_slice %9 {offsets = [0, 0], sizes = [8, 96], strides = [1, 1]} : vector<16x96xf32> to vector<8x96xf32>
    %11 = vector.extract_strided_slice %10 {offsets = [0, 0], sizes = [8, 8], strides = [1, 1]} : vector<8x96xf32> to vector<8x8xf32>
    %12 = vector.extract_strided_slice %10 {offsets = [0, 8], sizes = [8, 8], strides = [1, 1]} : vector<8x96xf32> to vector<8x8xf32>
    %13 = vector.extract_strided_slice %10 {offsets = [0, 16], sizes = [8, 8], strides = [1, 1]} : vector<8x96xf32> to vector<8x8xf32>
    %14 = vector.extract_strided_slice %10 {offsets = [0, 24], sizes = [8, 8], strides = [1, 1]} : vector<8x96xf32> to vector<8x8xf32>
    %15 = vector.shape_cast %11 : vector<8x8xf32> to vector<1x8x8xf32>
    %16 = vector.shape_cast %12 : vector<8x8xf32> to vector<1x8x8xf32>
    %17 = vector.shape_cast %13 : vector<8x8xf32> to vector<1x8x8xf32>
    %18 = vector.shape_cast %14 : vector<8x8xf32> to vector<1x8x8xf32>
    %19 = tpu.concatenate %15, %16, %17, %18 in 0 : vector<1x8x8xf32>, vector<1x8x8xf32>, vector<1x8x8xf32>, vector<1x8x8xf32> -> vector<4x8x8xf32>
    %20 = vector.extract_strided_slice %10 {offsets = [0, 32], sizes = [8, 8], strides = [1, 1]} : vector<8x96xf32> to vector<8x8xf32>
    %21 = vector.extract_strided_slice %10 {offsets = [0, 40], sizes = [8, 8], strides = [1, 1]} : vector<8x96xf32> to vector<8x8xf32>
    %22 = vector.extract_strided_slice %10 {offsets = [0, 48], sizes = [8, 8], strides = [1, 1]} : vector<8x96xf32> to vector<8x8xf32>
    %23 = vector.extract_strided_slice %10 {offsets = [0, 56], sizes = [8, 8], strides = [1, 1]} : vector<8x96xf32> to vector<8x8xf32>
    %24 = vector.shape_cast %20 : vector<8x8xf32> to vector<1x8x8xf32>
    %25 = vector.shape_cast %21 : vector<8x8xf32> to vector<1x8x8xf32>
    %26 = vector.shape_cast %22 : vector<8x8xf32> to vector<1x8x8xf32>
    %27 = vector.shape_cast %23 : vector<8x8xf32> to vector<1x8x8xf32>
    %28 = tpu.concatenate %24, %25, %26, %27 in 0 : vector<1x8x8xf32>, vector<1x8x8xf32>, vector<1x8x8xf32>, vector<1x8x8xf32> -> vector<4x8x8xf32>
    %29 = vector.extract_strided_slice %10 {offsets = [0, 64], sizes = [8, 8], strides = [1, 1]} : vector<8x96xf32> to vector<8x8xf32>
    %30 = vector.extract_strided_slice %10 {offsets = [0, 72], sizes = [8, 8], strides = [1, 1]} : vector<8x96xf32> to vector<8x8xf32>
    %31 = vector.extract_strided_slice %10 {offsets = [0, 80], sizes = [8, 8], strides = [1, 1]} : vector<8x96xf32> to vector<8x8xf32>
    %32 = vector.extract_strided_slice %10 {offsets = [0, 88], sizes = [8, 8], strides = [1, 1]} : vector<8x96xf32> to vector<8x8xf32>
    %33 = vector.shape_cast %29 : vector<8x8xf32> to vector<1x8x8xf32>
    %34 = vector.shape_cast %30 : vector<8x8xf32> to vector<1x8x8xf32>
    %35 = vector.shape_cast %31 : vector<8x8xf32> to vector<1x8x8xf32>
    %36 = vector.shape_cast %32 : vector<8x8xf32> to vector<1x8x8xf32>
    %37 = tpu.concatenate %33, %34, %35, %36 in 0 : vector<1x8x8xf32>, vector<1x8x8xf32>, vector<1x8x8xf32>, vector<1x8x8xf32> -> vector<4x8x8xf32>
    "tpu.trace_start"() <{level = 10 : i32, message = "hqd,hkd->hqk"}> : () -> ()
    %cst_12 = arith.constant dense<0.000000e+00> : vector<4x8x8xf32>
    %38 = tpu.matmul %19, %28, %cst_12 {dimension_numbers = #tpu.dot_dimension_numbers<[2], [2], [1], [1], [0, 0, 0, 1, 1, 1], [0], [0]>} : vector<4x8x8xf32>, vector<4x8x8xf32>, vector<4x8x8xf32> -> vector<4x8x8xf32>
    "tpu.trace_stop"() : () -> ()
    %39 = vector.extract_strided_slice %2 {offsets = [0, 0, 0], sizes = [1, 1, 8], strides = [1, 1, 1]} : vector<2x1x8xf32> to vector<1x1x8xf32>
    %40 = vector.shape_cast %39 : vector<1x1x8xf32> to vector<1x8xf32>
    %41 = vector.broadcast %40 : vector<1x8xf32> to vector<8x8xf32>
    %42 = arith.addf %1, %41 : vector<8x8xf32>
    %43 = vector.shape_cast %42 : vector<8x8xf32> to vector<1x8x8xf32>
    %44 = vector.broadcast %43 : vector<1x8x8xf32> to vector<4x8x8xf32>
    %45 = arith.addf %38, %44 : vector<4x8x8xf32>
    %cst_13 = arith.constant dense<0xFF800000> : vector<4x8xf32>
    %46 = vector.multi_reduction <maximumf>, %45, %cst_13 [2] : vector<4x8x8xf32> to vector<4x8xf32>
    %47 = vector.shape_cast %46 : vector<4x8xf32> to vector<4x8x1xf32>
    %48 = vector.broadcast %47 : vector<4x8x1xf32> to vector<4x8x8xf32>
    %49 = arith.subf %45, %48 : vector<4x8x8xf32>
    %50 = math.exp %49 : vector<4x8x8xf32>
    %cst_14 = arith.constant dense<0.000000e+00> : vector<4x8xf32>
    %51 = vector.multi_reduction <add>, %50, %cst_14 [2] : vector<4x8x8xf32> to vector<4x8xf32>
    %52 = vector.shape_cast %51 : vector<4x8xf32> to vector<4x8x1xf32>
    "tpu.trace_start"() <{level = 10 : i32, message = "hqk,hkd->hqd"}> : () -> ()
    %cst_15 = arith.constant dense<0.000000e+00> : vector<4x8x8xf32>
    %53 = tpu.matmul %50, %37, %cst_15 {dimension_numbers = #tpu.dot_dimension_numbers<[2], [1], [1], [2], [0, 0, 0, 1, 1, 2], [0], [0]>} : vector<4x8x8xf32>, vector<4x8x8xf32>, vector<4x8x8xf32> -> vector<4x8x8xf32>
    "tpu.trace_stop"() : () -> ()
    %54 = tpu.reciprocal %52 {approx = true} : vector<4x8x1xf32> -> vector<4x8x1xf32>
    %55 = vector.broadcast %54 : vector<4x8x1xf32> to vector<4x8x8xf32>
    %56 = arith.mulf %53, %55 : vector<4x8x8xf32>
    %57 = vector.extract_strided_slice %56 {offsets = [0, 0, 0], sizes = [1, 8, 8], strides = [1, 1, 1]} : vector<4x8x8xf32> to vector<1x8x8xf32>
    %58 = vector.shape_cast %57 : vector<1x8x8xf32> to vector<8x8xf32>
    %59 = vector.extract_strided_slice %56 {offsets = [1, 0, 0], sizes = [1, 8, 8], strides = [1, 1, 1]} : vector<4x8x8xf32> to vector<1x8x8xf32>
    %60 = vector.shape_cast %59 : vector<1x8x8xf32> to vector<8x8xf32>
    %61 = vector.extract_strided_slice %56 {offsets = [2, 0, 0], sizes = [1, 8, 8], strides = [1, 1, 1]} : vector<4x8x8xf32> to vector<1x8x8xf32>
    %62 = vector.shape_cast %61 : vector<1x8x8xf32> to vector<8x8xf32>
    %63 = vector.extract_strided_slice %56 {offsets = [3, 0, 0], sizes = [1, 8, 8], strides = [1, 1, 1]} : vector<4x8x8xf32> to vector<1x8x8xf32>
    %64 = vector.shape_cast %63 : vector<1x8x8xf32> to vector<8x8xf32>
    %65 = tpu.concatenate %58, %60, %62, %64 in 1 : vector<8x8xf32>, vector<8x8xf32>, vector<8x8xf32>, vector<8x8xf32> -> vector<8x32xf32>
    %66 = vector.extract_strided_slice %9 {offsets = [8, 0], sizes = [8, 96], strides = [1, 1]} : vector<16x96xf32> to vector<8x96xf32>
    %67 = vector.extract_strided_slice %66 {offsets = [0, 0], sizes = [8, 8], strides = [1, 1]} : vector<8x96xf32> to vector<8x8xf32>
    %68 = vector.extract_strided_slice %66 {offsets = [0, 8], sizes = [8, 8], strides = [1, 1]} : vector<8x96xf32> to vector<8x8xf32>
    %69 = vector.extract_strided_slice %66 {offsets = [0, 16], sizes = [8, 8], strides = [1, 1]} : vector<8x96xf32> to vector<8x8xf32>
    %70 = vector.extract_strided_slice %66 {offsets = [0, 24], sizes = [8, 8], strides = [1, 1]} : vector<8x96xf32> to vector<8x8xf32>
    %71 = vector.shape_cast %67 : vector<8x8xf32> to vector<1x8x8xf32>
    %72 = vector.shape_cast %68 : vector<8x8xf32> to vector<1x8x8xf32>
    %73 = vector.shape_cast %69 : vector<8x8xf32> to vector<1x8x8xf32>
    %74 = vector.shape_cast %70 : vector<8x8xf32> to vector<1x8x8xf32>
    %75 = tpu.concatenate %71, %72, %73, %74 in 0 : vector<1x8x8xf32>, vector<1x8x8xf32>, vector<1x8x8xf32>, vector<1x8x8xf32> -> vector<4x8x8xf32>
    %76 = vector.extract_strided_slice %66 {offsets = [0, 32], sizes = [8, 8], strides = [1, 1]} : vector<8x96xf32> to vector<8x8xf32>
    %77 = vector.extract_strided_slice %66 {offsets = [0, 40], sizes = [8, 8], strides = [1, 1]} : vector<8x96xf32> to vector<8x8xf32>
    %78 = vector.extract_strided_slice %66 {offsets = [0, 48], sizes = [8, 8], strides = [1, 1]} : vector<8x96xf32> to vector<8x8xf32>
    %79 = vector.extract_strided_slice %66 {offsets = [0, 56], sizes = [8, 8], strides = [1, 1]} : vector<8x96xf32> to vector<8x8xf32>
    %80 = vector.shape_cast %76 : vector<8x8xf32> to vector<1x8x8xf32>
    %81 = vector.shape_cast %77 : vector<8x8xf32> to vector<1x8x8xf32>
    %82 = vector.shape_cast %78 : vector<8x8xf32> to vector<1x8x8xf32>
    %83 = vector.shape_cast %79 : vector<8x8xf32> to vector<1x8x8xf32>
    %84 = tpu.concatenate %80, %81, %82, %83 in 0 : vector<1x8x8xf32>, vector<1x8x8xf32>, vector<1x8x8xf32>, vector<1x8x8xf32> -> vector<4x8x8xf32>
    %85 = vector.extract_strided_slice %66 {offsets = [0, 64], sizes = [8, 8], strides = [1, 1]} : vector<8x96xf32> to vector<8x8xf32>
    %86 = vector.extract_strided_slice %66 {offsets = [0, 72], sizes = [8, 8], strides = [1, 1]} : vector<8x96xf32> to vector<8x8xf32>
    %87 = vector.extract_strided_slice %66 {offsets = [0, 80], sizes = [8, 8], strides = [1, 1]} : vector<8x96xf32> to vector<8x8xf32>
    %88 = vector.extract_strided_slice %66 {offsets = [0, 88], sizes = [8, 8], strides = [1, 1]} : vector<8x96xf32> to vector<8x8xf32>
    %89 = vector.shape_cast %85 : vector<8x8xf32> to vector<1x8x8xf32>
    %90 = vector.shape_cast %86 : vector<8x8xf32> to vector<1x8x8xf32>
    %91 = vector.shape_cast %87 : vector<8x8xf32> to vector<1x8x8xf32>
    %92 = vector.shape_cast %88 : vector<8x8xf32> to vector<1x8x8xf32>
    %93 = tpu.concatenate %89, %90, %91, %92 in 0 : vector<1x8x8xf32>, vector<1x8x8xf32>, vector<1x8x8xf32>, vector<1x8x8xf32> -> vector<4x8x8xf32>
    "tpu.trace_start"() <{level = 10 : i32, message = "hqd,hkd->hqk"}> : () -> ()
    %cst_16 = arith.constant dense<0.000000e+00> : vector<4x8x8xf32>
    %94 = tpu.matmul %75, %84, %cst_16 {dimension_numbers = #tpu.dot_dimension_numbers<[2], [2], [1], [1], [0, 0, 0, 1, 1, 1], [0], [0]>} : vector<4x8x8xf32>, vector<4x8x8xf32>, vector<4x8x8xf32> -> vector<4x8x8xf32>
    "tpu.trace_stop"() : () -> ()
    %95 = vector.extract_strided_slice %2 {offsets = [1, 0, 0], sizes = [1, 1, 8], strides = [1, 1, 1]} : vector<2x1x8xf32> to vector<1x1x8xf32>
    %96 = vector.shape_cast %95 : vector<1x1x8xf32> to vector<1x8xf32>
    %97 = vector.broadcast %96 : vector<1x8xf32> to vector<8x8xf32>
    %98 = arith.addf %1, %97 : vector<8x8xf32>
    %99 = vector.shape_cast %98 : vector<8x8xf32> to vector<1x8x8xf32>
    %100 = vector.broadcast %99 : vector<1x8x8xf32> to vector<4x8x8xf32>
    %101 = arith.addf %94, %100 : vector<4x8x8xf32>
    %cst_17 = arith.constant dense<0xFF800000> : vector<4x8xf32>
    %102 = vector.multi_reduction <maximumf>, %101, %cst_17 [2] : vector<4x8x8xf32> to vector<4x8xf32>
    %103 = vector.shape_cast %102 : vector<4x8xf32> to vector<4x8x1xf32>
    %104 = vector.broadcast %103 : vector<4x8x1xf32> to vector<4x8x8xf32>
    %105 = arith.subf %101, %104 : vector<4x8x8xf32>
    %106 = math.exp %105 : vector<4x8x8xf32>
    %cst_18 = arith.constant dense<0.000000e+00> : vector<4x8xf32>
    %107 = vector.multi_reduction <add>, %106, %cst_18 [2] : vector<4x8x8xf32> to vector<4x8xf32>
    %108 = vector.shape_cast %107 : vector<4x8xf32> to vector<4x8x1xf32>
    "tpu.trace_start"() <{level = 10 : i32, message = "hqk,hkd->hqd"}> : () -> ()
    %cst_19 = arith.constant dense<0.000000e+00> : vector<4x8x8xf32>
    %109 = tpu.matmul %106, %93, %cst_19 {dimension_numbers = #tpu.dot_dimension_numbers<[2], [1], [1], [2], [0, 0, 0, 1, 1, 2], [0], [0]>} : vector<4x8x8xf32>, vector<4x8x8xf32>, vector<4x8x8xf32> -> vector<4x8x8xf32>
    "tpu.trace_stop"() : () -> ()
    %110 = tpu.reciprocal %108 {approx = true} : vector<4x8x1xf32> -> vector<4x8x1xf32>
    %111 = vector.broadcast %110 : vector<4x8x1xf32> to vector<4x8x8xf32>
    %112 = arith.mulf %109, %111 : vector<4x8x8xf32>
    %113 = vector.extract_strided_slice %112 {offsets = [0, 0, 0], sizes = [1, 8, 8], strides = [1, 1, 1]} : vector<4x8x8xf32> to vector<1x8x8xf32>
    %114 = vector.shape_cast %113 : vector<1x8x8xf32> to vector<8x8xf32>
    %115 = vector.extract_strided_slice %112 {offsets = [1, 0, 0], sizes = [1, 8, 8], strides = [1, 1, 1]} : vector<4x8x8xf32> to vector<1x8x8xf32>
    %116 = vector.shape_cast %115 : vector<1x8x8xf32> to vector<8x8xf32>
    %117 = vector.extract_strided_slice %112 {offsets = [2, 0, 0], sizes = [1, 8, 8], strides = [1, 1, 1]} : vector<4x8x8xf32> to vector<1x8x8xf32>
    %118 = vector.shape_cast %117 : vector<1x8x8xf32> to vector<8x8xf32>
    %119 = vector.extract_strided_slice %112 {offsets = [3, 0, 0], sizes = [1, 8, 8], strides = [1, 1, 1]} : vector<4x8x8xf32> to vector<1x8x8xf32>
    %120 = vector.shape_cast %119 : vector<1x8x8xf32> to vector<8x8xf32>
    %121 = tpu.concatenate %114, %116, %118, %120 in 1 : vector<8x8xf32>, vector<8x8xf32>, vector<8x8xf32>, vector<8x8xf32> -> vector<8x32xf32>
    %122 = tpu.concatenate %65, %121 in 0 : vector<8x32xf32>, vector<8x32xf32> -> vector<16x32xf32>
    %c0_20 = arith.constant 0 : index
    %c0_21 = arith.constant 0 : index
    %c0_22 = arith.constant 0 : index
    %123 = vector.load %arg6[%c0_20, %c0_21, %c0_22] : memref<2x32x32xf32, #tpu.memory_space<vmem>>, vector<1x32x32xf32>
    %124 = vector.shape_cast %123 : vector<1x32x32xf32> to vector<32x32xf32>
    %cst_23 = arith.constant dense<0.000000e+00> : vector<16x32xf32>
    %125 = tpu.matmul %122, %124, %cst_23 {dimension_numbers = #tpu.dot_dimension_numbers<[1], [0], [0], [1], [0, 0, 1, 1], [], []>} : vector<16x32xf32>, vector<32x32xf32>, vector<16x32xf32> -> vector<16x32xf32>
    %c0_24 = arith.constant 0 : index
    %c0_25 = arith.constant 0 : index
    %c0_26 = arith.constant 0 : index
    %126 = vector.load %arg7[%c0_24, %c0_25, %c0_26] : memref<2x1x32xf32, #tpu.memory_space<vmem>>, vector<1x1x32xf32>
    %127 = vector.shape_cast %126 : vector<1x1x32xf32> to vector<1x32xf32>
    %128 = vector.broadcast %127 : vector<1x32xf32> to vector<16x32xf32>
    %129 = arith.addf %125, %128 : vector<16x32xf32>
    %130 = arith.addf %0, %129 : vector<16x32xf32>
    %c0_27 = arith.constant 0 : index
    %c0_28 = arith.constant 0 : index
    %c0_29 = arith.constant 0 : index
    %131 = vector.load %arg12[%c0_27, %c0_28, %c0_29] : memref<2x1x32xf32, #tpu.memory_space<vmem>>, vector<1x1x32xf32>
    %132 = vector.shape_cast %131 : vector<1x1x32xf32> to vector<1x32xf32>
    %c0_30 = arith.constant 0 : index
    %c0_31 = arith.constant 0 : index
    %c0_32 = arith.constant 0 : index
    %133 = vector.load %arg13[%c0_30, %c0_31, %c0_32] : memref<2x1x32xf32, #tpu.memory_space<vmem>>, vector<1x1x32xf32>
    %134 = vector.shape_cast %133 : vector<1x1x32xf32> to vector<1x32xf32>
    %cst_33 = arith.constant dense<0.000000e+00> : vector<16xf32>
    %135 = vector.multi_reduction <add>, %130, %cst_33 [1] : vector<16x32xf32> to vector<16xf32>
    %136 = vector.shape_cast %135 : vector<16xf32> to vector<16x1xf32>
    %cst_34 = arith.constant 3.200000e+01 : f32
    %137 = vector.broadcast %cst_34 : f32 to vector<16x1xf32>
    %138 = arith.divf %136, %137 : vector<16x1xf32>
    %139 = vector.broadcast %138 : vector<16x1xf32> to vector<16x32xf32>
    %140 = arith.subf %130, %139 : vector<16x32xf32>
    %141 = arith.mulf %140, %140 : vector<16x32xf32>
    %cst_35 = arith.constant dense<0.000000e+00> : vector<16xf32>
    %142 = vector.multi_reduction <add>, %141, %cst_35 [1] : vector<16x32xf32> to vector<16xf32>
    %143 = vector.shape_cast %142 : vector<16xf32> to vector<16x1xf32>
    %cst_36 = arith.constant 3.200000e+01 : f32
    %144 = vector.broadcast %cst_36 : f32 to vector<16x1xf32>
    %145 = arith.divf %143, %144 : vector<16x1xf32>
    %cst_37 = arith.constant 9.99999974E-6 : f32
    %146 = vector.broadcast %cst_37 : f32 to vector<16x1xf32>
    %147 = arith.addf %145, %146 : vector<16x1xf32>
    %148 = math.rsqrt %147 : vector<16x1xf32>
    %149 = vector.broadcast %148 : vector<16x1xf32> to vector<16x32xf32>
    %150 = arith.mulf %140, %149 : vector<16x32xf32>
    %151 = vector.broadcast %132 : vector<1x32xf32> to vector<16x32xf32>
    %152 = arith.mulf %150, %151 : vector<16x32xf32>
    %153 = vector.broadcast %134 : vector<1x32xf32> to vector<16x32xf32>
    %154 = arith.addf %152, %153 : vector<16x32xf32>
    %c0_38 = arith.constant 0 : index
    %c0_39 = arith.constant 0 : index
    %c0_40 = arith.constant 0 : index
    %155 = vector.load %arg8[%c0_38, %c0_39, %c0_40] : memref<2x32x64xf32, #tpu.memory_space<vmem>>, vector<1x32x64xf32>
    %156 = vector.shape_cast %155 : vector<1x32x64xf32> to vector<32x64xf32>
    %cst_41 = arith.constant dense<0.000000e+00> : vector<16x64xf32>
    %157 = tpu.matmul %154, %156, %cst_41 {dimension_numbers = #tpu.dot_dimension_numbers<[1], [0], [0], [1], [0, 0, 1, 1], [], []>} : vector<16x32xf32>, vector<32x64xf32>, vector<16x64xf32> -> vector<16x64xf32>
    %c0_42 = arith.constant 0 : index
    %c0_43 = arith.constant 0 : index
    %c0_44 = arith.constant 0 : index
    %158 = vector.load %arg9[%c0_42, %c0_43, %c0_44] : memref<2x1x64xf32, #tpu.memory_space<vmem>>, vector<1x1x64xf32>
    %159 = vector.shape_cast %158 : vector<1x1x64xf32> to vector<1x64xf32>
    %160 = vector.broadcast %159 : vector<1x64xf32> to vector<16x64xf32>
    %161 = arith.addf %157, %160 : vector<16x64xf32>
    %cst_45 = arith.constant 0.000000e+00 : f32
    %162 = vector.broadcast %cst_45 : f32 to vector<16x64xf32>
    %163 = arith.maximumf %161, %162 : vector<16x64xf32>
    %c0_46 = arith.constant 0 : index
    %c0_47 = arith.constant 0 : index
    %c0_48 = arith.constant 0 : index
    %164 = vector.load %arg10[%c0_46, %c0_47, %c0_48] : memref<2x64x32xf32, #tpu.memory_space<vmem>>, vector<1x64x32xf32>
    %165 = vector.shape_cast %164 : vector<1x64x32xf32> to vector<64x32xf32>
    %cst_49 = arith.constant dense<0.000000e+00> : vector<16x32xf32>
    %166 = tpu.matmul %163, %165, %cst_49 {dimension_numbers = #tpu.dot_dimension_numbers<[1], [0], [0], [1], [0, 0, 1, 1], [], []>} : vector<16x64xf32>, vector<64x32xf32>, vector<16x32xf32> -> vector<16x32xf32>
    %c0_50 = arith.constant 0 : index
    %c0_51 = arith.constant 0 : index
    %c0_52 = arith.constant 0 : index
    %167 = vector.load %arg11[%c0_50, %c0_51, %c0_52] : memref<2x1x32xf32, #tpu.memory_space<vmem>>, vector<1x1x32xf32>
    %168 = vector.shape_cast %167 : vector<1x1x32xf32> to vector<1x32xf32>
    %169 = vector.broadcast %168 : vector<1x32xf32> to vector<16x32xf32>
    %170 = arith.addf %166, %169 : vector<16x32xf32>
    %171 = arith.addf %154, %170 : vector<16x32xf32>
    %c0_53 = arith.constant 0 : index
    %c0_54 = arith.constant 0 : index
    %c0_55 = arith.constant 0 : index
    %172 = vector.load %arg14[%c0_53, %c0_54, %c0_55] : memref<2x1x32xf32, #tpu.memory_space<vmem>>, vector<1x1x32xf32>
    %173 = vector.shape_cast %172 : vector<1x1x32xf32> to vector<1x32xf32>
    %c0_56 = arith.constant 0 : index
    %c0_57 = arith.constant 0 : index
    %c0_58 = arith.constant 0 : index
    %174 = vector.load %arg15[%c0_56, %c0_57, %c0_58] : memref<2x1x32xf32, #tpu.memory_space<vmem>>, vector<1x1x32xf32>
    %175 = vector.shape_cast %174 : vector<1x1x32xf32> to vector<1x32xf32>
    %cst_59 = arith.constant dense<0.000000e+00> : vector<16xf32>
    %176 = vector.multi_reduction <add>, %171, %cst_59 [1] : vector<16x32xf32> to vector<16xf32>
    %177 = vector.shape_cast %176 : vector<16xf32> to vector<16x1xf32>
    %cst_60 = arith.constant 3.200000e+01 : f32
    %178 = vector.broadcast %cst_60 : f32 to vector<16x1xf32>
    %179 = arith.divf %177, %178 : vector<16x1xf32>
    %180 = vector.broadcast %179 : vector<16x1xf32> to vector<16x32xf32>
    %181 = arith.subf %171, %180 : vector<16x32xf32>
    %182 = arith.mulf %181, %181 : vector<16x32xf32>
    %cst_61 = arith.constant dense<0.000000e+00> : vector<16xf32>
    %183 = vector.multi_reduction <add>, %182, %cst_61 [1] : vector<16x32xf32> to vector<16xf32>
    %184 = vector.shape_cast %183 : vector<16xf32> to vector<16x1xf32>
    %cst_62 = arith.constant 3.200000e+01 : f32
    %185 = vector.broadcast %cst_62 : f32 to vector<16x1xf32>
    %186 = arith.divf %184, %185 : vector<16x1xf32>
    %cst_63 = arith.constant 9.99999974E-6 : f32
    %187 = vector.broadcast %cst_63 : f32 to vector<16x1xf32>
    %188 = arith.addf %186, %187 : vector<16x1xf32>
    %189 = math.rsqrt %188 : vector<16x1xf32>
    %190 = vector.broadcast %189 : vector<16x1xf32> to vector<16x32xf32>
    %191 = arith.mulf %181, %190 : vector<16x32xf32>
    %192 = vector.broadcast %173 : vector<1x32xf32> to vector<16x32xf32>
    %193 = arith.mulf %191, %192 : vector<16x32xf32>
    %194 = vector.broadcast %175 : vector<1x32xf32> to vector<16x32xf32>
    %195 = arith.addf %193, %194 : vector<16x32xf32>
    %c1 = arith.constant 1 : index
    %c0_64 = arith.constant 0 : index
    %c0_65 = arith.constant 0 : index
    %196 = vector.load %arg4[%c1, %c0_64, %c0_65] : memref<2x32x96xf32, #tpu.memory_space<vmem>>, vector<1x32x96xf32>
    %197 = vector.shape_cast %196 : vector<1x32x96xf32> to vector<32x96xf32>
    %cst_66 = arith.constant dense<0.000000e+00> : vector<16x96xf32>
    %198 = tpu.matmul %195, %197, %cst_66 {dimension_numbers = #tpu.dot_dimension_numbers<[1], [0], [0], [1], [0, 0, 1, 1], [], []>} : vector<16x32xf32>, vector<32x96xf32>, vector<16x96xf32> -> vector<16x96xf32>
    %c1_67 = arith.constant 1 : index
    %c0_68 = arith.constant 0 : index
    %c0_69 = arith.constant 0 : index
    %199 = vector.load %arg5[%c1_67, %c0_68, %c0_69] : memref<2x1x96xf32, #tpu.memory_space<vmem>>, vector<1x1x96xf32>
    %200 = vector.shape_cast %199 : vector<1x1x96xf32> to vector<1x96xf32>
    %201 = vector.broadcast %200 : vector<1x96xf32> to vector<16x96xf32>
    %202 = arith.addf %198, %201 : vector<16x96xf32>
    %203 = vector.extract_strided_slice %202 {offsets = [0, 0], sizes = [8, 96], strides = [1, 1]} : vector<16x96xf32> to vector<8x96xf32>
    %204 = vector.extract_strided_slice %203 {offsets = [0, 0], sizes = [8, 8], strides = [1, 1]} : vector<8x96xf32> to vector<8x8xf32>
    %205 = vector.extract_strided_slice %203 {offsets = [0, 8], sizes = [8, 8], strides = [1, 1]} : vector<8x96xf32> to vector<8x8xf32>
    %206 = vector.extract_strided_slice %203 {offsets = [0, 16], sizes = [8, 8], strides = [1, 1]} : vector<8x96xf32> to vector<8x8xf32>
    %207 = vector.extract_strided_slice %203 {offsets = [0, 24], sizes = [8, 8], strides = [1, 1]} : vector<8x96xf32> to vector<8x8xf32>
    %208 = vector.shape_cast %204 : vector<8x8xf32> to vector<1x8x8xf32>
    %209 = vector.shape_cast %205 : vector<8x8xf32> to vector<1x8x8xf32>
    %210 = vector.shape_cast %206 : vector<8x8xf32> to vector<1x8x8xf32>
    %211 = vector.shape_cast %207 : vector<8x8xf32> to vector<1x8x8xf32>
    %212 = tpu.concatenate %208, %209, %210, %211 in 0 : vector<1x8x8xf32>, vector<1x8x8xf32>, vector<1x8x8xf32>, vector<1x8x8xf32> -> vector<4x8x8xf32>
    %213 = vector.extract_strided_slice %203 {offsets = [0, 32], sizes = [8, 8], strides = [1, 1]} : vector<8x96xf32> to vector<8x8xf32>
    %214 = vector.extract_strided_slice %203 {offsets = [0, 40], sizes = [8, 8], strides = [1, 1]} : vector<8x96xf32> to vector<8x8xf32>
    %215 = vector.extract_strided_slice %203 {offsets = [0, 48], sizes = [8, 8], strides = [1, 1]} : vector<8x96xf32> to vector<8x8xf32>
    %216 = vector.extract_strided_slice %203 {offsets = [0, 56], sizes = [8, 8], strides = [1, 1]} : vector<8x96xf32> to vector<8x8xf32>
    %217 = vector.shape_cast %213 : vector<8x8xf32> to vector<1x8x8xf32>
    %218 = vector.shape_cast %214 : vector<8x8xf32> to vector<1x8x8xf32>
    %219 = vector.shape_cast %215 : vector<8x8xf32> to vector<1x8x8xf32>
    %220 = vector.shape_cast %216 : vector<8x8xf32> to vector<1x8x8xf32>
    %221 = tpu.concatenate %217, %218, %219, %220 in 0 : vector<1x8x8xf32>, vector<1x8x8xf32>, vector<1x8x8xf32>, vector<1x8x8xf32> -> vector<4x8x8xf32>
    %222 = vector.extract_strided_slice %203 {offsets = [0, 64], sizes = [8, 8], strides = [1, 1]} : vector<8x96xf32> to vector<8x8xf32>
    %223 = vector.extract_strided_slice %203 {offsets = [0, 72], sizes = [8, 8], strides = [1, 1]} : vector<8x96xf32> to vector<8x8xf32>
    %224 = vector.extract_strided_slice %203 {offsets = [0, 80], sizes = [8, 8], strides = [1, 1]} : vector<8x96xf32> to vector<8x8xf32>
    %225 = vector.extract_strided_slice %203 {offsets = [0, 88], sizes = [8, 8], strides = [1, 1]} : vector<8x96xf32> to vector<8x8xf32>
    %226 = vector.shape_cast %222 : vector<8x8xf32> to vector<1x8x8xf32>
    %227 = vector.shape_cast %223 : vector<8x8xf32> to vector<1x8x8xf32>
    %228 = vector.shape_cast %224 : vector<8x8xf32> to vector<1x8x8xf32>
    %229 = vector.shape_cast %225 : vector<8x8xf32> to vector<1x8x8xf32>
    %230 = tpu.concatenate %226, %227, %228, %229 in 0 : vector<1x8x8xf32>, vector<1x8x8xf32>, vector<1x8x8xf32>, vector<1x8x8xf32> -> vector<4x8x8xf32>
    "tpu.trace_start"() <{level = 10 : i32, message = "hqd,hkd->hqk"}> : () -> ()
    %cst_70 = arith.constant dense<0.000000e+00> : vector<4x8x8xf32>
    %231 = tpu.matmul %212, %221, %cst_70 {dimension_numbers = #tpu.dot_dimension_numbers<[2], [2], [1], [1], [0, 0, 0, 1, 1, 1], [0], [0]>} : vector<4x8x8xf32>, vector<4x8x8xf32>, vector<4x8x8xf32> -> vector<4x8x8xf32>
    "tpu.trace_stop"() : () -> ()
    %232 = vector.extract_strided_slice %2 {offsets = [0, 0, 0], sizes = [1, 1, 8], strides = [1, 1, 1]} : vector<2x1x8xf32> to vector<1x1x8xf32>
    %233 = vector.shape_cast %232 : vector<1x1x8xf32> to vector<1x8xf32>
    %234 = vector.broadcast %233 : vector<1x8xf32> to vector<8x8xf32>
    %235 = arith.addf %1, %234 : vector<8x8xf32>
    %236 = vector.shape_cast %235 : vector<8x8xf32> to vector<1x8x8xf32>
    %237 = vector.broadcast %236 : vector<1x8x8xf32> to vector<4x8x8xf32>
    %238 = arith.addf %231, %237 : vector<4x8x8xf32>
    %cst_71 = arith.constant dense<0xFF800000> : vector<4x8xf32>
    %239 = vector.multi_reduction <maximumf>, %238, %cst_71 [2] : vector<4x8x8xf32> to vector<4x8xf32>
    %240 = vector.shape_cast %239 : vector<4x8xf32> to vector<4x8x1xf32>
    %241 = vector.broadcast %240 : vector<4x8x1xf32> to vector<4x8x8xf32>
    %242 = arith.subf %238, %241 : vector<4x8x8xf32>
    %243 = math.exp %242 : vector<4x8x8xf32>
    %cst_72 = arith.constant dense<0.000000e+00> : vector<4x8xf32>
    %244 = vector.multi_reduction <add>, %243, %cst_72 [2] : vector<4x8x8xf32> to vector<4x8xf32>
    %245 = vector.shape_cast %244 : vector<4x8xf32> to vector<4x8x1xf32>
    "tpu.trace_start"() <{level = 10 : i32, message = "hqk,hkd->hqd"}> : () -> ()
    %cst_73 = arith.constant dense<0.000000e+00> : vector<4x8x8xf32>
    %246 = tpu.matmul %243, %230, %cst_73 {dimension_numbers = #tpu.dot_dimension_numbers<[2], [1], [1], [2], [0, 0, 0, 1, 1, 2], [0], [0]>} : vector<4x8x8xf32>, vector<4x8x8xf32>, vector<4x8x8xf32> -> vector<4x8x8xf32>
    "tpu.trace_stop"() : () -> ()
    %247 = tpu.reciprocal %245 {approx = true} : vector<4x8x1xf32> -> vector<4x8x1xf32>
    %248 = vector.broadcast %247 : vector<4x8x1xf32> to vector<4x8x8xf32>
    %249 = arith.mulf %246, %248 : vector<4x8x8xf32>
    %250 = vector.extract_strided_slice %249 {offsets = [0, 0, 0], sizes = [1, 8, 8], strides = [1, 1, 1]} : vector<4x8x8xf32> to vector<1x8x8xf32>
    %251 = vector.shape_cast %250 : vector<1x8x8xf32> to vector<8x8xf32>
    %252 = vector.extract_strided_slice %249 {offsets = [1, 0, 0], sizes = [1, 8, 8], strides = [1, 1, 1]} : vector<4x8x8xf32> to vector<1x8x8xf32>
    %253 = vector.shape_cast %252 : vector<1x8x8xf32> to vector<8x8xf32>
    %254 = vector.extract_strided_slice %249 {offsets = [2, 0, 0], sizes = [1, 8, 8], strides = [1, 1, 1]} : vector<4x8x8xf32> to vector<1x8x8xf32>
    %255 = vector.shape_cast %254 : vector<1x8x8xf32> to vector<8x8xf32>
    %256 = vector.extract_strided_slice %249 {offsets = [3, 0, 0], sizes = [1, 8, 8], strides = [1, 1, 1]} : vector<4x8x8xf32> to vector<1x8x8xf32>
    %257 = vector.shape_cast %256 : vector<1x8x8xf32> to vector<8x8xf32>
    %258 = tpu.concatenate %251, %253, %255, %257 in 1 : vector<8x8xf32>, vector<8x8xf32>, vector<8x8xf32>, vector<8x8xf32> -> vector<8x32xf32>
    %259 = vector.extract_strided_slice %202 {offsets = [8, 0], sizes = [8, 96], strides = [1, 1]} : vector<16x96xf32> to vector<8x96xf32>
    %260 = vector.extract_strided_slice %259 {offsets = [0, 0], sizes = [8, 8], strides = [1, 1]} : vector<8x96xf32> to vector<8x8xf32>
    %261 = vector.extract_strided_slice %259 {offsets = [0, 8], sizes = [8, 8], strides = [1, 1]} : vector<8x96xf32> to vector<8x8xf32>
    %262 = vector.extract_strided_slice %259 {offsets = [0, 16], sizes = [8, 8], strides = [1, 1]} : vector<8x96xf32> to vector<8x8xf32>
    %263 = vector.extract_strided_slice %259 {offsets = [0, 24], sizes = [8, 8], strides = [1, 1]} : vector<8x96xf32> to vector<8x8xf32>
    %264 = vector.shape_cast %260 : vector<8x8xf32> to vector<1x8x8xf32>
    %265 = vector.shape_cast %261 : vector<8x8xf32> to vector<1x8x8xf32>
    %266 = vector.shape_cast %262 : vector<8x8xf32> to vector<1x8x8xf32>
    %267 = vector.shape_cast %263 : vector<8x8xf32> to vector<1x8x8xf32>
    %268 = tpu.concatenate %264, %265, %266, %267 in 0 : vector<1x8x8xf32>, vector<1x8x8xf32>, vector<1x8x8xf32>, vector<1x8x8xf32> -> vector<4x8x8xf32>
    %269 = vector.extract_strided_slice %259 {offsets = [0, 32], sizes = [8, 8], strides = [1, 1]} : vector<8x96xf32> to vector<8x8xf32>
    %270 = vector.extract_strided_slice %259 {offsets = [0, 40], sizes = [8, 8], strides = [1, 1]} : vector<8x96xf32> to vector<8x8xf32>
    %271 = vector.extract_strided_slice %259 {offsets = [0, 48], sizes = [8, 8], strides = [1, 1]} : vector<8x96xf32> to vector<8x8xf32>
    %272 = vector.extract_strided_slice %259 {offsets = [0, 56], sizes = [8, 8], strides = [1, 1]} : vector<8x96xf32> to vector<8x8xf32>
    %273 = vector.shape_cast %269 : vector<8x8xf32> to vector<1x8x8xf32>
    %274 = vector.shape_cast %270 : vector<8x8xf32> to vector<1x8x8xf32>
    %275 = vector.shape_cast %271 : vector<8x8xf32> to vector<1x8x8xf32>
    %276 = vector.shape_cast %272 : vector<8x8xf32> to vector<1x8x8xf32>
    %277 = tpu.concatenate %273, %274, %275, %276 in 0 : vector<1x8x8xf32>, vector<1x8x8xf32>, vector<1x8x8xf32>, vector<1x8x8xf32> -> vector<4x8x8xf32>
    %278 = vector.extract_strided_slice %259 {offsets = [0, 64], sizes = [8, 8], strides = [1, 1]} : vector<8x96xf32> to vector<8x8xf32>
    %279 = vector.extract_strided_slice %259 {offsets = [0, 72], sizes = [8, 8], strides = [1, 1]} : vector<8x96xf32> to vector<8x8xf32>
    %280 = vector.extract_strided_slice %259 {offsets = [0, 80], sizes = [8, 8], strides = [1, 1]} : vector<8x96xf32> to vector<8x8xf32>
    %281 = vector.extract_strided_slice %259 {offsets = [0, 88], sizes = [8, 8], strides = [1, 1]} : vector<8x96xf32> to vector<8x8xf32>
    %282 = vector.shape_cast %278 : vector<8x8xf32> to vector<1x8x8xf32>
    %283 = vector.shape_cast %279 : vector<8x8xf32> to vector<1x8x8xf32>
    %284 = vector.shape_cast %280 : vector<8x8xf32> to vector<1x8x8xf32>
    %285 = vector.shape_cast %281 : vector<8x8xf32> to vector<1x8x8xf32>
    %286 = tpu.concatenate %282, %283, %284, %285 in 0 : vector<1x8x8xf32>, vector<1x8x8xf32>, vector<1x8x8xf32>, vector<1x8x8xf32> -> vector<4x8x8xf32>
    "tpu.trace_start"() <{level = 10 : i32, message = "hqd,hkd->hqk"}> : () -> ()
    %cst_74 = arith.constant dense<0.000000e+00> : vector<4x8x8xf32>
    %287 = tpu.matmul %268, %277, %cst_74 {dimension_numbers = #tpu.dot_dimension_numbers<[2], [2], [1], [1], [0, 0, 0, 1, 1, 1], [0], [0]>} : vector<4x8x8xf32>, vector<4x8x8xf32>, vector<4x8x8xf32> -> vector<4x8x8xf32>
    "tpu.trace_stop"() : () -> ()
    %288 = vector.extract_strided_slice %2 {offsets = [1, 0, 0], sizes = [1, 1, 8], strides = [1, 1, 1]} : vector<2x1x8xf32> to vector<1x1x8xf32>
    %289 = vector.shape_cast %288 : vector<1x1x8xf32> to vector<1x8xf32>
    %290 = vector.broadcast %289 : vector<1x8xf32> to vector<8x8xf32>
    %291 = arith.addf %1, %290 : vector<8x8xf32>
    %292 = vector.shape_cast %291 : vector<8x8xf32> to vector<1x8x8xf32>
    %293 = vector.broadcast %292 : vector<1x8x8xf32> to vector<4x8x8xf32>
    %294 = arith.addf %287, %293 : vector<4x8x8xf32>
    %cst_75 = arith.constant dense<0xFF800000> : vector<4x8xf32>
    %295 = vector.multi_reduction <maximumf>, %294, %cst_75 [2] : vector<4x8x8xf32> to vector<4x8xf32>
    %296 = vector.shape_cast %295 : vector<4x8xf32> to vector<4x8x1xf32>
    %297 = vector.broadcast %296 : vector<4x8x1xf32> to vector<4x8x8xf32>
    %298 = arith.subf %294, %297 : vector<4x8x8xf32>
    %299 = math.exp %298 : vector<4x8x8xf32>
    %cst_76 = arith.constant dense<0.000000e+00> : vector<4x8xf32>
    %300 = vector.multi_reduction <add>, %299, %cst_76 [2] : vector<4x8x8xf32> to vector<4x8xf32>
    %301 = vector.shape_cast %300 : vector<4x8xf32> to vector<4x8x1xf32>
    "tpu.trace_start"() <{level = 10 : i32, message = "hqk,hkd->hqd"}> : () -> ()
    %cst_77 = arith.constant dense<0.000000e+00> : vector<4x8x8xf32>
    %302 = tpu.matmul %299, %286, %cst_77 {dimension_numbers = #tpu.dot_dimension_numbers<[2], [1], [1], [2], [0, 0, 0, 1, 1, 2], [0], [0]>} : vector<4x8x8xf32>, vector<4x8x8xf32>, vector<4x8x8xf32> -> vector<4x8x8xf32>
    "tpu.trace_stop"() : () -> ()
    %303 = tpu.reciprocal %301 {approx = true} : vector<4x8x1xf32> -> vector<4x8x1xf32>
    %304 = vector.broadcast %303 : vector<4x8x1xf32> to vector<4x8x8xf32>
    %305 = arith.mulf %302, %304 : vector<4x8x8xf32>
    %306 = vector.extract_strided_slice %305 {offsets = [0, 0, 0], sizes = [1, 8, 8], strides = [1, 1, 1]} : vector<4x8x8xf32> to vector<1x8x8xf32>
    %307 = vector.shape_cast %306 : vector<1x8x8xf32> to vector<8x8xf32>
    %308 = vector.extract_strided_slice %305 {offsets = [1, 0, 0], sizes = [1, 8, 8], strides = [1, 1, 1]} : vector<4x8x8xf32> to vector<1x8x8xf32>
    %309 = vector.shape_cast %308 : vector<1x8x8xf32> to vector<8x8xf32>
    %310 = vector.extract_strided_slice %305 {offsets = [2, 0, 0], sizes = [1, 8, 8], strides = [1, 1, 1]} : vector<4x8x8xf32> to vector<1x8x8xf32>
    %311 = vector.shape_cast %310 : vector<1x8x8xf32> to vector<8x8xf32>
    %312 = vector.extract_strided_slice %305 {offsets = [3, 0, 0], sizes = [1, 8, 8], strides = [1, 1, 1]} : vector<4x8x8xf32> to vector<1x8x8xf32>
    %313 = vector.shape_cast %312 : vector<1x8x8xf32> to vector<8x8xf32>
    %314 = tpu.concatenate %307, %309, %311, %313 in 1 : vector<8x8xf32>, vector<8x8xf32>, vector<8x8xf32>, vector<8x8xf32> -> vector<8x32xf32>
    %315 = tpu.concatenate %258, %314 in 0 : vector<8x32xf32>, vector<8x32xf32> -> vector<16x32xf32>
    %c1_78 = arith.constant 1 : index
    %c0_79 = arith.constant 0 : index
    %c0_80 = arith.constant 0 : index
    %316 = vector.load %arg6[%c1_78, %c0_79, %c0_80] : memref<2x32x32xf32, #tpu.memory_space<vmem>>, vector<1x32x32xf32>
    %317 = vector.shape_cast %316 : vector<1x32x32xf32> to vector<32x32xf32>
    %cst_81 = arith.constant dense<0.000000e+00> : vector<16x32xf32>
    %318 = tpu.matmul %315, %317, %cst_81 {dimension_numbers = #tpu.dot_dimension_numbers<[1], [0], [0], [1], [0, 0, 1, 1], [], []>} : vector<16x32xf32>, vector<32x32xf32>, vector<16x32xf32> -> vector<16x32xf32>
    %c1_82 = arith.constant 1 : index
    %c0_83 = arith.constant 0 : index
    %c0_84 = arith.constant 0 : index
    %319 = vector.load %arg7[%c1_82, %c0_83, %c0_84] : memref<2x1x32xf32, #tpu.memory_space<vmem>>, vector<1x1x32xf32>
    %320 = vector.shape_cast %319 : vector<1x1x32xf32> to vector<1x32xf32>
    %321 = vector.broadcast %320 : vector<1x32xf32> to vector<16x32xf32>
    %322 = arith.addf %318, %321 : vector<16x32xf32>
    %323 = arith.addf %195, %322 : vector<16x32xf32>
    %c1_85 = arith.constant 1 : index
    %c0_86 = arith.constant 0 : index
    %c0_87 = arith.constant 0 : index
    %324 = vector.load %arg12[%c1_85, %c0_86, %c0_87] : memref<2x1x32xf32, #tpu.memory_space<vmem>>, vector<1x1x32xf32>
    %325 = vector.shape_cast %324 : vector<1x1x32xf32> to vector<1x32xf32>
    %c1_88 = arith.constant 1 : index
    %c0_89 = arith.constant 0 : index
    %c0_90 = arith.constant 0 : index
    %326 = vector.load %arg13[%c1_88, %c0_89, %c0_90] : memref<2x1x32xf32, #tpu.memory_space<vmem>>, vector<1x1x32xf32>
    %327 = vector.shape_cast %326 : vector<1x1x32xf32> to vector<1x32xf32>
    %cst_91 = arith.constant dense<0.000000e+00> : vector<16xf32>
    %328 = vector.multi_reduction <add>, %323, %cst_91 [1] : vector<16x32xf32> to vector<16xf32>
    %329 = vector.shape_cast %328 : vector<16xf32> to vector<16x1xf32>
    %cst_92 = arith.constant 3.200000e+01 : f32
    %330 = vector.broadcast %cst_92 : f32 to vector<16x1xf32>
    %331 = arith.divf %329, %330 : vector<16x1xf32>
    %332 = vector.broadcast %331 : vector<16x1xf32> to vector<16x32xf32>
    %333 = arith.subf %323, %332 : vector<16x32xf32>
    %334 = arith.mulf %333, %333 : vector<16x32xf32>
    %cst_93 = arith.constant dense<0.000000e+00> : vector<16xf32>
    %335 = vector.multi_reduction <add>, %334, %cst_93 [1] : vector<16x32xf32> to vector<16xf32>
    %336 = vector.shape_cast %335 : vector<16xf32> to vector<16x1xf32>
    %cst_94 = arith.constant 3.200000e+01 : f32
    %337 = vector.broadcast %cst_94 : f32 to vector<16x1xf32>
    %338 = arith.divf %336, %337 : vector<16x1xf32>
    %cst_95 = arith.constant 9.99999974E-6 : f32
    %339 = vector.broadcast %cst_95 : f32 to vector<16x1xf32>
    %340 = arith.addf %338, %339 : vector<16x1xf32>
    %341 = math.rsqrt %340 : vector<16x1xf32>
    %342 = vector.broadcast %341 : vector<16x1xf32> to vector<16x32xf32>
    %343 = arith.mulf %333, %342 : vector<16x32xf32>
    %344 = vector.broadcast %325 : vector<1x32xf32> to vector<16x32xf32>
    %345 = arith.mulf %343, %344 : vector<16x32xf32>
    %346 = vector.broadcast %327 : vector<1x32xf32> to vector<16x32xf32>
    %347 = arith.addf %345, %346 : vector<16x32xf32>
    %c1_96 = arith.constant 1 : index
    %c0_97 = arith.constant 0 : index
    %c0_98 = arith.constant 0 : index
    %348 = vector.load %arg8[%c1_96, %c0_97, %c0_98] : memref<2x32x64xf32, #tpu.memory_space<vmem>>, vector<1x32x64xf32>
    %349 = vector.shape_cast %348 : vector<1x32x64xf32> to vector<32x64xf32>
    %cst_99 = arith.constant dense<0.000000e+00> : vector<16x64xf32>
    %350 = tpu.matmul %347, %349, %cst_99 {dimension_numbers = #tpu.dot_dimension_numbers<[1], [0], [0], [1], [0, 0, 1, 1], [], []>} : vector<16x32xf32>, vector<32x64xf32>, vector<16x64xf32> -> vector<16x64xf32>
    %c1_100 = arith.constant 1 : index
    %c0_101 = arith.constant 0 : index
    %c0_102 = arith.constant 0 : index
    %351 = vector.load %arg9[%c1_100, %c0_101, %c0_102] : memref<2x1x64xf32, #tpu.memory_space<vmem>>, vector<1x1x64xf32>
    %352 = vector.shape_cast %351 : vector<1x1x64xf32> to vector<1x64xf32>
    %353 = vector.broadcast %352 : vector<1x64xf32> to vector<16x64xf32>
    %354 = arith.addf %350, %353 : vector<16x64xf32>
    %cst_103 = arith.constant 0.000000e+00 : f32
    %355 = vector.broadcast %cst_103 : f32 to vector<16x64xf32>
    %356 = arith.maximumf %354, %355 : vector<16x64xf32>
    %c1_104 = arith.constant 1 : index
    %c0_105 = arith.constant 0 : index
    %c0_106 = arith.constant 0 : index
    %357 = vector.load %arg10[%c1_104, %c0_105, %c0_106] : memref<2x64x32xf32, #tpu.memory_space<vmem>>, vector<1x64x32xf32>
    %358 = vector.shape_cast %357 : vector<1x64x32xf32> to vector<64x32xf32>
    %cst_107 = arith.constant dense<0.000000e+00> : vector<16x32xf32>
    %359 = tpu.matmul %356, %358, %cst_107 {dimension_numbers = #tpu.dot_dimension_numbers<[1], [0], [0], [1], [0, 0, 1, 1], [], []>} : vector<16x64xf32>, vector<64x32xf32>, vector<16x32xf32> -> vector<16x32xf32>
    %c1_108 = arith.constant 1 : index
    %c0_109 = arith.constant 0 : index
    %c0_110 = arith.constant 0 : index
    %360 = vector.load %arg11[%c1_108, %c0_109, %c0_110] : memref<2x1x32xf32, #tpu.memory_space<vmem>>, vector<1x1x32xf32>
    %361 = vector.shape_cast %360 : vector<1x1x32xf32> to vector<1x32xf32>
    %362 = vector.broadcast %361 : vector<1x32xf32> to vector<16x32xf32>
    %363 = arith.addf %359, %362 : vector<16x32xf32>
    %364 = arith.addf %347, %363 : vector<16x32xf32>
    %c1_111 = arith.constant 1 : index
    %c0_112 = arith.constant 0 : index
    %c0_113 = arith.constant 0 : index
    %365 = vector.load %arg14[%c1_111, %c0_112, %c0_113] : memref<2x1x32xf32, #tpu.memory_space<vmem>>, vector<1x1x32xf32>
    %366 = vector.shape_cast %365 : vector<1x1x32xf32> to vector<1x32xf32>
    %c1_114 = arith.constant 1 : index
    %c0_115 = arith.constant 0 : index
    %c0_116 = arith.constant 0 : index
    %367 = vector.load %arg15[%c1_114, %c0_115, %c0_116] : memref<2x1x32xf32, #tpu.memory_space<vmem>>, vector<1x1x32xf32>
    %368 = vector.shape_cast %367 : vector<1x1x32xf32> to vector<1x32xf32>
    %cst_117 = arith.constant dense<0.000000e+00> : vector<16xf32>
    %369 = vector.multi_reduction <add>, %364, %cst_117 [1] : vector<16x32xf32> to vector<16xf32>
    %370 = vector.shape_cast %369 : vector<16xf32> to vector<16x1xf32>
    %cst_118 = arith.constant 3.200000e+01 : f32
    %371 = vector.broadcast %cst_118 : f32 to vector<16x1xf32>
    %372 = arith.divf %370, %371 : vector<16x1xf32>
    %373 = vector.broadcast %372 : vector<16x1xf32> to vector<16x32xf32>
    %374 = arith.subf %364, %373 : vector<16x32xf32>
    %375 = arith.mulf %374, %374 : vector<16x32xf32>
    %cst_119 = arith.constant dense<0.000000e+00> : vector<16xf32>
    %376 = vector.multi_reduction <add>, %375, %cst_119 [1] : vector<16x32xf32> to vector<16xf32>
    %377 = vector.shape_cast %376 : vector<16xf32> to vector<16x1xf32>
    %cst_120 = arith.constant 3.200000e+01 : f32
    %378 = vector.broadcast %cst_120 : f32 to vector<16x1xf32>
    %379 = arith.divf %377, %378 : vector<16x1xf32>
    %cst_121 = arith.constant 9.99999974E-6 : f32
    %380 = vector.broadcast %cst_121 : f32 to vector<16x1xf32>
    %381 = arith.addf %379, %380 : vector<16x1xf32>
    %382 = math.rsqrt %381 : vector<16x1xf32>
    %383 = vector.broadcast %382 : vector<16x1xf32> to vector<16x32xf32>
    %384 = arith.mulf %374, %383 : vector<16x32xf32>
    %385 = vector.broadcast %366 : vector<1x32xf32> to vector<16x32xf32>
    %386 = arith.mulf %384, %385 : vector<16x32xf32>
    %387 = vector.broadcast %368 : vector<1x32xf32> to vector<16x32xf32>
    %388 = arith.addf %386, %387 : vector<16x32xf32>
    %c0_122 = arith.constant 0 : index
    %c0_123 = arith.constant 0 : index
    %389 = vector.load %arg16[%c0_122, %c0_123] : memref<16x32xf32, #tpu.memory_space<vmem>>, vector<16x32xf32>
    tpu.vector_store %arg16[%c0_122, %c0_123], %388 {strides = array<i32>} : memref<16x32xf32, #tpu.memory_space<vmem>>, vector<16x32xf32>,
    return
  }
  func.func @transform_0(%arg0: i32) -> (i32, i32) {
    %c0_i32 = arith.constant 0 : i32
    %c0_i32_0 = arith.constant 0 : i32
    return %arg0, %c0_i32 : i32, i32
  }
  func.func @transform_1(%arg0: i32) -> (i32, i32) {
    %c0_i32 = arith.constant 0 : i32
    %c0_i32_0 = arith.constant 0 : i32
    %c0_i32_1 = arith.constant 0 : i32
    return %c0_i32, %c0_i32_0 : i32, i32
  }
  func.func @transform_2(%arg0: i32) -> (i32, i32, i32) {
    %c0_i32 = arith.constant 0 : i32
    %c0_i32_0 = arith.constant 0 : i32
    %c0_i32_1 = arith.constant 0 : i32
    return %arg0, %c0_i32, %c0_i32_0 : i32, i32, i32
  }
  func.func @transform_3(%arg0: i32) -> (i32, i32, i32) {
    %c0_i32 = arith.constant 0 : i32
    %c0_i32_0 = arith.constant 0 : i32
    %c0_i32_1 = arith.constant 0 : i32
    %c0_i32_2 = arith.constant 0 : i32
    return %c0_i32, %c0_i32_0, %c0_i32_1 : i32, i32, i32
  }
  func.func @transform_4(%arg0: i32) -> (i32, i32, i32) {
    %c0_i32 = arith.constant 0 : i32
    %c0_i32_0 = arith.constant 0 : i32
    %c0_i32_1 = arith.constant 0 : i32
    %c0_i32_2 = arith.constant 0 : i32
    return %c0_i32, %c0_i32_0, %c0_i32_1 : i32, i32, i32
  }
  func.func @transform_5(%arg0: i32) -> (i32, i32, i32) {
    %c0_i32 = arith.constant 0 : i32
    %c0_i32_0 = arith.constant 0 : i32
    %c0_i32_1 = arith.constant 0 : i32
    %c0_i32_2 = arith.constant 0 : i32
    return %c0_i32, %c0_i32_0, %c0_i32_1 : i32, i32, i32
  }
  func.func @transform_6(%arg0: i32) -> (i32, i32, i32) {
    %c0_i32 = arith.constant 0 : i32
    %c0_i32_0 = arith.constant 0 : i32
    %c0_i32_1 = arith.constant 0 : i32
    %c0_i32_2 = arith.constant 0 : i32
    return %c0_i32, %c0_i32_0, %c0_i32_1 : i32, i32, i32
  }
  func.func @transform_7(%arg0: i32) -> (i32, i32, i32) {
    %c0_i32 = arith.constant 0 : i32
    %c0_i32_0 = arith.constant 0 : i32
    %c0_i32_1 = arith.constant 0 : i32
    %c0_i32_2 = arith.constant 0 : i32
    return %c0_i32, %c0_i32_0, %c0_i32_1 : i32, i32, i32
  }
  func.func @transform_8(%arg0: i32) -> (i32, i32, i32) {
    %c0_i32 = arith.constant 0 : i32
    %c0_i32_0 = arith.constant 0 : i32
    %c0_i32_1 = arith.constant 0 : i32
    %c0_i32_2 = arith.constant 0 : i32
    return %c0_i32, %c0_i32_0, %c0_i32_1 : i32, i32, i32
  }
  func.func @transform_9(%arg0: i32) -> (i32, i32, i32) {
    %c0_i32 = arith.constant 0 : i32
    %c0_i32_0 = arith.constant 0 : i32
    %c0_i32_1 = arith.constant 0 : i32
    %c0_i32_2 = arith.constant 0 : i32
    return %c0_i32, %c0_i32_0, %c0_i32_1 : i32, i32, i32
  }
  func.func @transform_10(%arg0: i32) -> (i32, i32, i32) {
    %c0_i32 = arith.constant 0 : i32
    %c0_i32_0 = arith.constant 0 : i32
    %c0_i32_1 = arith.constant 0 : i32
    %c0_i32_2 = arith.constant 0 : i32
    return %c0_i32, %c0_i32_0, %c0_i32_1 : i32, i32, i32
  }
  func.func @transform_11(%arg0: i32) -> (i32, i32, i32) {
    %c0_i32 = arith.constant 0 : i32
    %c0_i32_0 = arith.constant 0 : i32
    %c0_i32_1 = arith.constant 0 : i32
    %c0_i32_2 = arith.constant 0 : i32
    return %c0_i32, %c0_i32_0, %c0_i32_1 : i32, i32, i32
  }
  func.func @transform_12(%arg0: i32) -> (i32, i32, i32) {
    %c0_i32 = arith.constant 0 : i32
    %c0_i32_0 = arith.constant 0 : i32
    %c0_i32_1 = arith.constant 0 : i32
    %c0_i32_2 = arith.constant 0 : i32
    return %c0_i32, %c0_i32_0, %c0_i32_1 : i32, i32, i32
  }
  func.func @transform_13(%arg0: i32) -> (i32, i32, i32) {
    %c0_i32 = arith.constant 0 : i32
    %c0_i32_0 = arith.constant 0 : i32
    %c0_i32_1 = arith.constant 0 : i32
    %c0_i32_2 = arith.constant 0 : i32
    return %c0_i32, %c0_i32_0, %c0_i32_1 : i32, i32, i32
  }
  func.func @transform_14(%arg0: i32) -> (i32, i32, i32) {
    %c0_i32 = arith.constant 0 : i32
    %c0_i32_0 = arith.constant 0 : i32
    %c0_i32_1 = arith.constant 0 : i32
    %c0_i32_2 = arith.constant 0 : i32
    return %c0_i32, %c0_i32_0, %c0_i32_1 : i32, i32, i32
  }
  func.func @transform_15(%arg0: i32) -> (i32, i32) {
    %c0_i32 = arith.constant 0 : i32
    %c0_i32_0 = arith.constant 0 : i32
    return %arg0, %c0_i32 : i32, i32
  }
}

</mosaic_0001>

<llo_original>
// kernel: tpu_custom_call.1
$region0: #{tpu_custom_call.1}
  #allocation0 [shape = 'u32[]', space=smem, size = 0x4, offset = 0x4, fixed_abs, tag = 'smem constant byte address 0x4 - core index']
  #allocation1 [shape = 'u32[72,128]{1,0:T(1,128)}', space=vmem, size = 0x9000, scoped, tag = 'internal scratch']
  %s0 = inlined_call_operand.hbm [shape: f32[32,32], index: 0, kind: input, shape index: {}]
  %s1 = inlined_call_operand.hbm [shape: f32[8,8], index: 1, kind: input, shape index: {}]
  %s2 = inlined_call_operand.hbm [shape: f32[4,1,8], index: 2, kind: input, shape index: {}]
  %s3 = inlined_call_operand.vmem [shape: f32[2,32,96], index: 3, kind: input, shape index: {}]
  %s4 = inlined_call_operand.vmem [shape: f32[2,1,96], index: 4, kind: input, shape index: {}]
  %s5 = inlined_call_operand.vmem [shape: f32[2,32,32], index: 5, kind: input, shape index: {}]
  %s6 = inlined_call_operand.vmem [shape: f32[2,1,32], index: 6, kind: input, shape index: {}]
  %s7 = inlined_call_operand.vmem [shape: f32[2,32,64], index: 7, kind: input, shape index: {}]
  %s8 = inlined_call_operand.hbm [shape: f32[2,1,64], index: 8, kind: input, shape index: {}]
  %s9 = inlined_call_operand.vmem [shape: f32[2,64,32], index: 9, kind: input, shape index: {}]
  %s10 = inlined_call_operand.vmem [shape: f32[2,1,32], index: 10, kind: input, shape index: {}]
  %s11 = inlined_call_operand.vmem [shape: f32[2,1,32], index: 11, kind: input, shape index: {}]
  %s12 = inlined_call_operand.vmem [shape: f32[2,1,32], index: 12, kind: input, shape index: {}]
  %s13 = inlined_call_operand.hbm [shape: f32[2,1,32], index: 13, kind: input, shape index: {}]
  %s14 = inlined_call_operand.hbm [shape: f32[2,1,32], index: 14, kind: input, shape index: {}]
  %s15 = inlined_call_operand.hbm [shape: f32[32,32], index: 15, kind: output, shape index: {}]
  %s16 = sld [smem:[#allocation0]]
  $region117: #{tpu_custom_call.1} parent=0
    _
  %s18 = ssub.s32 1, %s16
  %s19 = scalar_select 0, %s18, %s16
  $region1: #{tpu_custom_call.1} parent=0
    #allocation2 [shape = 'u8[16384]{0}', space=vmem, size = 0x4000, scoped, tag = 'input window, operand 0']
    #allocation3 [shape = 's32[2]{0}', space=sflag, size = 0x8, scoped, tag = 'scoped memory for tpu_custom_call.1']
    #allocation4 [shape = 's32[2]{0}', space=sflag, size = 0x8, scoped, tag = 'scoped memory for tpu_custom_call.1']
    #allocation5 [shape = 'u8[4096]{0}', space=vmem, size = 0x1000, scoped, tag = 'input window, operand 1, single buffered']
    #allocation6 [shape = 's32[1]{0}', space=sflag, size = 0x4, scoped, tag = 'scoped memory for tpu_custom_call.1']
    #allocation7 [shape = 'u8[2048]{0}', space=vmem, size = 0x800, scoped, tag = 'input window, operand 2']
    #allocation8 [shape = 'u8[1024]{0}', space=vmem, size = 0x400, scoped, tag = 'input window, operand 8, single buffered']
    #allocation9 [shape = 'u8[1024]{0}', space=vmem, size = 0x400, scoped, tag = 'input window, operand 13, single buffered']
    #allocation10 [shape = 's32[1]{0}', space=sflag, size = 0x4, scoped, tag = 'scoped memory for tpu_custom_call.1']
    #allocation11 [shape = 'u8[1024]{0}', space=vmem, size = 0x400, scoped, tag = 'input window, operand 14, single buffered']
    #allocation12 [shape = 'u8[16384]{0}', space=vmem, size = 0x4000, scoped, tag = 'output window, operand 0']
    %20 = vsyncpa [#allocation3], 0
    %s21 = scalar_lea.sflag [#allocation3], 1
    %22 = vsyncpa %s21, 0
    %23 = vsyncpa [#allocation6], 0
    %24 = vsyncpa [#allocation10], 0
    %25 = vsyncpa [#allocation4], 0
    %s26 = scalar_lea.sflag [#allocation4], 1
    %27 = vsyncpa %s26, 0
    loop: start=0, step=1, limit=4
    $region2: #{tpu_custom_call.1} parent=1 // loop_pre_header
      _
    $region3: #{tpu_custom_call.1} parent=1 // loop_header
      %s29 = sphi 0, %s33
      %p30 = scmp.ge.s32.totalorder %s29, 4
      %s39 = sphi 0, %s41
      %s42 = sphi 0, %s39
      %s43 = sphi 0, %s42
      %s59 = sphi 0, %s43
      %s63 = sphi 0, %s63
      %s65 = sphi 0, %s63
      %s66 = sphi 0, %s65
      %s80 = sphi 0, %s66
      %s86 = sphi 0, %s88
      %s89 = sphi 0, %s86
      %s90 = sphi 0, %s89
      %s106 = sphi 0, %s90
      %s110 = sphi 0, %s110
      %s112 = sphi 0, %s110
      %s113 = sphi 0, %s112
      %s127 = sphi 0, %s113
      %s131 = sphi 0, %s131
      %s133 = sphi 0, %s131
      %s134 = sphi 0, %s133
      %s148 = sphi 0, %s134
      %s152 = sphi 0, %s152
      %s154 = sphi 0, %s152
      %s155 = sphi 0, %s154
      %s169 = sphi 0, %s155
      %s173 = sphi 0, %s173
      %s175 = sphi 0, %s173
      %s176 = sphi 0, %s175
      %s190 = sphi 0, %s176
      %s194 = sphi 0, %s194
      %s196 = sphi 0, %s194
      %s197 = sphi 0, %s196
      %s211 = sphi 0, %s197
      %s215 = sphi 0, %s215
      %s217 = sphi 0, %s215
      %s218 = sphi 0, %s217
      %s232 = sphi 0, %s218
      %s236 = sphi 0, %s236
      %s238 = sphi 0, %s236
      %s239 = sphi 0, %s238
      %s253 = sphi 0, %s239
      %s257 = sphi 0, %s257
      %s259 = sphi 0, %s257
      %s260 = sphi 0, %s259
      %s274 = sphi 0, %s260
      %s278 = sphi 0, %s278
      %s280 = sphi 0, %s278
      %s281 = sphi 0, %s280
      %s295 = sphi 0, %s281
      %s299 = sphi 0, %s299
      %s301 = sphi 0, %s299
      %s302 = sphi 0, %s301
      %s316 = sphi 0, %s302
      %s320 = sphi 0, %s320
      %s322 = sphi 0, %s320
      %s323 = sphi 0, %s322
      %s337 = sphi 0, %s323
      %s341 = sphi 0, %s341
      %s343 = sphi 0, %s341
      %s344 = sphi 0, %s343
      %s358 = sphi 0, %s344
      %s364 = sphi 0, %s366
      %s367 = sphi 0, %s364
      %s368 = sphi 0, %s367
      %s384 = sphi 0, %s368
    $region4: #{tpu_custom_call.1} parent=1 // loop_header_branch
      %32 = sbr.rel (%p30) target = $region8
    $region5: #{tpu_custom_call.1} parent=1 // loop_body
      %s34 = ssub.s32 %s29, 1
      %s35 = ssub.s32 %s29, 2
      %s36 = sadd.s32 %s29, 1
      %s37 = ssub.s32 %s29, %s36
      %p38 = scmp.eq.s32.totalorder %s37, 0
      %s40 = sadd.s32 %s39, 1
      %s41 = scalar_select %p38, %s39, %s40
      %p44 = pneg %p38
      %p45 = scmp.eq.s32.totalorder %s29, 1
      %p46 = por %p44, %p45
      %p47 = scmp.ne.s32.totalorder %s39, %s42
      %p48 = scmp.eq.s32.totalorder %s29, 0
      %p49 = por %p47, %p48
      %p50 = scmp.ne.s32.totalorder %s39, %s42
      %p51 = scmp.eq.s32.totalorder %s34, 1
      %p52 = por %p50, %p51
      %p53 = scmp.ne.s32.totalorder %s42, %s43
      %p54 = scmp.eq.s32.totalorder %s34, 0
      %p55 = por %p53, %p54
      %p56 = scmp.ne.s32.totalorder %s42, %s43
      %p57 = scmp.eq.s32.totalorder %s35, 1
      %p58 = por %p56, %p57
      %p60 = scmp.ne.s32.totalorder %s43, %s59
      %p61 = scmp.eq.s32.totalorder %s35, 0
      %p62 = por %p60, %p61
      %s64 = sadd.s32 %s63, 1
      %p67 = scmp.eq.s32.totalorder %s29, 1
      %p68 = scmp.ne.s32.totalorder %s63, %s65
      %p69 = scmp.eq.s32.totalorder %s29, 0
      %p70 = por %p68, %p69
      %p71 = scmp.ne.s32.totalorder %s63, %s65
      %p72 = scmp.eq.s32.totalorder %s34, 1
      %p73 = por %p71, %p72
      %p74 = scmp.ne.s32.totalorder %s65, %s66
      %p75 = scmp.eq.s32.totalorder %s34, 0
      %p76 = por %p74, %p75
      %p77 = scmp.ne.s32.totalorder %s65, %s66
      %p78 = scmp.eq.s32.totalorder %s35, 1
      %p79 = por %p77, %p78
      %p81 = scmp.ne.s32.totalorder %s66, %s80
      %p82 = scmp.eq.s32.totalorder %s35, 0
      %p83 = por %p81, %p82
      %s84 = ssub.s32 %s29, %s36
      %p85 = scmp.eq.s32.totalorder %s84, 0
      %s87 = sadd.s32 %s86, 1
      %s88 = scalar_select %p85, %s86, %s87
      %p91 = pneg %p85
      %p92 = scmp.eq.s32.totalorder %s29, 1
      %p93 = por %p91, %p92
      %p94 = scmp.ne.s32.totalorder %s86, %s89
      %p95 = scmp.eq.s32.totalorder %s29, 0
      %p96 = por %p94, %p95
      %p97 = scmp.ne.s32.totalorder %s86, %s89
      %p98 = scmp.eq.s32.totalorder %s34, 1
      %p99 = por %p97, %p98
      %p100 = scmp.ne.s32.totalorder %s89, %s90
      %p101 = scmp.eq.s32.totalorder %s34, 0
      %p102 = por %p100, %p101
      %p103 = scmp.ne.s32.totalorder %s89, %s90
      %p104 = scmp.eq.s32.totalorder %s35, 1
      %p105 = por %p103, %p104
      %p107 = scmp.ne.s32.totalorder %s90, %s106
      %p108 = scmp.eq.s32.totalorder %s35, 0
      %p109 = por %p107, %p108
      %s111 = sadd.s32 %s110, 1
      %p114 = scmp.eq.s32.totalorder %s29, 1
      %p115 = scmp.ne.s32.totalorder %s110, %s112
      %p116 = scmp.eq.s32.totalorder %s29, 0
      %p117 = por %p115, %p116
      %p118 = scmp.ne.s32.totalorder %s110, %s112
      %p119 = scmp.eq.s32.totalorder %s34, 1
      %p120 = por %p118, %p119
      %p121 = scmp.ne.s32.totalorder %s112, %s113
      %p122 = scmp.eq.s32.totalorder %s34, 0
      %p123 = por %p121, %p122
      %p124 = scmp.ne.s32.totalorder %s112, %s113
      %p125 = scmp.eq.s32.totalorder %s35, 1
      %p126 = por %p124, %p125
      %p128 = scmp.ne.s32.totalorder %s113, %s127
      %p129 = scmp.eq.s32.totalorder %s35, 0
      %p130 = por %p128, %p129
      %s132 = sadd.s32 %s131, 1
      %p135 = scmp.eq.s32.totalorder %s29, 1
      %p136 = scmp.ne.s32.totalorder %s131, %s133
      %p137 = scmp.eq.s32.totalorder %s29, 0
      %p138 = por %p136, %p137
      %p139 = scmp.ne.s32.totalorder %s131, %s133
      %p140 = scmp.eq.s32.totalorder %s34, 1
      %p141 = por %p139, %p140
      %p142 = scmp.ne.s32.totalorder %s133, %s134
      %p143 = scmp.eq.s32.totalorder %s34, 0
      %p144 = por %p142, %p143
      %p145 = scmp.ne.s32.totalorder %s133, %s134
      %p146 = scmp.eq.s32.totalorder %s35, 1
      %p147 = por %p145, %p146
      %p149 = scmp.ne.s32.totalorder %s134, %s148
      %p150 = scmp.eq.s32.totalorder %s35, 0
      %p151 = por %p149, %p150
      %s153 = sadd.s32 %s152, 1
      %p156 = scmp.eq.s32.totalorder %s29, 1
      %p157 = scmp.ne.s32.totalorder %s152, %s154
      %p158 = scmp.eq.s32.totalorder %s29, 0
      %p159 = por %p157, %p158
      %p160 = scmp.ne.s32.totalorder %s152, %s154
      %p161 = scmp.eq.s32.totalorder %s34, 1
      %p162 = por %p160, %p161
      %p163 = scmp.ne.s32.totalorder %s154, %s155
      %p164 = scmp.eq.s32.totalorder %s34, 0
      %p165 = por %p163, %p164
      %p166 = scmp.ne.s32.totalorder %s154, %s155
      %p167 = scmp.eq.s32.totalorder %s35, 1
      %p168 = por %p166, %p167
      %p170 = scmp.ne.s32.totalorder %s155, %s169
      %p171 = scmp.eq.s32.totalorder %s35, 0
      %p172 = por %p170, %p171
      %s174 = sadd.s32 %s173, 1
      %p177 = scmp.eq.s32.totalorder %s29, 1
      %p178 = scmp.ne.s32.totalorder %s173, %s175
      %p179 = scmp.eq.s32.totalorder %s29, 0
      %p180 = por %p178, %p179
      %p181 = scmp.ne.s32.totalorder %s173, %s175
      %p182 = scmp.eq.s32.totalorder %s34, 1
      %p183 = por %p181, %p182
      %p184 = scmp.ne.s32.totalorder %s175, %s176
      %p185 = scmp.eq.s32.totalorder %s34, 0
      %p186 = por %p184, %p185
      %p187 = scmp.ne.s32.totalorder %s175, %s176
      %p188 = scmp.eq.s32.totalorder %s35, 1
      %p189 = por %p187, %p188
      %p191 = scmp.ne.s32.totalorder %s176, %s190
      %p192 = scmp.eq.s32.totalorder %s35, 0
      %p193 = por %p191, %p192
      %s195 = sadd.s32 %s194, 1
      %p198 = scmp.eq.s32.totalorder %s29, 1
      %p199 = scmp.ne.s32.totalorder %s194, %s196
      %p200 = scmp.eq.s32.totalorder %s29, 0
      %p201 = por %p199, %p200
      %p202 = scmp.ne.s32.totalorder %s194, %s196
      %p203 = scmp.eq.s32.totalorder %s34, 1
      %p204 = por %p202, %p203
      %p205 = scmp.ne.s32.totalorder %s196, %s197
      %p206 = scmp.eq.s32.totalorder %s34, 0
      %p207 = por %p205, %p206
      %p208 = scmp.ne.s32.totalorder %s196, %s197
      %p209 = scmp.eq.s32.totalorder %s35, 1
      %p210 = por %p208, %p209
      %p212 = scmp.ne.s32.totalorder %s197, %s211
      %p213 = scmp.eq.s32.totalorder %s35, 0
      %p214 = por %p212, %p213
      %s216 = sadd.s32 %s215, 1
      %p219 = scmp.eq.s32.totalorder %s29, 1
      %p220 = scmp.ne.s32.totalorder %s215, %s217
      %p221 = scmp.eq.s32.totalorder %s29, 0
      %p222 = por %p220, %p221
      %p223 = scmp.ne.s32.totalorder %s215, %s217
      %p224 = scmp.eq.s32.totalorder %s34, 1
      %p225 = por %p223, %p224
      %p226 = scmp.ne.s32.totalorder %s217, %s218
      %p227 = scmp.eq.s32.totalorder %s34, 0
      %p228 = por %p226, %p227
      %p229 = scmp.ne.s32.totalorder %s217, %s218
      %p230 = scmp.eq.s32.totalorder %s35, 1
      %p231 = por %p229, %p230
      %p233 = scmp.ne.s32.totalorder %s218, %s232
      %p234 = scmp.eq.s32.totalorder %s35, 0
      %p235 = por %p233, %p234
      %s237 = sadd.s32 %s236, 1
      %p240 = scmp.eq.s32.totalorder %s29, 1
      %p241 = scmp.ne.s32.totalorder %s236, %s238
      %p242 = scmp.eq.s32.totalorder %s29, 0
      %p243 = por %p241, %p242
      %p244 = scmp.ne.s32.totalorder %s236, %s238
      %p245 = scmp.eq.s32.totalorder %s34, 1
      %p246 = por %p244, %p245
      %p247 = scmp.ne.s32.totalorder %s238, %s239
      %p248 = scmp.eq.s32.totalorder %s34, 0
      %p249 = por %p247, %p248
      %p250 = scmp.ne.s32.totalorder %s238, %s239
      %p251 = scmp.eq.s32.totalorder %s35, 1
      %p252 = por %p250, %p251
      %p254 = scmp.ne.s32.totalorder %s239, %s253
      %p255 = scmp.eq.s32.totalorder %s35, 0
      %p256 = por %p254, %p255
      %s258 = sadd.s32 %s257, 1
      %p261 = scmp.eq.s32.totalorder %s29, 1
      %p262 = scmp.ne.s32.totalorder %s257, %s259
      %p263 = scmp.eq.s32.totalorder %s29, 0
      %p264 = por %p262, %p263
      %p265 = scmp.ne.s32.totalorder %s257, %s259
      %p266 = scmp.eq.s32.totalorder %s34, 1
      %p267 = por %p265, %p266
      %p268 = scmp.ne.s32.totalorder %s259, %s260
      %p269 = scmp.eq.s32.totalorder %s34, 0
      %p270 = por %p268, %p269
      %p271 = scmp.ne.s32.totalorder %s259, %s260
      %p272 = scmp.eq.s32.totalorder %s35, 1
      %p273 = por %p271, %p272
      %p275 = scmp.ne.s32.totalorder %s260, %s274
      %p276 = scmp.eq.s32.totalorder %s35, 0
      %p277 = por %p275, %p276
      %s279 = sadd.s32 %s278, 1
      %p282 = scmp.eq.s32.totalorder %s29, 1
      %p283 = scmp.ne.s32.totalorder %s278, %s280
      %p284 = scmp.eq.s32.totalorder %s29, 0
      %p285 = por %p283, %p284
      %p286 = scmp.ne.s32.totalorder %s278, %s280
      %p287 = scmp.eq.s32.totalorder %s34, 1
      %p288 = por %p286, %p287
      %p289 = scmp.ne.s32.totalorder %s280, %s281
      %p290 = scmp.eq.s32.totalorder %s34, 0
      %p291 = por %p289, %p290
      %p292 = scmp.ne.s32.totalorder %s280, %s281
      %p293 = scmp.eq.s32.totalorder %s35, 1
      %p294 = por %p292, %p293
      %p296 = scmp.ne.s32.totalorder %s281, %s295
      %p297 = scmp.eq.s32.totalorder %s35, 0
      %p298 = por %p296, %p297
      %s300 = sadd.s32 %s299, 1
      %p303 = scmp.eq.s32.totalorder %s29, 1
      %p304 = scmp.ne.s32.totalorder %s299, %s301
      %p305 = scmp.eq.s32.totalorder %s29, 0
      %p306 = por %p304, %p305
      %p307 = scmp.ne.s32.totalorder %s299, %s301
      %p308 = scmp.eq.s32.totalorder %s34, 1
      %p309 = por %p307, %p308
      %p310 = scmp.ne.s32.totalorder %s301, %s302
      %p311 = scmp.eq.s32.totalorder %s34, 0
      %p312 = por %p310, %p311
      %p313 = scmp.ne.s32.totalorder %s301, %s302
      %p314 = scmp.eq.s32.totalorder %s35, 1
      %p315 = por %p313, %p314
      %p317 = scmp.ne.s32.totalorder %s302, %s316
      %p318 = scmp.eq.s32.totalorder %s35, 0
      %p319 = por %p317, %p318
      %s321 = sadd.s32 %s320, 1
      %p324 = scmp.eq.s32.totalorder %s29, 1
      %p325 = scmp.ne.s32.totalorder %s320, %s322
      %p326 = scmp.eq.s32.totalorder %s29, 0
      %p327 = por %p325, %p326
      %p328 = scmp.ne.s32.totalorder %s320, %s322
      %p329 = scmp.eq.s32.totalorder %s34, 1
      %p330 = por %p328, %p329
      %p331 = scmp.ne.s32.totalorder %s322, %s323
      %p332 = scmp.eq.s32.totalorder %s34, 0
      %p333 = por %p331, %p332
      %p334 = scmp.ne.s32.totalorder %s322, %s323
      %p335 = scmp.eq.s32.totalorder %s35, 1
      %p336 = por %p334, %p335
      %p338 = scmp.ne.s32.totalorder %s323, %s337
      %p339 = scmp.eq.s32.totalorder %s35, 0
      %p340 = por %p338, %p339
      %s342 = sadd.s32 %s341, 1
      %p345 = scmp.eq.s32.totalorder %s29, 1
      %p346 = scmp.ne.s32.totalorder %s341, %s343
      %p347 = scmp.eq.s32.totalorder %s29, 0
      %p348 = por %p346, %p347
      %p349 = scmp.ne.s32.totalorder %s341, %s343
      %p350 = scmp.eq.s32.totalorder %s34, 1
      %p351 = por %p349, %p350
      %p352 = scmp.ne.s32.totalorder %s343, %s344
      %p353 = scmp.eq.s32.totalorder %s34, 0
      %p354 = por %p352, %p353
      %p355 = scmp.ne.s32.totalorder %s343, %s344
      %p356 = scmp.eq.s32.totalorder %s35, 1
      %p357 = por %p355, %p356
      %p359 = scmp.ne.s32.totalorder %s344, %s358
      %p360 = scmp.eq.s32.totalorder %s35, 0
      %p361 = por %p359, %p360
      %s362 = ssub.s32 %s29, %s36
      %p363 = scmp.eq.s32.totalorder %s362, 0
      %s365 = sadd.s32 %s364, 1
      %s366 = scalar_select %p363, %s364, %s365
      %p369 = pneg %p363
      %p370 = scmp.eq.s32.totalorder %s29, 1
      %p371 = por %p369, %p370
      %p372 = scmp.ne.s32.totalorder %s364, %s367
      %p373 = scmp.eq.s32.totalorder %s29, 0
      %p374 = por %p372, %p373
      %p375 = scmp.ne.s32.totalorder %s364, %s367
      %p376 = scmp.eq.s32.totalorder %s34, 1
      %p377 = por %p375, %p376
      %p378 = scmp.ne.s32.totalorder %s367, %s368
      %p379 = scmp.eq.s32.totalorder %s34, 0
      %p380 = por %p378, %p379
      %p381 = scmp.ne.s32.totalorder %s367, %s368
      %p382 = scmp.eq.s32.totalorder %s35, 1
      %p383 = por %p381, %p382
      %p385 = scmp.ne.s32.totalorder %s368, %s384
      %p386 = scmp.eq.s32.totalorder %s35, 0
      %p387 = por %p385, %p386
      %p388 = scmp.le.s32.totalorder 1, %s29
      %p389 = scmp.lt.s32.totalorder %s29, 3
      %p390 = pnand %p388, %p389
      %p391 = pneg %p390
      // Predicated region
      $region9: #{tpu_custom_call.1} parent=5 // pred_check
        _
      $region10: #{tpu_custom_call.1} parent=5 // pred_check_branch
        %393 = sbr.rel (%p390) target = $region12
      $region11: #{tpu_custom_call.1} parent=5 // pred_region
        %s394 = ssub.s32 %s29, 1
        // Predicated region
        $region13: #{tpu_custom_call.1} parent=11 // pred_check
          %p395 = pneg %p76
        $region14: #{tpu_custom_call.1} parent=11 // pred_check_branch
          %397 = sbr.rel (%p395) target = $region16
        $region15: #{tpu_custom_call.1} parent=11 // pred_region
          %399 = vsyncadd [#allocation6], 0
          %s401 = sshll.u32 %s1, 4
          %s402 = int_to_ptr.hbm [resolvable:$true] %s401
          %s403 = sshll.u32 [#allocation5], 4
          %s404 = int_to_ptr.vmem [resolvable:$true] %s403
          %406 = dma.hbm_to_vmem [thread:$0]  %s402, 128, %s404, [#allocation6]
        $region16: #{tpu_custom_call.1} parent=11 // pred_fallthru
          _
        // Predicated region
        $region17: #{tpu_custom_call.1} parent=11 // pred_check
          %p407 = pneg %p123
        $region18: #{tpu_custom_call.1} parent=11 // pred_check_branch
          %409 = sbr.rel (%p407) target = $region20
        $region19: #{tpu_custom_call.1} parent=11 // pred_region
          _
        $region20: #{tpu_custom_call.1} parent=11 // pred_fallthru
          _
        // Predicated region
        $region21: #{tpu_custom_call.1} parent=11 // pred_check
          %p410 = pneg %p144
        $region22: #{tpu_custom_call.1} parent=11 // pred_check_branch
          %412 = sbr.rel (%p410) target = $region24
        $region23: #{tpu_custom_call.1} parent=11 // pred_region
          _
        $region24: #{tpu_custom_call.1} parent=11 // pred_fallthru
          _
        // Predicated region
        $region25: #{tpu_custom_call.1} parent=11 // pred_check
          %p413 = pneg %p165
        $region26: #{tpu_custom_call.1} parent=11 // pred_check_branch
          %415 = sbr.rel (%p413) target = $region28
        $region27: #{tpu_custom_call.1} parent=11 // pred_region
          _
        $region28: #{tpu_custom_call.1} parent=11 // pred_fallthru
          _
        // Predicated region
        $region29: #{tpu_custom_call.1} parent=11 // pred_check
          %p416 = pneg %p186
        $region30: #{tpu_custom_call.1} parent=11 // pred_check_branch
          %418 = sbr.rel (%p416) target = $region32
        $region31: #{tpu_custom_call.1} parent=11 // pred_region
          _
        $region32: #{tpu_custom_call.1} parent=11 // pred_fallthru
          _
        // Predicated region
        $region33: #{tpu_custom_call.1} parent=11 // pred_check
          %p419 = pneg %p207
        $region34: #{tpu_custom_call.1} parent=11 // pred_check_branch
          %421 = sbr.rel (%p419) target = $region36
        $region35: #{tpu_custom_call.1} parent=11 // pred_region
          _
        $region36: #{tpu_custom_call.1} parent=11 // pred_fallthru
          _
        // Predicated region
        $region37: #{tpu_custom_call.1} parent=11 // pred_check
          %p422 = pneg %p228
        $region38: #{tpu_custom_call.1} parent=11 // pred_check_branch
          %424 = sbr.rel (%p422) target = $region40
        $region39: #{tpu_custom_call.1} parent=11 // pred_region
          %426 = vsyncadd [#allocation6], 0
          %s427 = sshll.u32 %s8, 4
          %s428 = int_to_ptr.hbm [resolvable:$true] %s427
          %s429 = sshll.u32 [#allocation8], 4
          %s430 = int_to_ptr.vmem [resolvable:$true] %s429
          %435 = dma.hbm_to_vmem [thread:$0]  %s428, 32, %s430, [#allocation6], 16, 16, 1
        $region40: #{tpu_custom_call.1} parent=11 // pred_fallthru
          _
        // Predicated region
        $region41: #{tpu_custom_call.1} parent=11 // pred_check
          %p436 = pneg %p249
        $region42: #{tpu_custom_call.1} parent=11 // pred_check_branch
          %438 = sbr.rel (%p436) target = $region44
        $region43: #{tpu_custom_call.1} parent=11 // pred_region
          _
        $region44: #{tpu_custom_call.1} parent=11 // pred_fallthru
          _
        // Predicated region
        $region45: #{tpu_custom_call.1} parent=11 // pred_check
          %p439 = pneg %p270
        $region46: #{tpu_custom_call.1} parent=11 // pred_check_branch
          %441 = sbr.rel (%p439) target = $region48
        $region47: #{tpu_custom_call.1} parent=11 // pred_region
          _
        $region48: #{tpu_custom_call.1} parent=11 // pred_fallthru
          _
        // Predicated region
        $region49: #{tpu_custom_call.1} parent=11 // pred_check
          %p442 = pneg %p291
        $region50: #{tpu_custom_call.1} parent=11 // pred_check_branch
          %444 = sbr.rel (%p442) target = $region52
        $region51: #{tpu_custom_call.1} parent=11 // pred_region
          _
        $region52: #{tpu_custom_call.1} parent=11 // pred_fallthru
          _
        // Predicated region
        $region53: #{tpu_custom_call.1} parent=11 // pred_check
          %p445 = pneg %p312
        $region54: #{tpu_custom_call.1} parent=11 // pred_check_branch
          %447 = sbr.rel (%p445) target = $region56
        $region55: #{tpu_custom_call.1} parent=11 // pred_region
          _
        $region56: #{tpu_custom_call.1} parent=11 // pred_fallthru
          _
        // Predicated region
        $region57: #{tpu_custom_call.1} parent=11 // pred_check
          %p448 = pneg %p333
        $region58: #{tpu_custom_call.1} parent=11 // pred_check_branch
          %450 = sbr.rel (%p448) target = $region60
        $region59: #{tpu_custom_call.1} parent=11 // pred_region
          %452 = vsyncadd [#allocation10], 0
          %s453 = sshll.u32 %s13, 4
          %s454 = int_to_ptr.hbm [resolvable:$true] %s453
          %s455 = sshll.u32 [#allocation9], 4
          %s456 = int_to_ptr.vmem [resolvable:$true] %s455
          %461 = dma.hbm_to_vmem [thread:$0]  %s454, 32, %s456, [#allocation10], 16, 16, 1
        $region60: #{tpu_custom_call.1} parent=11 // pred_fallthru
          _
        // Predicated region
        $region61: #{tpu_custom_call.1} parent=11 // pred_check
          %p462 = pneg %p354
        $region62: #{tpu_custom_call.1} parent=11 // pred_check_branch
          %464 = sbr.rel (%p462) target = $region64
        $region63: #{tpu_custom_call.1} parent=11 // pred_region
          %466 = vsyncadd [#allocation10], 0
          %s467 = sshll.u32 %s14, 4
          %s468 = int_to_ptr.hbm [resolvable:$true] %s467
          %s469 = sshll.u32 [#allocation11], 4
          %s470 = int_to_ptr.vmem [resolvable:$true] %s469
          %475 = dma.hbm_to_vmem [thread:$0]  %s468, 32, %s470, [#allocation10], 16, 16, 1
        $region64: #{tpu_custom_call.1} parent=11 // pred_fallthru
          _
      $region12: #{tpu_custom_call.1} parent=5 // pred_fallthru
        _
      %p476 = scmp.lt.s32.totalorder %s29, 2
      // Predicated region
      $region65: #{tpu_custom_call.1} parent=5 // pred_check
        %p477 = pneg %p476
      $region66: #{tpu_custom_call.1} parent=5 // pred_check_branch
        %479 = sbr.rel (%p477) target = $region68
      $region67: #{tpu_custom_call.1} parent=5 // pred_region
        // Predicated region
        $region69: #{tpu_custom_call.1} parent=67 // pred_check
          %p480 = pneg %p49
        $region70: #{tpu_custom_call.1} parent=67 // pred_check_branch
          %482 = sbr.rel (%p480) target = $region72
        $region71: #{tpu_custom_call.1} parent=67 // pred_region
          %s483 = sand.u32 %s29, 1
          %s484 = scalar_lea.sflag [#allocation3], %s483
          %s485 = sand.u32 %s39, 1
          %s486 = smul.addr %s485, 16
          %s487 = scalar_lea.vmem [#allocation2], %s486
          %s488 = smul.u32 2, %s29
          %490 = vsyncadd %s484, 0
          %s491 = smul.addr %s488, 8
          %s492 = scalar_lea.hbm %s0, %s491
          %s493 = sshll.u32 %s492, 4
          %s494 = int_to_ptr.hbm [resolvable:$true] %s493
          %s495 = sshll.u32 %s487, 4
          %s496 = int_to_ptr.vmem [resolvable:$true] %s495
          %501 = dma.hbm_to_vmem [thread:$0]  %s494, 256, %s496, %s484, 128, 128, 8
        $region72: #{tpu_custom_call.1} parent=67 // pred_fallthru
          _
        // Predicated region
        $region73: #{tpu_custom_call.1} parent=67 // pred_check
          %p502 = pneg %p96
        $region74: #{tpu_custom_call.1} parent=67 // pred_check_branch
          %504 = sbr.rel (%p502) target = $region76
        $region75: #{tpu_custom_call.1} parent=67 // pred_region
          %s505 = sand.u32 %s29, 1
          %s506 = scalar_lea.sflag [#allocation3], %s505
          %s507 = sand.u32 %s86, 1
          %s508 = smul.addr %s507, 2
          %s509 = scalar_lea.vmem [#allocation7], %s508
          %s510 = smul.u32 2, %s29
          %512 = vsyncadd %s506, 0
          %s513 = scalar_lea.hbm %s2, %s510
          %s514 = sshll.u32 %s513, 4
          %s515 = int_to_ptr.hbm [resolvable:$true] %s514
          %s516 = sshll.u32 %s509, 4
          %s517 = int_to_ptr.vmem [resolvable:$true] %s516
          %522 = dma.hbm_to_vmem [thread:$0]  %s515, 32, %s517, %s506, 16, 16, 1
        $region76: #{tpu_custom_call.1} parent=67 // pred_fallthru
          _
      $region68: #{tpu_custom_call.1} parent=5 // pred_fallthru
        _
      %p523 = scmp.le.s32.totalorder 1, %s29
      %p524 = scmp.lt.s32.totalorder %s29, 3
      %p525 = pnand %p523, %p524
      %p526 = pneg %p525
      // Predicated region
      $region77: #{tpu_custom_call.1} parent=5 // pred_check
        _
      $region78: #{tpu_custom_call.1} parent=5 // pred_check_branch
        %528 = sbr.rel (%p525) target = $region80
      $region79: #{tpu_custom_call.1} parent=5 // pred_region
        %s529 = ssub.s32 %s29, 1
        %s530 = sand.u32 %s34, 1
        %s531 = scalar_lea.sflag [#allocation3], %s530
        %s532 = sand.u32 %s42, 1
        %s533 = smul.addr %s532, 16
        %s534 = scalar_lea.vmem [#allocation2], %s533
        // Predicated region
        $region81: #{tpu_custom_call.1} parent=79 // pred_check
          %p535 = pneg %p55
        $region82: #{tpu_custom_call.1} parent=79 // pred_check_branch
          %537 = sbr.rel (%p535) target = $region84
        $region83: #{tpu_custom_call.1} parent=79 // pred_region
          %539 = dma.done %s531, 256
        $region84: #{tpu_custom_call.1} parent=79 // pred_fallthru
          _
        // Predicated region
        $region85: #{tpu_custom_call.1} parent=79 // pred_check
          %p540 = pneg %p76
        $region86: #{tpu_custom_call.1} parent=79 // pred_check_branch
          %542 = sbr.rel (%p540) target = $region88
        $region87: #{tpu_custom_call.1} parent=79 // pred_region
          %544 = dma.done [#allocation6], 128
        $region88: #{tpu_custom_call.1} parent=79 // pred_fallthru
          _
        %s545 = sand.u32 %s34, 1
        %s546 = scalar_lea.sflag [#allocation3], %s545
        %s547 = sand.u32 %s89, 1
        %s548 = smul.addr %s547, 2
        %s549 = scalar_lea.vmem [#allocation7], %s548
        // Predicated region
        $region89: #{tpu_custom_call.1} parent=79 // pred_check
          %p550 = pneg %p102
        $region90: #{tpu_custom_call.1} parent=79 // pred_check_branch
          %552 = sbr.rel (%p550) target = $region92
        $region91: #{tpu_custom_call.1} parent=79 // pred_region
          %554 = dma.done %s546, 32
        $region92: #{tpu_custom_call.1} parent=79 // pred_fallthru
          _
        // Predicated region
        $region93: #{tpu_custom_call.1} parent=79 // pred_check
          %p555 = pneg %p228
        $region94: #{tpu_custom_call.1} parent=79 // pred_check_branch
          %557 = sbr.rel (%p555) target = $region96
        $region95: #{tpu_custom_call.1} parent=79 // pred_region
          %559 = dma.done [#allocation6], 32
        $region96: #{tpu_custom_call.1} parent=79 // pred_fallthru
          _
        // Predicated region
        $region97: #{tpu_custom_call.1} parent=79 // pred_check
          %p560 = pneg %p333
        $region98: #{tpu_custom_call.1} parent=79 // pred_check_branch
          %562 = sbr.rel (%p560) target = $region100
        $region99: #{tpu_custom_call.1} parent=79 // pred_region
          %564 = dma.done [#allocation10], 32
        $region100: #{tpu_custom_call.1} parent=79 // pred_fallthru
          _
        // Predicated region
        $region101: #{tpu_custom_call.1} parent=79 // pred_check
          %p565 = pneg %p354
        $region102: #{tpu_custom_call.1} parent=79 // pred_check_branch
          %567 = sbr.rel (%p565) target = $region104
        $region103: #{tpu_custom_call.1} parent=79 // pred_region
          %569 = dma.done [#allocation10], 32
        $region104: #{tpu_custom_call.1} parent=79 // pred_fallthru
          _
        %s570 = sand.u32 %s34, 1
        %s571 = scalar_lea.sflag [#allocation3], %s570
        %s572 = sand.u32 %s42, 1
        %s573 = smul.addr %s572, 16
        %s574 = scalar_lea.vmem [#allocation2], %s573
        %p575 = pneg %p55
        %p576 = pneg %p52
        %p577 = pneg %p76
        %p578 = pneg %p73
        %s579 = sand.u32 %s34, 1
        %s580 = scalar_lea.sflag [#allocation3], %s579
        %s581 = sand.u32 %s89, 1
        %s582 = smul.addr %s581, 2
        %s583 = scalar_lea.vmem [#allocation7], %s582
        %p584 = pneg %p102
        %p585 = pneg %p99
        %p586 = pneg %p123
        %p587 = pneg %p120
        %p588 = pneg %p144
        %p589 = pneg %p141
        %p590 = pneg %p165
        %p591 = pneg %p162
        %p592 = pneg %p186
        %p593 = pneg %p183
        %p594 = pneg %p207
        %p595 = pneg %p204
        %p596 = pneg %p228
        %p597 = pneg %p225
        %p598 = pneg %p249
        %p599 = pneg %p246
        %p600 = pneg %p270
        %p601 = pneg %p267
        %p602 = pneg %p291
        %p603 = pneg %p288
        %p604 = pneg %p312
        %p605 = pneg %p309
        %p606 = pneg %p333
        %p607 = pneg %p330
        %p608 = pneg %p354
        %p609 = pneg %p351
        %p610 = pneg %p380
        %p611 = pneg %p377
        %s612 = sand.u32 %s367, 1
        %s613 = scalar_lea.sflag [#allocation4], %s612
        %s614 = sand.u32 %s367, 1
        %s615 = smul.addr %s614, 16
        %s616 = scalar_lea.vmem [#allocation12], %s615
        %s617 = smul.u32 2, %s34
        %s618 = smul.u32 2, %s34
        %s619 = smul.u32 2, %s34
        %v620 = vld [vmem:[%s534] sm:$0xff]
        %v621 = vld [vmem:[%s534 + $0x8] sm:$0xff]
        %v622 = vld [vmem:[#allocation5] sm:$0xff]
        %v623 = vld [vmem:[%s549] sm:$0x1]
        %v624 = vld [vmem:[%s549 + $0x1] sm:$0x1]
        %v625 = vld [vmem:[%s3] sm:$0xff]
        %v626 = vld [vmem:[%s3 + $0x8] sm:$0xff]
        %v627 = vld [vmem:[%s3 + $0x10] sm:$0xff]
        %v628 = vld [vmem:[%s3 + $0x18] sm:$0xff]
        %v629 = vld [vmem:[%s4] sm:$0x1]
        %v631 = vperm.slane %v629, 0
        %vm633 = vcmask 261120
        %v635 = vsel %vm633, %v620, 0
        %v638 = vsel %vm633, %v621, 0
        %640 = vmatpush.msra.mxu0 0.0
        %641 = vmatpush.msra.mxu0 0.0
        %642 = vmatpush.msra.mxu0 0.0
        %643 = vmatpush.msra.mxu0 0.0
        %644 = vmatpush.msra.mxu0 0.0
        %645 = vmatpush.msra.mxu0 0.0
        %646 = vmatpush.msra.mxu0 0.0
        %647 = vmatpush.msra.mxu0 0.0
        %648 = vmatpush.msra.mxu0 0.0
        %649 = vmatpush.msra.mxu0 0.0
        %650 = vmatpush.msra.mxu0 0.0
        %651 = vmatpush.msra.mxu0 0.0
        %652 = vmatpush.msra.mxu0 %v628
        %653 = vmatpush.msra.mxu0 %v627
        %654 = vmatpush.msra.mxu0 %v626
        %655 = vmatpush.msra.mxu0 %v625
        %656 = vmatmul.f32.gmra.mxu0 %v635
        %v657 = vpop.f32.mrf.mxu0
        %v658 = vadd.f32 %v631, %v657
        %659 = vmatmul.f32.gmra.mxu0 %v638
        %v660 = vpop.f32.mrf.mxu0
        %v661 = vadd.f32 %v631, %v660
        %662 = vdwg.mxu0
        %664 = vrot.lane.b32.xlu0 %v658, 120
        %v665 = vpop.permute.xlu0 %664
        %666 = vrot.lane.b32.xlu0 %v658, 112
        %v667 = vpop.permute.xlu0 %666
        %668 = vrot.lane.b32.xlu0 %v658, 104
        %v669 = vpop.permute.xlu0 %668
        %v671 = vperm.slane %v623, 0
        %v673 = vadd.f32 %v622, %v671
        %674 = vrot.lane.b32.xlu0 %v658, 96
        %v675 = vpop.permute.xlu0 %674
        %vm676 = vcmask 64512
        %v677 = vsel %vm676, %v658, 0
        %v679 = vsel %vm676, %v675, 0
        %681 = vmatpush.xpose.msra.mxu0 0.0
        %682 = vmatpush.xpose.msra.mxu0 0.0
        %683 = vmatpush.xpose.msra.mxu0 0.0
        %684 = vmatpush.xpose.msra.mxu0 0.0
        %685 = vmatpush.xpose.msra.mxu0 0.0
        %686 = vmatpush.xpose.msra.mxu0 0.0
        %687 = vmatpush.xpose.msra.mxu0 0.0
        %688 = vmatpush.xpose.msra.mxu0 0.0
        %689 = vmatpush.xpose.msra.mxu0 0.0
        %690 = vmatpush.xpose.msra.mxu0 0.0
        %691 = vmatpush.xpose.msra.mxu0 0.0
        %692 = vmatpush.xpose.msra.mxu0 0.0
        %693 = vmatpush.xpose.msra.mxu0 0.0
        %694 = vmatpush.xpose.msra.mxu0 0.0
        %695 = vmatpush.xpose.msra.mxu0 0.0
        %696 = vmatpush.xpose.msra.mxu0 %v679
        %697 = vmatmul.f32.gmra.mxu0 %v677
        %v698 = vpop.f32.mrf.mxu0
        %v699 = vadd.f32 %v673, %v698
        %700 = vdwg.mxu0
        %701 = vrot.lane.b32.xlu0 %v665, 96
        %v702 = vpop.permute.xlu0 %701
        %v703 = vsel %vm676, %v665, 0
        %v705 = vsel %vm676, %v702, 0
        %707 = vmatpush.xpose.msra.mxu0 0.0
        %708 = vmatpush.xpose.msra.mxu0 0.0
        %709 = vmatpush.xpose.msra.mxu0 0.0
        %710 = vmatpush.xpose.msra.mxu0 0.0
        %711 = vmatpush.xpose.msra.mxu0 0.0
        %712 = vmatpush.xpose.msra.mxu0 0.0
        %713 = vmatpush.xpose.msra.mxu0 0.0
        %714 = vmatpush.xpose.msra.mxu0 0.0
        %715 = vmatpush.xpose.msra.mxu0 0.0
        %716 = vmatpush.xpose.msra.mxu0 0.0
        %717 = vmatpush.xpose.msra.mxu0 0.0
        %718 = vmatpush.xpose.msra.mxu0 0.0
        %719 = vmatpush.xpose.msra.mxu0 0.0
        %720 = vmatpush.xpose.msra.mxu0 0.0
        %721 = vmatpush.xpose.msra.mxu0 0.0
        %722 = vmatpush.xpose.msra.mxu0 %v705
        %723 = vmatmul.f32.gmra.mxu0 %v703
        %v724 = vpop.f32.mrf.mxu0
        %v725 = vadd.f32 %v673, %v724
        %726 = vdwg.mxu0
        %727 = vrot.lane.b32.xlu0 %v667, 96
        %v728 = vpop.permute.xlu0 %727
        %v729 = vsel %vm676, %v667, 0
        %v731 = vsel %vm676, %v728, 0
        %733 = vmatpush.xpose.msra.mxu0 0.0
        %734 = vmatpush.xpose.msra.mxu0 0.0
        %735 = vmatpush.xpose.msra.mxu0 0.0
        %736 = vmatpush.xpose.msra.mxu0 0.0
        %737 = vmatpush.xpose.msra.mxu0 0.0
        %738 = vmatpush.xpose.msra.mxu0 0.0
        %739 = vmatpush.xpose.msra.mxu0 0.0
        %740 = vmatpush.xpose.msra.mxu0 0.0
        %741 = vmatpush.xpose.msra.mxu0 0.0
        %742 = vmatpush.xpose.msra.mxu0 0.0
        %743 = vmatpush.xpose.msra.mxu0 0.0
        %744 = vmatpush.xpose.msra.mxu0 0.0
        %745 = vmatpush.xpose.msra.mxu0 0.0
        %746 = vmatpush.xpose.msra.mxu0 0.0
        %747 = vmatpush.xpose.msra.mxu0 0.0
        %748 = vmatpush.xpose.msra.mxu0 %v731
        %749 = vmatmul.f32.gmra.mxu0 %v729
        %v750 = vpop.f32.mrf.mxu0
        %v751 = vadd.f32 %v673, %v750
        %752 = vdwg.mxu0
        %753 = vrot.lane.b32.xlu0 %v669, 96
        %v754 = vpop.permute.xlu0 %753
        %v755 = vsel %vm676, %v669, 0
        %v757 = vsel %vm676, %v754, 0
        %759 = vmatpush.xpose.msra.mxu0 0.0
        %760 = vmatpush.xpose.msra.mxu0 0.0
        %761 = vmatpush.xpose.msra.mxu0 0.0
        %762 = vmatpush.xpose.msra.mxu0 0.0
        %763 = vmatpush.xpose.msra.mxu0 0.0
        %764 = vmatpush.xpose.msra.mxu0 0.0
        %765 = vmatpush.xpose.msra.mxu0 0.0
        %766 = vmatpush.xpose.msra.mxu0 0.0
        %767 = vmatpush.xpose.msra.mxu0 0.0
        %768 = vmatpush.xpose.msra.mxu0 0.0
        %769 = vmatpush.xpose.msra.mxu0 0.0
        %770 = vmatpush.xpose.msra.mxu0 0.0
        %771 = vmatpush.xpose.msra.mxu0 0.0
        %772 = vmatpush.xpose.msra.mxu0 0.0
        %773 = vmatpush.xpose.msra.mxu0 0.0
        %774 = vmatpush.xpose.msra.mxu0 %v757
        %775 = vmatmul.f32.gmra.mxu0 %v755
        %v776 = vpop.f32.mrf.mxu0
        %v777 = vadd.f32 %v673, %v776
        %778 = vdwg.mxu0
        %v779 = vsel %vm676, %v699, -inf
        %780 = vmax.xlane.f32.xlu0 %v779
        %v781 = vpop.xlane.xlu0 %780
        %v782 = vsel %vm676, %v725, -inf
        %783 = vmax.xlane.f32.xlu0 %v782
        %v784 = vpop.xlane.xlu0 %783
        %v785 = vsel %vm676, %v751, -inf
        %786 = vmax.xlane.f32.xlu0 %v785
        %v787 = vpop.xlane.xlu0 %786
        %v788 = vsel %vm676, %v777, -inf
        %789 = vmax.xlane.f32.xlu0 %v788
        %v790 = vpop.xlane.xlu0 %789
        %v791 = vsub.f32 %v699, %v781
        %v792 = vsub.f32 %v725, %v784
        %v793 = vsub.f32 %v751, %v787
        %v794 = vsub.f32 %v777, %v790
        %v795 = vmul.f32 %v791, 1.442695
        %v796 = vpow.pop %v795
        %v797 = vmul.f32 %v792, 1.442695
        %v798 = vpow.pop %v797
        %v799 = vmul.f32 %v793, 1.442695
        %v800 = vpow.pop %v799
        %v801 = vmul.f32 %v794, 1.442695
        %v802 = vpow.pop %v801
        %v803 = vsel %vm676, %v796, 0.0
        %804 = vadd.xlane.f32.xlu0 %v803
        %v805 = vpop.xlane.xlu0 %804
        %v806 = vsel %vm676, %v798, 0.0
        %807 = vadd.xlane.f32.xlu0 %v806
        %v808 = vpop.xlane.xlu0 %807
        %v809 = vsel %vm676, %v800, 0.0
        %810 = vadd.xlane.f32.xlu0 %v809
        %v811 = vpop.xlane.xlu0 %810
        %v812 = vsel %vm676, %v802, 0.0
        %813 = vadd.xlane.f32.xlu0 %v812
        %v814 = vpop.xlane.xlu0 %813
        %815 = vrot.lane.b32.xlu0 %v658, 64
        %v816 = vpop.permute.xlu0 %815
        %v819 = vsel %vm676, %v796, 0
        %821 = vmatpush.msra.mxu0 0.0
        %822 = vmatpush.msra.mxu0 0.0
        %823 = vmatpush.msra.mxu0 0.0
        %824 = vmatpush.msra.mxu0 0.0
        %825 = vmatpush.msra.mxu0 0.0
        %826 = vmatpush.msra.mxu0 0.0
        %827 = vmatpush.msra.mxu0 0.0
        %828 = vmatpush.msra.mxu0 0.0
        %829 = vmatpush.msra.mxu0 0.0
        %830 = vmatpush.msra.mxu0 0.0
        %831 = vmatpush.msra.mxu0 0.0
        %832 = vmatpush.msra.mxu0 0.0
        %833 = vmatpush.msra.mxu0 0.0
        %834 = vmatpush.msra.mxu0 0.0
        %835 = vmatpush.msra.mxu0 0.0
        %836 = vmatpush.msra.mxu0 %v816
        %837 = vmatmul.f32.gmra.mxu0 %v819
        %v838 = vpop.f32.mrf.mxu0
        %v839 = vadd.f32 0.0, %v838
        %840 = vdwg.mxu0
        %841 = vrot.lane.b32.xlu0 %v665, 64
        %v842 = vpop.permute.xlu0 %841
        %v845 = vsel %vm676, %v798, 0
        %847 = vmatpush.msra.mxu0 0.0
        %848 = vmatpush.msra.mxu0 0.0
        %849 = vmatpush.msra.mxu0 0.0
        %850 = vmatpush.msra.mxu0 0.0
        %851 = vmatpush.msra.mxu0 0.0
        %852 = vmatpush.msra.mxu0 0.0
        %853 = vmatpush.msra.mxu0 0.0
        %854 = vmatpush.msra.mxu0 0.0
        %855 = vmatpush.msra.mxu0 0.0
        %856 = vmatpush.msra.mxu0 0.0
        %857 = vmatpush.msra.mxu0 0.0
        %858 = vmatpush.msra.mxu0 0.0
        %859 = vmatpush.msra.mxu0 0.0
        %860 = vmatpush.msra.mxu0 0.0
        %861 = vmatpush.msra.mxu0 0.0
        %862 = vmatpush.msra.mxu0 %v842
        %863 = vmatmul.f32.gmra.mxu0 %v845
        %v864 = vpop.f32.mrf.mxu0
        %v865 = vadd.f32 0.0, %v864
        %866 = vdwg.mxu0
        %867 = vrot.lane.b32.xlu0 %v667, 64
        %v868 = vpop.permute.xlu0 %867
        %v871 = vsel %vm676, %v800, 0
        %873 = vmatpush.msra.mxu0 0.0
        %874 = vmatpush.msra.mxu0 0.0
        %875 = vmatpush.msra.mxu0 0.0
        %876 = vmatpush.msra.mxu0 0.0
        %877 = vmatpush.msra.mxu0 0.0
        %878 = vmatpush.msra.mxu0 0.0
        %879 = vmatpush.msra.mxu0 0.0
        %880 = vmatpush.msra.mxu0 0.0
        %881 = vmatpush.msra.mxu0 0.0
        %882 = vmatpush.msra.mxu0 0.0
        %883 = vmatpush.msra.mxu0 0.0
        %884 = vmatpush.msra.mxu0 0.0
        %885 = vmatpush.msra.mxu0 0.0
        %886 = vmatpush.msra.mxu0 0.0
        %887 = vmatpush.msra.mxu0 0.0
        %888 = vmatpush.msra.mxu0 %v868
        %889 = vmatmul.f32.gmra.mxu0 %v871
        %v890 = vpop.f32.mrf.mxu0
        %v891 = vadd.f32 0.0, %v890
        %892 = vdwg.mxu0
        %893 = vrot.lane.b32.xlu0 %v669, 64
        %v894 = vpop.permute.xlu0 %893
        %v897 = vsel %vm676, %v802, 0
        %899 = vmatpush.msra.mxu0 0.0
        %900 = vmatpush.msra.mxu0 0.0
        %901 = vmatpush.msra.mxu0 0.0
        %902 = vmatpush.msra.mxu0 0.0
        %903 = vmatpush.msra.mxu0 0.0
        %904 = vmatpush.msra.mxu0 0.0
        %905 = vmatpush.msra.mxu0 0.0
        %906 = vmatpush.msra.mxu0 0.0
        %907 = vmatpush.msra.mxu0 0.0
        %908 = vmatpush.msra.mxu0 0.0
        %909 = vmatpush.msra.mxu0 0.0
        %910 = vmatpush.msra.mxu0 0.0
        %911 = vmatpush.msra.mxu0 0.0
        %912 = vmatpush.msra.mxu0 0.0
        %913 = vmatpush.msra.mxu0 0.0
        %914 = vmatpush.msra.mxu0 %v894
        %915 = vmatmul.f32.gmra.mxu0 %v897
        %v916 = vpop.f32.mrf.mxu0
        %v917 = vadd.f32 0.0, %v916
        %918 = vdwg.mxu0
        %v919 = vrcp.pop %v805
        %v920 = vrcp.pop %v808
        %v921 = vrcp.pop %v811
        %v922 = vrcp.pop %v814
        %v923 = vmul.f32 %v839, %v919
        %v924 = vmul.f32 %v865, %v920
        %v925 = vmul.f32 %v891, %v921
        %v926 = vmul.f32 %v917, %v922
        %928 = vrot.lane.b32.xlu0 %v924, 8
        %v929 = vpop.permute.xlu0 %928
        %932 = vrot.lane.b32.xlu0 %v925, 16
        %v933 = vpop.permute.xlu0 %932
        %936 = vrot.lane.b32.xlu0 %v926, 24
        %v937 = vpop.permute.xlu0 %936
        %v939 = vsel %vm676, %v923, %v929
        %vm940 = vcmask 130048
        %v941 = vsel %vm940, %v939, %v933
        %vm942 = vcmask 195584
        %v943 = vsel %vm942, %v941, %v937
        %945 = vrot.lane.b32.xlu0 %v661, 120
        %v946 = vpop.permute.xlu0 %945
        %947 = vrot.lane.b32.xlu0 %v661, 112
        %v948 = vpop.permute.xlu0 %947
        %949 = vrot.lane.b32.xlu0 %v661, 104
        %v950 = vpop.permute.xlu0 %949
        %v952 = vperm.slane %v624, 0
        %v954 = vadd.f32 %v622, %v952
        %955 = vrot.lane.b32.xlu0 %v661, 96
        %v956 = vpop.permute.xlu0 %955
        %v957 = vsel %vm676, %v661, 0
        %v959 = vsel %vm676, %v956, 0
        %961 = vmatpush.xpose.msra.mxu0 0.0
        %962 = vmatpush.xpose.msra.mxu0 0.0
        %963 = vmatpush.xpose.msra.mxu0 0.0
        %964 = vmatpush.xpose.msra.mxu0 0.0
        %965 = vmatpush.xpose.msra.mxu0 0.0
        %966 = vmatpush.xpose.msra.mxu0 0.0
        %967 = vmatpush.xpose.msra.mxu0 0.0
        %968 = vmatpush.xpose.msra.mxu0 0.0
        %969 = vmatpush.xpose.msra.mxu0 0.0
        %970 = vmatpush.xpose.msra.mxu0 0.0
        %971 = vmatpush.xpose.msra.mxu0 0.0
        %972 = vmatpush.xpose.msra.mxu0 0.0
        %973 = vmatpush.xpose.msra.mxu0 0.0
        %974 = vmatpush.xpose.msra.mxu0 0.0
        %975 = vmatpush.xpose.msra.mxu0 0.0
        %976 = vmatpush.xpose.msra.mxu0 %v959
        %977 = vmatmul.f32.gmra.mxu0 %v957
        %v978 = vpop.f32.mrf.mxu0
        %v979 = vadd.f32 %v954, %v978
        %980 = vdwg.mxu0
        %981 = vrot.lane.b32.xlu0 %v946, 96
        %v982 = vpop.permute.xlu0 %981
        %v983 = vsel %vm676, %v946, 0
        %v985 = vsel %vm676, %v982, 0
        %987 = vmatpush.xpose.msra.mxu0 0.0
        %988 = vmatpush.xpose.msra.mxu0 0.0
        %989 = vmatpush.xpose.msra.mxu0 0.0
        %990 = vmatpush.xpose.msra.mxu0 0.0
        %991 = vmatpush.xpose.msra.mxu0 0.0
        %992 = vmatpush.xpose.msra.mxu0 0.0
        %993 = vmatpush.xpose.msra.mxu0 0.0
        %994 = vmatpush.xpose.msra.mxu0 0.0
        %995 = vmatpush.xpose.msra.mxu0 0.0
        %996 = vmatpush.xpose.msra.mxu0 0.0
        %997 = vmatpush.xpose.msra.mxu0 0.0
        %998 = vmatpush.xpose.msra.mxu0 0.0
        %999 = vmatpush.xpose.msra.mxu0 0.0
        %1000 = vmatpush.xpose.msra.mxu0 0.0
        %1001 = vmatpush.xpose.msra.mxu0 0.0
        %1002 = vmatpush.xpose.msra.mxu0 %v985
        %1003 = vmatmul.f32.gmra.mxu0 %v983
        %v1004 = vpop.f32.mrf.mxu0
        %v1005 = vadd.f32 %v954, %v1004
        %1006 = vdwg.mxu0
        %1007 = vrot.lane.b32.xlu0 %v948, 96
        %v1008 = vpop.permute.xlu0 %1007
        %v1009 = vsel %vm676, %v948, 0
        %v1011 = vsel %vm676, %v1008, 0
        %1013 = vmatpush.xpose.msra.mxu0 0.0
        %1014 = vmatpush.xpose.msra.mxu0 0.0
        %1015 = vmatpush.xpose.msra.mxu0 0.0
        %1016 = vmatpush.xpose.msra.mxu0 0.0
        %1017 = vmatpush.xpose.msra.mxu0 0.0
        %1018 = vmatpush.xpose.msra.mxu0 0.0
        %1019 = vmatpush.xpose.msra.mxu0 0.0
        %1020 = vmatpush.xpose.msra.mxu0 0.0
        %1021 = vmatpush.xpose.msra.mxu0 0.0
        %1022 = vmatpush.xpose.msra.mxu0 0.0
        %1023 = vmatpush.xpose.msra.mxu0 0.0
        %1024 = vmatpush.xpose.msra.mxu0 0.0
        %1025 = vmatpush.xpose.msra.mxu0 0.0
        %1026 = vmatpush.xpose.msra.mxu0 0.0
        %1027 = vmatpush.xpose.msra.mxu0 0.0
        %1028 = vmatpush.xpose.msra.mxu0 %v1011
        %1029 = vmatmul.f32.gmra.mxu0 %v1009
        %v1030 = vpop.f32.mrf.mxu0
        %v1031 = vadd.f32 %v954, %v1030
        %1032 = vdwg.mxu0
        %1033 = vrot.lane.b32.xlu0 %v950, 96
        %v1034 = vpop.permute.xlu0 %1033
        %v1035 = vsel %vm676, %v950, 0
        %v1037 = vsel %vm676, %v1034, 0
        %1039 = vmatpush.xpose.msra.mxu0 0.0
        %1040 = vmatpush.xpose.msra.mxu0 0.0
        %1041 = vmatpush.xpose.msra.mxu0 0.0
        %1042 = vmatpush.xpose.msra.mxu0 0.0
        %1043 = vmatpush.xpose.msra.mxu0 0.0
        %1044 = vmatpush.xpose.msra.mxu0 0.0
        %1045 = vmatpush.xpose.msra.mxu0 0.0
        %1046 = vmatpush.xpose.msra.mxu0 0.0
        %1047 = vmatpush.xpose.msra.mxu0 0.0
        %1048 = vmatpush.xpose.msra.mxu0 0.0
        %1049 = vmatpush.xpose.msra.mxu0 0.0
        %1050 = vmatpush.xpose.msra.mxu0 0.0
        %1051 = vmatpush.xpose.msra.mxu0 0.0
        %1052 = vmatpush.xpose.msra.mxu0 0.0
        %1053 = vmatpush.xpose.msra.mxu0 0.0
        %1054 = vmatpush.xpose.msra.mxu0 %v1037
        %1055 = vmatmul.f32.gmra.mxu0 %v1035
        %v1056 = vpop.f32.mrf.mxu0
        %v1057 = vadd.f32 %v954, %v1056
        %1058 = vdwg.mxu0
        %v1059 = vsel %vm676, %v979, -inf
        %1060 = vmax.xlane.f32.xlu0 %v1059
        %v1061 = vpop.xlane.xlu0 %1060
        %v1062 = vsel %vm676, %v1005, -inf
        %1063 = vmax.xlane.f32.xlu0 %v1062
        %v1064 = vpop.xlane.xlu0 %1063
        %v1065 = vsel %vm676, %v1031, -inf
        %1066 = vmax.xlane.f32.xlu0 %v1065
        %v1067 = vpop.xlane.xlu0 %1066
        %v1068 = vsel %vm676, %v1057, -inf
        %1069 = vmax.xlane.f32.xlu0 %v1068
        %v1070 = vpop.xlane.xlu0 %1069
        %v1071 = vsub.f32 %v979, %v1061
        %v1072 = vsub.f32 %v1005, %v1064
        %v1073 = vsub.f32 %v1031, %v1067
        %v1074 = vsub.f32 %v1057, %v1070
        %v1075 = vmul.f32 %v1071, 1.442695
        %v1076 = vpow.pop %v1075
        %v1077 = vmul.f32 %v1072, 1.442695
        %v1078 = vpow.pop %v1077
        %v1079 = vmul.f32 %v1073, 1.442695
        %v1080 = vpow.pop %v1079
        %v1081 = vmul.f32 %v1074, 1.442695
        %v1082 = vpow.pop %v1081
        %v1083 = vsel %vm676, %v1076, 0.0
        %1084 = vadd.xlane.f32.xlu0 %v1083
        %v1085 = vpop.xlane.xlu0 %1084
        %v1086 = vsel %vm676, %v1078, 0.0
        %1087 = vadd.xlane.f32.xlu0 %v1086
        %v1088 = vpop.xlane.xlu0 %1087
        %v1089 = vsel %vm676, %v1080, 0.0
        %1090 = vadd.xlane.f32.xlu0 %v1089
        %v1091 = vpop.xlane.xlu0 %1090
        %v1092 = vsel %vm676, %v1082, 0.0
        %1093 = vadd.xlane.f32.xlu0 %v1092
        %v1094 = vpop.xlane.xlu0 %1093
        %1095 = vrot.lane.b32.xlu0 %v661, 64
        %v1096 = vpop.permute.xlu0 %1095
        %v1099 = vsel %vm676, %v1076, 0
        %1101 = vmatpush.msra.mxu0 0.0
        %1102 = vmatpush.msra.mxu0 0.0
        %1103 = vmatpush.msra.mxu0 0.0
        %1104 = vmatpush.msra.mxu0 0.0
        %1105 = vmatpush.msra.mxu0 0.0
        %1106 = vmatpush.msra.mxu0 0.0
        %1107 = vmatpush.msra.mxu0 0.0
        %1108 = vmatpush.msra.mxu0 0.0
        %1109 = vmatpush.msra.mxu0 0.0
        %1110 = vmatpush.msra.mxu0 0.0
        %1111 = vmatpush.msra.mxu0 0.0
        %1112 = vmatpush.msra.mxu0 0.0
        %1113 = vmatpush.msra.mxu0 0.0
        %1114 = vmatpush.msra.mxu0 0.0
        %1115 = vmatpush.msra.mxu0 0.0
        %1116 = vmatpush.msra.mxu0 %v1096
        %1117 = vmatmul.f32.gmra.mxu0 %v1099
        %v1118 = vpop.f32.mrf.mxu0
        %v1119 = vadd.f32 0.0, %v1118
        %1120 = vdwg.mxu0
        %1121 = vrot.lane.b32.xlu0 %v946, 64
        %v1122 = vpop.permute.xlu0 %1121
        %v1125 = vsel %vm676, %v1078, 0
        %1127 = vmatpush.msra.mxu0 0.0
        %1128 = vmatpush.msra.mxu0 0.0
        %1129 = vmatpush.msra.mxu0 0.0
        %1130 = vmatpush.msra.mxu0 0.0
        %1131 = vmatpush.msra.mxu0 0.0
        %1132 = vmatpush.msra.mxu0 0.0
        %1133 = vmatpush.msra.mxu0 0.0
        %1134 = vmatpush.msra.mxu0 0.0
        %1135 = vmatpush.msra.mxu0 0.0
        %1136 = vmatpush.msra.mxu0 0.0
        %1137 = vmatpush.msra.mxu0 0.0
        %1138 = vmatpush.msra.mxu0 0.0
        %1139 = vmatpush.msra.mxu0 0.0
        %1140 = vmatpush.msra.mxu0 0.0
        %1141 = vmatpush.msra.mxu0 0.0
        %1142 = vmatpush.msra.mxu0 %v1122
        %1143 = vmatmul.f32.gmra.mxu0 %v1125
        %v1144 = vpop.f32.mrf.mxu0
        %v1145 = vadd.f32 0.0, %v1144
        %1146 = vdwg.mxu0
        %1147 = vrot.lane.b32.xlu0 %v948, 64
        %v1148 = vpop.permute.xlu0 %1147
        %v1151 = vsel %vm676, %v1080, 0
        %1153 = vmatpush.msra.mxu0 0.0
        %1154 = vmatpush.msra.mxu0 0.0
        %1155 = vmatpush.msra.mxu0 0.0
        %1156 = vmatpush.msra.mxu0 0.0
        %1157 = vmatpush.msra.mxu0 0.0
        %1158 = vmatpush.msra.mxu0 0.0
        %1159 = vmatpush.msra.mxu0 0.0
        %1160 = vmatpush.msra.mxu0 0.0
        %1161 = vmatpush.msra.mxu0 0.0
        %1162 = vmatpush.msra.mxu0 0.0
        %1163 = vmatpush.msra.mxu0 0.0
        %1164 = vmatpush.msra.mxu0 0.0
        %1165 = vmatpush.msra.mxu0 0.0
        %1166 = vmatpush.msra.mxu0 0.0
        %1167 = vmatpush.msra.mxu0 0.0
        %1168 = vmatpush.msra.mxu0 %v1148
        %1169 = vmatmul.f32.gmra.mxu0 %v1151
        %v1170 = vpop.f32.mrf.mxu0
        %v1171 = vadd.f32 0.0, %v1170
        %1172 = vdwg.mxu0
        %1173 = vrot.lane.b32.xlu0 %v950, 64
        %v1174 = vpop.permute.xlu0 %1173
        %v1177 = vsel %vm676, %v1082, 0
        %1179 = vmatpush.msra.mxu0 0.0
        %1180 = vmatpush.msra.mxu0 0.0
        %1181 = vmatpush.msra.mxu0 0.0
        %1182 = vmatpush.msra.mxu0 0.0
        %1183 = vmatpush.msra.mxu0 0.0
        %1184 = vmatpush.msra.mxu0 0.0
        %1185 = vmatpush.msra.mxu0 0.0
        %1186 = vmatpush.msra.mxu0 0.0
        %1187 = vmatpush.msra.mxu0 0.0
        %1188 = vmatpush.msra.mxu0 0.0
        %1189 = vmatpush.msra.mxu0 0.0
        %1190 = vmatpush.msra.mxu0 0.0
        %1191 = vmatpush.msra.mxu0 0.0
        %1192 = vmatpush.msra.mxu0 0.0
        %1193 = vmatpush.msra.mxu0 0.0
        %1194 = vmatpush.msra.mxu0 %v1174
        %1195 = vmatmul.f32.gmra.mxu0 %v1177
        %v1196 = vpop.f32.mrf.mxu0
        %v1197 = vadd.f32 0.0, %v1196
        %1198 = vdwg.mxu0
        %v1199 = vrcp.pop %v1085
        %v1200 = vrcp.pop %v1088
        %v1201 = vrcp.pop %v1091
        %v1202 = vrcp.pop %v1094
        %v1203 = vmul.f32 %v1119, %v1199
        %v1204 = vmul.f32 %v1145, %v1200
        %v1205 = vmul.f32 %v1171, %v1201
        %v1206 = vmul.f32 %v1197, %v1202
        %1208 = vrot.lane.b32.xlu0 %v1204, 8
        %v1209 = vpop.permute.xlu0 %1208
        %1212 = vrot.lane.b32.xlu0 %v1205, 16
        %v1213 = vpop.permute.xlu0 %1212
        %1216 = vrot.lane.b32.xlu0 %v1206, 24
        %v1217 = vpop.permute.xlu0 %1216
        %v1219 = vsel %vm676, %v1203, %v1209
        %v1220 = vsel %vm940, %v1219, %v1213
        %v1221 = vsel %vm942, %v1220, %v1217
        %v1222 = vld [vmem:[%s5] sm:$0xff]
        %v1223 = vld [vmem:[%s5 + $0x8] sm:$0xff]
        %v1224 = vld [vmem:[%s5 + $0x10] sm:$0xff]
        %v1225 = vld [vmem:[%s5 + $0x18] sm:$0xff]
        %v1226 = vld [vmem:[%s6] sm:$0x1]
        %v1228 = vperm.slane %v1226, 0
        %v1231 = vsel %vm633, %v943, 0
        %v1234 = vsel %vm633, %v1221, 0
        %1236 = vmatpush.msra.mxu0 0.0
        %1237 = vmatpush.msra.mxu0 0.0
        %1238 = vmatpush.msra.mxu0 0.0
        %1239 = vmatpush.msra.mxu0 0.0
        %1240 = vmatpush.msra.mxu0 0.0
        %1241 = vmatpush.msra.mxu0 0.0
        %1242 = vmatpush.msra.mxu0 0.0
        %1243 = vmatpush.msra.mxu0 0.0
        %1244 = vmatpush.msra.mxu0 0.0
        %1245 = vmatpush.msra.mxu0 0.0
        %1246 = vmatpush.msra.mxu0 0.0
        %1247 = vmatpush.msra.mxu0 0.0
        %1248 = vmatpush.msra.mxu0 %v1225
        %1249 = vmatpush.msra.mxu0 %v1224
        %1250 = vmatpush.msra.mxu0 %v1223
        %1251 = vmatpush.msra.mxu0 %v1222
        %1252 = vmatmul.f32.gmra.mxu0 %v1231
        %v1253 = vpop.f32.mrf.mxu0
        %v1254 = vadd.f32 %v1228, %v1253
        %1255 = vmatmul.f32.gmra.mxu0 %v1234
        %v1256 = vpop.f32.mrf.mxu0
        %v1257 = vadd.f32 %v1228, %v1256
        %1258 = vdwg.mxu0
        %v1259 = vadd.f32 %v620, %v1254
        %v1260 = vadd.f32 %v621, %v1257
        %v1261 = vld [vmem:[%s11] sm:$0x1]
        %v1262 = vld [vmem:[%s12] sm:$0x1]
        %v1263 = vsel %vm633, %v1259, 0.0
        %1264 = vadd.xlane.f32.xlu0 %v1263
        %v1265 = vpop.xlane.xlu0 %1264
        %v1266 = vsel %vm633, %v1260, 0.0
        %1267 = vadd.xlane.f32.xlu0 %v1266
        %v1268 = vpop.xlane.xlu0 %1267
        %v1269 = vrcp.pop 32.0
        %v1270 = vmul.f32 32.0, %v1269
        %v1271 = vsub.f32 1.0, %v1270
        %v1272 = vmul.f32 %v1269, %v1271
        %v1273 = vadd.f32 %v1269, %v1272
        %vm1274 = vweird.f32 %v1269
        %v1275 = vsel %vm1274, %v1269, %v1273
        %v1276 = vmul.f32 %v1265, %v1275
        %v1277 = vmul.f32 %v1268, %v1275
        %v1278 = vsub.f32 %v1259, %v1276
        %v1279 = vsub.f32 %v1260, %v1277
        %v1280 = vmul.f32 %v1278, %v1278
        %v1281 = vmul.f32 %v1279, %v1279
        %v1282 = vsel %vm633, %v1280, 0.0
        %1283 = vadd.xlane.f32.xlu0 %v1282
        %v1284 = vpop.xlane.xlu0 %1283
        %v1285 = vsel %vm633, %v1281, 0.0
        %1286 = vadd.xlane.f32.xlu0 %v1285
        %v1287 = vpop.xlane.xlu0 %1286
        %v1288 = vmul.f32 %v1284, %v1275
        %v1289 = vmul.f32 %v1287, %v1275
        %v1290 = vadd.f32 %v1288, 1e-05
        %v1291 = vadd.f32 %v1289, 1e-05
        %v1292 = vrsqrt.pop %v1290
        %v1293 = vmul.f32 %v1292, %v1290
        %v1294 = vmul.f32 %v1293, %v1292
        %v1295 = vmul.f32 0.5, %v1294
        %v1296 = vsub.f32 1.5, %v1295
        %v1297 = vmul.f32 %v1292, %v1296
        %vm1298 = vweird.f32 %v1290
        %vm1299 = vweird.f32 %v1292
        %vm1300 = vmor %vm1298, %vm1299
        %v1301 = vsel %vm1300, %v1292, %v1297
        %v1302 = vrsqrt.pop %v1291
        %v1303 = vmul.f32 %v1302, %v1291
        %v1304 = vmul.f32 %v1303, %v1302
        %v1305 = vmul.f32 0.5, %v1304
        %v1306 = vsub.f32 1.5, %v1305
        %v1307 = vmul.f32 %v1302, %v1306
        %vm1308 = vweird.f32 %v1291
        %vm1309 = vweird.f32 %v1302
        %vm1310 = vmor %vm1308, %vm1309
        %v1311 = vsel %vm1310, %v1302, %v1307
        %v1312 = vmul.f32 %v1278, %v1301
        %v1313 = vmul.f32 %v1279, %v1311
        %v1315 = vperm.slane %v1261, 0
        %v1317 = vmul.f32 %v1312, %v1315
        %v1318 = vmul.f32 %v1313, %v1315
        %v1320 = vperm.slane %v1262, 0
        %v1322 = vadd.f32 %v1317, %v1320
        %v1323 = vadd.f32 %v1318, %v1320
        %v1324 = vld [vmem:[%s7] sm:$0xff]
        %v1325 = vld [vmem:[%s7 + $0x8] sm:$0xff]
        %v1326 = vld [vmem:[%s7 + $0x10] sm:$0xff]
        %v1327 = vld [vmem:[%s7 + $0x18] sm:$0xff]
        %v1328 = vld [vmem:[#allocation8] sm:$0x1]
        %v1330 = vperm.slane %v1328, 0
        %v1333 = vsel %vm633, %v1322, 0
        %v1336 = vsel %vm633, %v1323, 0
        %1338 = vmatpush.msra.mxu0 0.0
        %1339 = vmatpush.msra.mxu0 0.0
        %1340 = vmatpush.msra.mxu0 0.0
        %1341 = vmatpush.msra.mxu0 0.0
        %1342 = vmatpush.msra.mxu0 0.0
        %1343 = vmatpush.msra.mxu0 0.0
        %1344 = vmatpush.msra.mxu0 0.0
        %1345 = vmatpush.msra.mxu0 0.0
        %1346 = vmatpush.msra.mxu0 0.0
        %1347 = vmatpush.msra.mxu0 0.0
        %1348 = vmatpush.msra.mxu0 0.0
        %1349 = vmatpush.msra.mxu0 0.0
        %1350 = vmatpush.msra.mxu0 %v1327
        %1351 = vmatpush.msra.mxu0 %v1326
        %1352 = vmatpush.msra.mxu0 %v1325
        %1353 = vmatpush.msra.mxu0 %v1324
        %1354 = vmatmul.f32.gmra.mxu0 %v1333
        %v1355 = vpop.f32.mrf.mxu0
        %v1356 = vadd.f32 %v1330, %v1355
        %1357 = vmatmul.f32.gmra.mxu0 %v1336
        %v1358 = vpop.f32.mrf.mxu0
        %v1359 = vadd.f32 %v1330, %v1358
        %1360 = vdwg.mxu0
        %v1361 = vmax.f32 %v1356, 0.0
        %v1362 = vmax.f32 %v1359, 0.0
        %v1363 = vld [vmem:[%s9] sm:$0xff]
        %v1364 = vld [vmem:[%s9 + $0x8] sm:$0xff]
        %v1365 = vld [vmem:[%s9 + $0x10] sm:$0xff]
        %v1366 = vld [vmem:[%s9 + $0x18] sm:$0xff]
        %v1367 = vld [vmem:[%s9 + $0x20] sm:$0xff]
        %v1368 = vld [vmem:[%s9 + $0x28] sm:$0xff]
        %v1369 = vld [vmem:[%s9 + $0x30] sm:$0xff]
        %v1370 = vld [vmem:[%s9 + $0x38] sm:$0xff]
        %v1371 = vld [vmem:[%s10] sm:$0x1]
        %v1373 = vperm.slane %v1371, 0
        %vm1375 = vcmask 523264
        %v1377 = vsel %vm1375, %v1361, 0
        %v1380 = vsel %vm1375, %v1362, 0
        %1382 = vmatpush.msra.mxu0 0.0
        %1383 = vmatpush.msra.mxu0 0.0
        %1384 = vmatpush.msra.mxu0 0.0
        %1385 = vmatpush.msra.mxu0 0.0
        %1386 = vmatpush.msra.mxu0 0.0
        %1387 = vmatpush.msra.mxu0 0.0
        %1388 = vmatpush.msra.mxu0 0.0
        %1389 = vmatpush.msra.mxu0 0.0
        %1390 = vmatpush.msra.mxu0 %v1370
        %1391 = vmatpush.msra.mxu0 %v1369
        %1392 = vmatpush.msra.mxu0 %v1368
        %1393 = vmatpush.msra.mxu0 %v1367
        %1394 = vmatpush.msra.mxu0 %v1366
        %1395 = vmatpush.msra.mxu0 %v1365
        %1396 = vmatpush.msra.mxu0 %v1364
        %1397 = vmatpush.msra.mxu0 %v1363
        %1398 = vmatmul.f32.gmra.mxu0 %v1377
        %v1399 = vpop.f32.mrf.mxu0
        %v1400 = vadd.f32 %v1373, %v1399
        %1401 = vmatmul.f32.gmra.mxu0 %v1380
        %v1402 = vpop.f32.mrf.mxu0
        %v1403 = vadd.f32 %v1373, %v1402
        %1404 = vdwg.mxu0
        %v1405 = vadd.f32 %v1322, %v1400
        %v1406 = vadd.f32 %v1323, %v1403
        %v1407 = vld [vmem:[#allocation9] sm:$0x1]
        %v1408 = vld [vmem:[#allocation11] sm:$0x1]
        %v1409 = vsel %vm633, %v1405, 0.0
        %1410 = vadd.xlane.f32.xlu0 %v1409
        %v1411 = vpop.xlane.xlu0 %1410
        %v1412 = vsel %vm633, %v1406, 0.0
        %1413 = vadd.xlane.f32.xlu0 %v1412
        %v1414 = vpop.xlane.xlu0 %1413
        %v1415 = vmul.f32 %v1411, %v1275
        %v1416 = vmul.f32 %v1414, %v1275
        %v1417 = vsub.f32 %v1405, %v1415
        %v1418 = vsub.f32 %v1406, %v1416
        %v1419 = vmul.f32 %v1417, %v1417
        %v1420 = vmul.f32 %v1418, %v1418
        %v1421 = vsel %vm633, %v1419, 0.0
        %1422 = vadd.xlane.f32.xlu0 %v1421
        %v1423 = vpop.xlane.xlu0 %1422
        %v1424 = vsel %vm633, %v1420, 0.0
        %1425 = vadd.xlane.f32.xlu0 %v1424
        %v1426 = vpop.xlane.xlu0 %1425
        %v1427 = vmul.f32 %v1423, %v1275
        %v1428 = vmul.f32 %v1426, %v1275
        %v1429 = vadd.f32 %v1427, 1e-05
        %v1430 = vadd.f32 %v1428, 1e-05
        %v1431 = vrsqrt.pop %v1429
        %v1432 = vmul.f32 %v1431, %v1429
        %v1433 = vmul.f32 %v1432, %v1431
        %v1434 = vmul.f32 0.5, %v1433
        %v1435 = vsub.f32 1.5, %v1434
        %v1436 = vmul.f32 %v1431, %v1435
        %vm1437 = vweird.f32 %v1429
        %vm1438 = vweird.f32 %v1431
        %vm1439 = vmor %vm1437, %vm1438
        %v1440 = vsel %vm1439, %v1431, %v1436
        %v1441 = vrsqrt.pop %v1430
        %v1442 = vmul.f32 %v1441, %v1430
        %v1443 = vmul.f32 %v1442, %v1441
        %v1444 = vmul.f32 0.5, %v1443
        %v1445 = vsub.f32 1.5, %v1444
        %v1446 = vmul.f32 %v1441, %v1445
        %vm1447 = vweird.f32 %v1430
        %vm1448 = vweird.f32 %v1441
        %vm1449 = vmor %vm1447, %vm1448
        %v1450 = vsel %vm1449, %v1441, %v1446
        %v1451 = vmul.f32 %v1417, %v1440
        %v1452 = vmul.f32 %v1418, %v1450
        %v1454 = vperm.slane %v1407, 0
        %v1456 = vmul.f32 %v1451, %v1454
        %v1457 = vmul.f32 %v1452, %v1454
        %v1459 = vperm.slane %v1408, 0
        %v1461 = vadd.f32 %v1456, %v1459
        %v1462 = vadd.f32 %v1457, %v1459
        %s1463 = scalar_lea.vmem %s3, 32
        %v1464 = vld [vmem:[%s1463] sm:$0xff]
        %v1465 = vld [vmem:[%s1463 + $0x8] sm:$0xff]
        %v1466 = vld [vmem:[%s1463 + $0x10] sm:$0xff]
        %v1467 = vld [vmem:[%s1463 + $0x18] sm:$0xff]
        %s1468 = scalar_lea.vmem %s4, 1
        %v1469 = vld [vmem:[%s1468] sm:$0x1]
        %v1471 = vperm.slane %v1469, 0
        %v1474 = vsel %vm633, %v1461, 0
        %v1477 = vsel %vm633, %v1462, 0
        %1479 = vmatpush.msra.mxu0 0.0
        %1480 = vmatpush.msra.mxu0 0.0
        %1481 = vmatpush.msra.mxu0 0.0
        %1482 = vmatpush.msra.mxu0 0.0
        %1483 = vmatpush.msra.mxu0 0.0
        %1484 = vmatpush.msra.mxu0 0.0
        %1485 = vmatpush.msra.mxu0 0.0
        %1486 = vmatpush.msra.mxu0 0.0
        %1487 = vmatpush.msra.mxu0 0.0
        %1488 = vmatpush.msra.mxu0 0.0
        %1489 = vmatpush.msra.mxu0 0.0
        %1490 = vmatpush.msra.mxu0 0.0
        %1491 = vmatpush.msra.mxu0 %v1467
        %1492 = vmatpush.msra.mxu0 %v1466
        %1493 = vmatpush.msra.mxu0 %v1465
        %1494 = vmatpush.msra.mxu0 %v1464
        %1495 = vmatmul.f32.gmra.mxu0 %v1474
        %v1496 = vpop.f32.mrf.mxu0
        %v1497 = vadd.f32 %v1471, %v1496
        %1498 = vmatmul.f32.gmra.mxu0 %v1477
        %v1499 = vpop.f32.mrf.mxu0
        %v1500 = vadd.f32 %v1471, %v1499
        %1501 = vdwg.mxu0
        %1503 = vrot.lane.b32.xlu0 %v1497, 120
        %v1504 = vpop.permute.xlu0 %1503
        %1505 = vrot.lane.b32.xlu0 %v1497, 112
        %v1506 = vpop.permute.xlu0 %1505
        %1507 = vrot.lane.b32.xlu0 %v1497, 104
        %v1508 = vpop.permute.xlu0 %1507
        %1509 = vrot.lane.b32.xlu0 %v1497, 96
        %v1510 = vpop.permute.xlu0 %1509
        %v1511 = vsel %vm676, %v1497, 0
        %v1513 = vsel %vm676, %v1510, 0
        %1515 = vmatpush.xpose.msra.mxu0 0.0
        %1516 = vmatpush.xpose.msra.mxu0 0.0
        %1517 = vmatpush.xpose.msra.mxu0 0.0
        %1518 = vmatpush.xpose.msra.mxu0 0.0
        %1519 = vmatpush.xpose.msra.mxu0 0.0
        %1520 = vmatpush.xpose.msra.mxu0 0.0
        %1521 = vmatpush.xpose.msra.mxu0 0.0
        %1522 = vmatpush.xpose.msra.mxu0 0.0
        %1523 = vmatpush.xpose.msra.mxu0 0.0
        %1524 = vmatpush.xpose.msra.mxu0 0.0
        %1525 = vmatpush.xpose.msra.mxu0 0.0
        %1526 = vmatpush.xpose.msra.mxu0 0.0
        %1527 = vmatpush.xpose.msra.mxu0 0.0
        %1528 = vmatpush.xpose.msra.mxu0 0.0
        %1529 = vmatpush.xpose.msra.mxu0 0.0
        %1530 = vmatpush.xpose.msra.mxu0 %v1513
        %1531 = vmatmul.f32.gmra.mxu0 %v1511
        %v1532 = vpop.f32.mrf.mxu0
        %v1533 = vadd.f32 %v673, %v1532
        %1534 = vdwg.mxu0
        %1535 = vrot.lane.b32.xlu0 %v1504, 96
        %v1536 = vpop.permute.xlu0 %1535
        %v1537 = vsel %vm676, %v1504, 0
        %v1539 = vsel %vm676, %v1536, 0
        %1541 = vmatpush.xpose.msra.mxu0 0.0
        %1542 = vmatpush.xpose.msra.mxu0 0.0
        %1543 = vmatpush.xpose.msra.mxu0 0.0
        %1544 = vmatpush.xpose.msra.mxu0 0.0
        %1545 = vmatpush.xpose.msra.mxu0 0.0
        %1546 = vmatpush.xpose.msra.mxu0 0.0
        %1547 = vmatpush.xpose.msra.mxu0 0.0
        %1548 = vmatpush.xpose.msra.mxu0 0.0
        %1549 = vmatpush.xpose.msra.mxu0 0.0
        %1550 = vmatpush.xpose.msra.mxu0 0.0
        %1551 = vmatpush.xpose.msra.mxu0 0.0
        %1552 = vmatpush.xpose.msra.mxu0 0.0
        %1553 = vmatpush.xpose.msra.mxu0 0.0
        %1554 = vmatpush.xpose.msra.mxu0 0.0
        %1555 = vmatpush.xpose.msra.mxu0 0.0
        %1556 = vmatpush.xpose.msra.mxu0 %v1539
        %1557 = vmatmul.f32.gmra.mxu0 %v1537
        %v1558 = vpop.f32.mrf.mxu0
        %v1559 = vadd.f32 %v673, %v1558
        %1560 = vdwg.mxu0
        %1561 = vrot.lane.b32.xlu0 %v1506, 96
        %v1562 = vpop.permute.xlu0 %1561
        %v1563 = vsel %vm676, %v1506, 0
        %v1565 = vsel %vm676, %v1562, 0
        %1567 = vmatpush.xpose.msra.mxu0 0.0
        %1568 = vmatpush.xpose.msra.mxu0 0.0
        %1569 = vmatpush.xpose.msra.mxu0 0.0
        %1570 = vmatpush.xpose.msra.mxu0 0.0
        %1571 = vmatpush.xpose.msra.mxu0 0.0
        %1572 = vmatpush.xpose.msra.mxu0 0.0
        %1573 = vmatpush.xpose.msra.mxu0 0.0
        %1574 = vmatpush.xpose.msra.mxu0 0.0
        %1575 = vmatpush.xpose.msra.mxu0 0.0
        %1576 = vmatpush.xpose.msra.mxu0 0.0
        %1577 = vmatpush.xpose.msra.mxu0 0.0
        %1578 = vmatpush.xpose.msra.mxu0 0.0
        %1579 = vmatpush.xpose.msra.mxu0 0.0
        %1580 = vmatpush.xpose.msra.mxu0 0.0
        %1581 = vmatpush.xpose.msra.mxu0 0.0
        %1582 = vmatpush.xpose.msra.mxu0 %v1565
        %1583 = vmatmul.f32.gmra.mxu0 %v1563
        %v1584 = vpop.f32.mrf.mxu0
        %v1585 = vadd.f32 %v673, %v1584
        %1586 = vdwg.mxu0
        %1587 = vrot.lane.b32.xlu0 %v1508, 96
        %v1588 = vpop.permute.xlu0 %1587
        %v1589 = vsel %vm676, %v1508, 0
        %v1591 = vsel %vm676, %v1588, 0
        %1593 = vmatpush.xpose.msra.mxu0 0.0
        %1594 = vmatpush.xpose.msra.mxu0 0.0
        %1595 = vmatpush.xpose.msra.mxu0 0.0
        %1596 = vmatpush.xpose.msra.mxu0 0.0
        %1597 = vmatpush.xpose.msra.mxu0 0.0
        %1598 = vmatpush.xpose.msra.mxu0 0.0
        %1599 = vmatpush.xpose.msra.mxu0 0.0
        %1600 = vmatpush.xpose.msra.mxu0 0.0
        %1601 = vmatpush.xpose.msra.mxu0 0.0
        %1602 = vmatpush.xpose.msra.mxu0 0.0
        %1603 = vmatpush.xpose.msra.mxu0 0.0
        %1604 = vmatpush.xpose.msra.mxu0 0.0
        %1605 = vmatpush.xpose.msra.mxu0 0.0
        %1606 = vmatpush.xpose.msra.mxu0 0.0
        %1607 = vmatpush.xpose.msra.mxu0 0.0
        %1608 = vmatpush.xpose.msra.mxu0 %v1591
        %1609 = vmatmul.f32.gmra.mxu0 %v1589
        %v1610 = vpop.f32.mrf.mxu0
        %v1611 = vadd.f32 %v673, %v1610
        %1612 = vdwg.mxu0
        %v1613 = vsel %vm676, %v1533, -inf
        %1614 = vmax.xlane.f32.xlu0 %v1613
        %v1615 = vpop.xlane.xlu0 %1614
        %v1616 = vsel %vm676, %v1559, -inf
        %1617 = vmax.xlane.f32.xlu0 %v1616
        %v1618 = vpop.xlane.xlu0 %1617
        %v1619 = vsel %vm676, %v1585, -inf
        %1620 = vmax.xlane.f32.xlu0 %v1619
        %v1621 = vpop.xlane.xlu0 %1620
        %v1622 = vsel %vm676, %v1611, -inf
        %1623 = vmax.xlane.f32.xlu0 %v1622
        %v1624 = vpop.xlane.xlu0 %1623
        %v1625 = vsub.f32 %v1533, %v1615
        %v1626 = vsub.f32 %v1559, %v1618
        %v1627 = vsub.f32 %v1585, %v1621
        %v1628 = vsub.f32 %v1611, %v1624
        %v1629 = vmul.f32 %v1625, 1.442695
        %v1630 = vpow.pop %v1629
        %v1631 = vmul.f32 %v1626, 1.442695
        %v1632 = vpow.pop %v1631
        %v1633 = vmul.f32 %v1627, 1.442695
        %v1634 = vpow.pop %v1633
        %v1635 = vmul.f32 %v1628, 1.442695
        %v1636 = vpow.pop %v1635
        %v1637 = vsel %vm676, %v1630, 0.0
        %1638 = vadd.xlane.f32.xlu0 %v1637
        %v1639 = vpop.xlane.xlu0 %1638
        %v1640 = vsel %vm676, %v1632, 0.0
        %1641 = vadd.xlane.f32.xlu0 %v1640
        %v1642 = vpop.xlane.xlu0 %1641
        %v1643 = vsel %vm676, %v1634, 0.0
        %1644 = vadd.xlane.f32.xlu0 %v1643
        %v1645 = vpop.xlane.xlu0 %1644
        %v1646 = vsel %vm676, %v1636, 0.0
        %1647 = vadd.xlane.f32.xlu0 %v1646
        %v1648 = vpop.xlane.xlu0 %1647
        %1649 = vrot.lane.b32.xlu0 %v1497, 64
        %v1650 = vpop.permute.xlu0 %1649
        %v1653 = vsel %vm676, %v1630, 0
        %1655 = vmatpush.msra.mxu0 0.0
        %1656 = vmatpush.msra.mxu0 0.0
        %1657 = vmatpush.msra.mxu0 0.0
        %1658 = vmatpush.msra.mxu0 0.0
        %1659 = vmatpush.msra.mxu0 0.0
        %1660 = vmatpush.msra.mxu0 0.0
        %1661 = vmatpush.msra.mxu0 0.0
        %1662 = vmatpush.msra.mxu0 0.0
        %1663 = vmatpush.msra.mxu0 0.0
        %1664 = vmatpush.msra.mxu0 0.0
        %1665 = vmatpush.msra.mxu0 0.0
        %1666 = vmatpush.msra.mxu0 0.0
        %1667 = vmatpush.msra.mxu0 0.0
        %1668 = vmatpush.msra.mxu0 0.0
        %1669 = vmatpush.msra.mxu0 0.0
        %1670 = vmatpush.msra.mxu0 %v1650
        %1671 = vmatmul.f32.gmra.mxu0 %v1653
        %v1672 = vpop.f32.mrf.mxu0
        %v1673 = vadd.f32 0.0, %v1672
        %1674 = vdwg.mxu0
        %1675 = vrot.lane.b32.xlu0 %v1504, 64
        %v1676 = vpop.permute.xlu0 %1675
        %v1679 = vsel %vm676, %v1632, 0
        %1681 = vmatpush.msra.mxu0 0.0
        %1682 = vmatpush.msra.mxu0 0.0
        %1683 = vmatpush.msra.mxu0 0.0
        %1684 = vmatpush.msra.mxu0 0.0
        %1685 = vmatpush.msra.mxu0 0.0
        %1686 = vmatpush.msra.mxu0 0.0
        %1687 = vmatpush.msra.mxu0 0.0
        %1688 = vmatpush.msra.mxu0 0.0
        %1689 = vmatpush.msra.mxu0 0.0
        %1690 = vmatpush.msra.mxu0 0.0
        %1691 = vmatpush.msra.mxu0 0.0
        %1692 = vmatpush.msra.mxu0 0.0
        %1693 = vmatpush.msra.mxu0 0.0
        %1694 = vmatpush.msra.mxu0 0.0
        %1695 = vmatpush.msra.mxu0 0.0
        %1696 = vmatpush.msra.mxu0 %v1676
        %1697 = vmatmul.f32.gmra.mxu0 %v1679
        %v1698 = vpop.f32.mrf.mxu0
        %v1699 = vadd.f32 0.0, %v1698
        %1700 = vdwg.mxu0
        %1701 = vrot.lane.b32.xlu0 %v1506, 64
        %v1702 = vpop.permute.xlu0 %1701
        %v1705 = vsel %vm676, %v1634, 0
        %1707 = vmatpush.msra.mxu0 0.0
        %1708 = vmatpush.msra.mxu0 0.0
        %1709 = vmatpush.msra.mxu0 0.0
        %1710 = vmatpush.msra.mxu0 0.0
        %1711 = vmatpush.msra.mxu0 0.0
        %1712 = vmatpush.msra.mxu0 0.0
        %1713 = vmatpush.msra.mxu0 0.0
        %1714 = vmatpush.msra.mxu0 0.0
        %1715 = vmatpush.msra.mxu0 0.0
        %1716 = vmatpush.msra.mxu0 0.0
        %1717 = vmatpush.msra.mxu0 0.0
        %1718 = vmatpush.msra.mxu0 0.0
        %1719 = vmatpush.msra.mxu0 0.0
        %1720 = vmatpush.msra.mxu0 0.0
        %1721 = vmatpush.msra.mxu0 0.0
        %1722 = vmatpush.msra.mxu0 %v1702
        %1723 = vmatmul.f32.gmra.mxu0 %v1705
        %v1724 = vpop.f32.mrf.mxu0
        %v1725 = vadd.f32 0.0, %v1724
        %1726 = vdwg.mxu0
        %1727 = vrot.lane.b32.xlu0 %v1508, 64
        %v1728 = vpop.permute.xlu0 %1727
        %v1731 = vsel %vm676, %v1636, 0
        %1733 = vmatpush.msra.mxu0 0.0
        %1734 = vmatpush.msra.mxu0 0.0
        %1735 = vmatpush.msra.mxu0 0.0
        %1736 = vmatpush.msra.mxu0 0.0
        %1737 = vmatpush.msra.mxu0 0.0
        %1738 = vmatpush.msra.mxu0 0.0
        %1739 = vmatpush.msra.mxu0 0.0
        %1740 = vmatpush.msra.mxu0 0.0
        %1741 = vmatpush.msra.mxu0 0.0
        %1742 = vmatpush.msra.mxu0 0.0
        %1743 = vmatpush.msra.mxu0 0.0
        %1744 = vmatpush.msra.mxu0 0.0
        %1745 = vmatpush.msra.mxu0 0.0
        %1746 = vmatpush.msra.mxu0 0.0
        %1747 = vmatpush.msra.mxu0 0.0
        %1748 = vmatpush.msra.mxu0 %v1728
        %1749 = vmatmul.f32.gmra.mxu0 %v1731
        %v1750 = vpop.f32.mrf.mxu0
        %v1751 = vadd.f32 0.0, %v1750
        %1752 = vdwg.mxu0
        %v1753 = vrcp.pop %v1639
        %v1754 = vrcp.pop %v1642
        %v1755 = vrcp.pop %v1645
        %v1756 = vrcp.pop %v1648
        %v1757 = vmul.f32 %v1673, %v1753
        %v1758 = vmul.f32 %v1699, %v1754
        %v1759 = vmul.f32 %v1725, %v1755
        %v1760 = vmul.f32 %v1751, %v1756
        %1762 = vrot.lane.b32.xlu0 %v1758, 8
        %v1763 = vpop.permute.xlu0 %1762
        %1766 = vrot.lane.b32.xlu0 %v1759, 16
        %v1767 = vpop.permute.xlu0 %1766
        %1770 = vrot.lane.b32.xlu0 %v1760, 24
        %v1771 = vpop.permute.xlu0 %1770
        %v1773 = vsel %vm676, %v1757, %v1763
        %v1774 = vsel %vm940, %v1773, %v1767
        %v1775 = vsel %vm942, %v1774, %v1771
        %1777 = vrot.lane.b32.xlu0 %v1500, 120
        %v1778 = vpop.permute.xlu0 %1777
        %1779 = vrot.lane.b32.xlu0 %v1500, 112
        %v1780 = vpop.permute.xlu0 %1779
        %1781 = vrot.lane.b32.xlu0 %v1500, 104
        %v1782 = vpop.permute.xlu0 %1781
        %1783 = vrot.lane.b32.xlu0 %v1500, 96
        %v1784 = vpop.permute.xlu0 %1783
        %v1785 = vsel %vm676, %v1500, 0
        %v1787 = vsel %vm676, %v1784, 0
        %1789 = vmatpush.xpose.msra.mxu0 0.0
        %1790 = vmatpush.xpose.msra.mxu0 0.0
        %1791 = vmatpush.xpose.msra.mxu0 0.0
        %1792 = vmatpush.xpose.msra.mxu0 0.0
        %1793 = vmatpush.xpose.msra.mxu0 0.0
        %1794 = vmatpush.xpose.msra.mxu0 0.0
        %1795 = vmatpush.xpose.msra.mxu0 0.0
        %1796 = vmatpush.xpose.msra.mxu0 0.0
        %1797 = vmatpush.xpose.msra.mxu0 0.0
        %1798 = vmatpush.xpose.msra.mxu0 0.0
        %1799 = vmatpush.xpose.msra.mxu0 0.0
        %1800 = vmatpush.xpose.msra.mxu0 0.0
        %1801 = vmatpush.xpose.msra.mxu0 0.0
        %1802 = vmatpush.xpose.msra.mxu0 0.0
        %1803 = vmatpush.xpose.msra.mxu0 0.0
        %1804 = vmatpush.xpose.msra.mxu0 %v1787
        %1805 = vmatmul.f32.gmra.mxu0 %v1785
        %v1806 = vpop.f32.mrf.mxu0
        %v1807 = vadd.f32 %v954, %v1806
        %1808 = vdwg.mxu0
        %1809 = vrot.lane.b32.xlu0 %v1778, 96
        %v1810 = vpop.permute.xlu0 %1809
        %v1811 = vsel %vm676, %v1778, 0
        %v1813 = vsel %vm676, %v1810, 0
        %1815 = vmatpush.xpose.msra.mxu0 0.0
        %1816 = vmatpush.xpose.msra.mxu0 0.0
        %1817 = vmatpush.xpose.msra.mxu0 0.0
        %1818 = vmatpush.xpose.msra.mxu0 0.0
        %1819 = vmatpush.xpose.msra.mxu0 0.0
        %1820 = vmatpush.xpose.msra.mxu0 0.0
        %1821 = vmatpush.xpose.msra.mxu0 0.0
        %1822 = vmatpush.xpose.msra.mxu0 0.0
        %1823 = vmatpush.xpose.msra.mxu0 0.0
        %1824 = vmatpush.xpose.msra.mxu0 0.0
        %1825 = vmatpush.xpose.msra.mxu0 0.0
        %1826 = vmatpush.xpose.msra.mxu0 0.0
        %1827 = vmatpush.xpose.msra.mxu0 0.0
        %1828 = vmatpush.xpose.msra.mxu0 0.0
        %1829 = vmatpush.xpose.msra.mxu0 0.0
        %1830 = vmatpush.xpose.msra.mxu0 %v1813
        %1831 = vmatmul.f32.gmra.mxu0 %v1811
        %v1832 = vpop.f32.mrf.mxu0
        %v1833 = vadd.f32 %v954, %v1832
        %1834 = vdwg.mxu0
        %1835 = vrot.lane.b32.xlu0 %v1780, 96
        %v1836 = vpop.permute.xlu0 %1835
        %v1837 = vsel %vm676, %v1780, 0
        %v1839 = vsel %vm676, %v1836, 0
        %1841 = vmatpush.xpose.msra.mxu0 0.0
        %1842 = vmatpush.xpose.msra.mxu0 0.0
        %1843 = vmatpush.xpose.msra.mxu0 0.0
        %1844 = vmatpush.xpose.msra.mxu0 0.0
        %1845 = vmatpush.xpose.msra.mxu0 0.0
        %1846 = vmatpush.xpose.msra.mxu0 0.0
        %1847 = vmatpush.xpose.msra.mxu0 0.0
        %1848 = vmatpush.xpose.msra.mxu0 0.0
        %1849 = vmatpush.xpose.msra.mxu0 0.0
        %1850 = vmatpush.xpose.msra.mxu0 0.0
        %1851 = vmatpush.xpose.msra.mxu0 0.0
        %1852 = vmatpush.xpose.msra.mxu0 0.0
        %1853 = vmatpush.xpose.msra.mxu0 0.0
        %1854 = vmatpush.xpose.msra.mxu0 0.0
        %1855 = vmatpush.xpose.msra.mxu0 0.0
        %1856 = vmatpush.xpose.msra.mxu0 %v1839
        %1857 = vmatmul.f32.gmra.mxu0 %v1837
        %v1858 = vpop.f32.mrf.mxu0
        %v1859 = vadd.f32 %v954, %v1858
        %1860 = vdwg.mxu0
        %1861 = vrot.lane.b32.xlu0 %v1782, 96
        %v1862 = vpop.permute.xlu0 %1861
        %v1863 = vsel %vm676, %v1782, 0
        %v1865 = vsel %vm676, %v1862, 0
        %1867 = vmatpush.xpose.msra.mxu0 0.0
        %1868 = vmatpush.xpose.msra.mxu0 0.0
        %1869 = vmatpush.xpose.msra.mxu0 0.0
        %1870 = vmatpush.xpose.msra.mxu0 0.0
        %1871 = vmatpush.xpose.msra.mxu0 0.0
        %1872 = vmatpush.xpose.msra.mxu0 0.0
        %1873 = vmatpush.xpose.msra.mxu0 0.0
        %1874 = vmatpush.xpose.msra.mxu0 0.0
        %1875 = vmatpush.xpose.msra.mxu0 0.0
        %1876 = vmatpush.xpose.msra.mxu0 0.0
        %1877 = vmatpush.xpose.msra.mxu0 0.0
        %1878 = vmatpush.xpose.msra.mxu0 0.0
        %1879 = vmatpush.xpose.msra.mxu0 0.0
        %1880 = vmatpush.xpose.msra.mxu0 0.0
        %1881 = vmatpush.xpose.msra.mxu0 0.0
        %1882 = vmatpush.xpose.msra.mxu0 %v1865
        %1883 = vmatmul.f32.gmra.mxu0 %v1863
        %v1884 = vpop.f32.mrf.mxu0
        %v1885 = vadd.f32 %v954, %v1884
        %1886 = vdwg.mxu0
        %v1887 = vsel %vm676, %v1807, -inf
        %1888 = vmax.xlane.f32.xlu0 %v1887
        %v1889 = vpop.xlane.xlu0 %1888
        %v1890 = vsel %vm676, %v1833, -inf
        %1891 = vmax.xlane.f32.xlu0 %v1890
        %v1892 = vpop.xlane.xlu0 %1891
        %v1893 = vsel %vm676, %v1859, -inf
        %1894 = vmax.xlane.f32.xlu0 %v1893
        %v1895 = vpop.xlane.xlu0 %1894
        %v1896 = vsel %vm676, %v1885, -inf
        %1897 = vmax.xlane.f32.xlu0 %v1896
        %v1898 = vpop.xlane.xlu0 %1897
        %v1899 = vsub.f32 %v1807, %v1889
        %v1900 = vsub.f32 %v1833, %v1892
        %v1901 = vsub.f32 %v1859, %v1895
        %v1902 = vsub.f32 %v1885, %v1898
        %v1903 = vmul.f32 %v1899, 1.442695
        %v1904 = vpow.pop %v1903
        %v1905 = vmul.f32 %v1900, 1.442695
        %v1906 = vpow.pop %v1905
        %v1907 = vmul.f32 %v1901, 1.442695
        %v1908 = vpow.pop %v1907
        %v1909 = vmul.f32 %v1902, 1.442695
        %v1910 = vpow.pop %v1909
        %v1911 = vsel %vm676, %v1904, 0.0
        %1912 = vadd.xlane.f32.xlu0 %v1911
        %v1913 = vpop.xlane.xlu0 %1912
        %v1914 = vsel %vm676, %v1906, 0.0
        %1915 = vadd.xlane.f32.xlu0 %v1914
        %v1916 = vpop.xlane.xlu0 %1915
        %v1917 = vsel %vm676, %v1908, 0.0
        %1918 = vadd.xlane.f32.xlu0 %v1917
        %v1919 = vpop.xlane.xlu0 %1918
        %v1920 = vsel %vm676, %v1910, 0.0
        %1921 = vadd.xlane.f32.xlu0 %v1920
        %v1922 = vpop.xlane.xlu0 %1921
        %1923 = vrot.lane.b32.xlu0 %v1500, 64
        %v1924 = vpop.permute.xlu0 %1923
        %v1927 = vsel %vm676, %v1904, 0
        %1929 = vmatpush.msra.mxu0 0.0
        %1930 = vmatpush.msra.mxu0 0.0
        %1931 = vmatpush.msra.mxu0 0.0
        %1932 = vmatpush.msra.mxu0 0.0
        %1933 = vmatpush.msra.mxu0 0.0
        %1934 = vmatpush.msra.mxu0 0.0
        %1935 = vmatpush.msra.mxu0 0.0
        %1936 = vmatpush.msra.mxu0 0.0
        %1937 = vmatpush.msra.mxu0 0.0
        %1938 = vmatpush.msra.mxu0 0.0
        %1939 = vmatpush.msra.mxu0 0.0
        %1940 = vmatpush.msra.mxu0 0.0
        %1941 = vmatpush.msra.mxu0 0.0
        %1942 = vmatpush.msra.mxu0 0.0
        %1943 = vmatpush.msra.mxu0 0.0
        %1944 = vmatpush.msra.mxu0 %v1924
        %1945 = vmatmul.f32.gmra.mxu0 %v1927
        %v1946 = vpop.f32.mrf.mxu0
        %v1947 = vadd.f32 0.0, %v1946
        %1948 = vdwg.mxu0
        %1949 = vrot.lane.b32.xlu0 %v1778, 64
        %v1950 = vpop.permute.xlu0 %1949
        %v1953 = vsel %vm676, %v1906, 0
        %1955 = vmatpush.msra.mxu0 0.0
        %1956 = vmatpush.msra.mxu0 0.0
        %1957 = vmatpush.msra.mxu0 0.0
        %1958 = vmatpush.msra.mxu0 0.0
        %1959 = vmatpush.msra.mxu0 0.0
        %1960 = vmatpush.msra.mxu0 0.0
        %1961 = vmatpush.msra.mxu0 0.0
        %1962 = vmatpush.msra.mxu0 0.0
        %1963 = vmatpush.msra.mxu0 0.0
        %1964 = vmatpush.msra.mxu0 0.0
        %1965 = vmatpush.msra.mxu0 0.0
        %1966 = vmatpush.msra.mxu0 0.0
        %1967 = vmatpush.msra.mxu0 0.0
        %1968 = vmatpush.msra.mxu0 0.0
        %1969 = vmatpush.msra.mxu0 0.0
        %1970 = vmatpush.msra.mxu0 %v1950
        %1971 = vmatmul.f32.gmra.mxu0 %v1953
        %v1972 = vpop.f32.mrf.mxu0
        %v1973 = vadd.f32 0.0, %v1972
        %1974 = vdwg.mxu0
        %1975 = vrot.lane.b32.xlu0 %v1780, 64
        %v1976 = vpop.permute.xlu0 %1975
        %v1979 = vsel %vm676, %v1908, 0
        %1981 = vmatpush.msra.mxu0 0.0
        %1982 = vmatpush.msra.mxu0 0.0
        %1983 = vmatpush.msra.mxu0 0.0
        %1984 = vmatpush.msra.mxu0 0.0
        %1985 = vmatpush.msra.mxu0 0.0
        %1986 = vmatpush.msra.mxu0 0.0
        %1987 = vmatpush.msra.mxu0 0.0
        %1988 = vmatpush.msra.mxu0 0.0
        %1989 = vmatpush.msra.mxu0 0.0
        %1990 = vmatpush.msra.mxu0 0.0
        %1991 = vmatpush.msra.mxu0 0.0
        %1992 = vmatpush.msra.mxu0 0.0
        %1993 = vmatpush.msra.mxu0 0.0
        %1994 = vmatpush.msra.mxu0 0.0
        %1995 = vmatpush.msra.mxu0 0.0
        %1996 = vmatpush.msra.mxu0 %v1976
        %1997 = vmatmul.f32.gmra.mxu0 %v1979
        %v1998 = vpop.f32.mrf.mxu0
        %v1999 = vadd.f32 0.0, %v1998
        %2000 = vdwg.mxu0
        %2001 = vrot.lane.b32.xlu0 %v1782, 64
        %v2002 = vpop.permute.xlu0 %2001
        %v2005 = vsel %vm676, %v1910, 0
        %2007 = vmatpush.msra.mxu0 0.0
        %2008 = vmatpush.msra.mxu0 0.0
        %2009 = vmatpush.msra.mxu0 0.0
        %2010 = vmatpush.msra.mxu0 0.0
        %2011 = vmatpush.msra.mxu0 0.0
        %2012 = vmatpush.msra.mxu0 0.0
        %2013 = vmatpush.msra.mxu0 0.0
        %2014 = vmatpush.msra.mxu0 0.0
        %2015 = vmatpush.msra.mxu0 0.0
        %2016 = vmatpush.msra.mxu0 0.0
        %2017 = vmatpush.msra.mxu0 0.0
        %2018 = vmatpush.msra.mxu0 0.0
        %2019 = vmatpush.msra.mxu0 0.0
        %2020 = vmatpush.msra.mxu0 0.0
        %2021 = vmatpush.msra.mxu0 0.0
        %2022 = vmatpush.msra.mxu0 %v2002
        %2023 = vmatmul.f32.gmra.mxu0 %v2005
        %v2024 = vpop.f32.mrf.mxu0
        %v2025 = vadd.f32 0.0, %v2024
        %2026 = vdwg.mxu0
        %v2027 = vrcp.pop %v1913
        %v2028 = vrcp.pop %v1916
        %v2029 = vrcp.pop %v1919
        %v2030 = vrcp.pop %v1922
        %v2031 = vmul.f32 %v1947, %v2027
        %v2032 = vmul.f32 %v1973, %v2028
        %v2033 = vmul.f32 %v1999, %v2029
        %v2034 = vmul.f32 %v2025, %v2030
        %2036 = vrot.lane.b32.xlu0 %v2032, 8
        %v2037 = vpop.permute.xlu0 %2036
        %2040 = vrot.lane.b32.xlu0 %v2033, 16
        %v2041 = vpop.permute.xlu0 %2040
        %2044 = vrot.lane.b32.xlu0 %v2034, 24
        %v2045 = vpop.permute.xlu0 %2044
        %v2047 = vsel %vm676, %v2031, %v2037
        %v2048 = vsel %vm940, %v2047, %v2041
        %v2049 = vsel %vm942, %v2048, %v2045
        %s2050 = scalar_lea.vmem %s5, 32
        %v2051 = vld [vmem:[%s2050] sm:$0xff]
        %v2052 = vld [vmem:[%s2050 + $0x8] sm:$0xff]
        %v2053 = vld [vmem:[%s2050 + $0x10] sm:$0xff]
        %v2054 = vld [vmem:[%s2050 + $0x18] sm:$0xff]
        %s2055 = scalar_lea.vmem %s6, 1
        %v2056 = vld [vmem:[%s2055] sm:$0x1]
        %v2058 = vperm.slane %v2056, 0
        %v2061 = vsel %vm633, %v1775, 0
        %v2064 = vsel %vm633, %v2049, 0
        %2066 = vmatpush.msra.mxu0 0.0
        %2067 = vmatpush.msra.mxu0 0.0
        %2068 = vmatpush.msra.mxu0 0.0
        %2069 = vmatpush.msra.mxu0 0.0
        %2070 = vmatpush.msra.mxu0 0.0
        %2071 = vmatpush.msra.mxu0 0.0
        %2072 = vmatpush.msra.mxu0 0.0
        %2073 = vmatpush.msra.mxu0 0.0
        %2074 = vmatpush.msra.mxu0 0.0
        %2075 = vmatpush.msra.mxu0 0.0
        %2076 = vmatpush.msra.mxu0 0.0
        %2077 = vmatpush.msra.mxu0 0.0
        %2078 = vmatpush.msra.mxu0 %v2054
        %2079 = vmatpush.msra.mxu0 %v2053
        %2080 = vmatpush.msra.mxu0 %v2052
        %2081 = vmatpush.msra.mxu0 %v2051
        %2082 = vmatmul.f32.gmra.mxu0 %v2061
        %v2083 = vpop.f32.mrf.mxu0
        %v2084 = vadd.f32 %v2058, %v2083
        %2085 = vmatmul.f32.gmra.mxu0 %v2064
        %v2086 = vpop.f32.mrf.mxu0
        %v2087 = vadd.f32 %v2058, %v2086
        %2088 = vdwg.mxu0
        %v2089 = vadd.f32 %v1461, %v2084
        %v2090 = vadd.f32 %v1462, %v2087
        %s2091 = scalar_lea.vmem %s11, 1
        %v2092 = vld [vmem:[%s2091] sm:$0x1]
        %s2093 = scalar_lea.vmem %s12, 1
        %v2094 = vld [vmem:[%s2093] sm:$0x1]
        %v2095 = vsel %vm633, %v2089, 0.0
        %2096 = vadd.xlane.f32.xlu0 %v2095
        %v2097 = vpop.xlane.xlu0 %2096
        %v2098 = vsel %vm633, %v2090, 0.0
        %2099 = vadd.xlane.f32.xlu0 %v2098
        %v2100 = vpop.xlane.xlu0 %2099
        %v2101 = vmul.f32 %v2097, %v1275
        %v2102 = vmul.f32 %v2100, %v1275
        %v2103 = vsub.f32 %v2089, %v2101
        %v2104 = vsub.f32 %v2090, %v2102
        %v2105 = vmul.f32 %v2103, %v2103
        %v2106 = vmul.f32 %v2104, %v2104
        %v2107 = vsel %vm633, %v2105, 0.0
        %2108 = vadd.xlane.f32.xlu0 %v2107
        %v2109 = vpop.xlane.xlu0 %2108
        %v2110 = vsel %vm633, %v2106, 0.0
        %2111 = vadd.xlane.f32.xlu0 %v2110
        %v2112 = vpop.xlane.xlu0 %2111
        %v2113 = vmul.f32 %v2109, %v1275
        %v2114 = vmul.f32 %v2112, %v1275
        %v2115 = vadd.f32 %v2113, 1e-05
        %v2116 = vadd.f32 %v2114, 1e-05
        %v2117 = vrsqrt.pop %v2115
        %v2118 = vmul.f32 %v2117, %v2115
        %v2119 = vmul.f32 %v2118, %v2117
        %v2120 = vmul.f32 0.5, %v2119
        %v2121 = vsub.f32 1.5, %v2120
        %v2122 = vmul.f32 %v2117, %v2121
        %vm2123 = vweird.f32 %v2115
        %vm2124 = vweird.f32 %v2117
        %vm2125 = vmor %vm2123, %vm2124
        %v2126 = vsel %vm2125, %v2117, %v2122
        %v2127 = vrsqrt.pop %v2116
        %v2128 = vmul.f32 %v2127, %v2116
        %v2129 = vmul.f32 %v2128, %v2127
        %v2130 = vmul.f32 0.5, %v2129
        %v2131 = vsub.f32 1.5, %v2130
        %v2132 = vmul.f32 %v2127, %v2131
        %vm2133 = vweird.f32 %v2116
        %vm2134 = vweird.f32 %v2127
        %vm2135 = vmor %vm2133, %vm2134
        %v2136 = vsel %vm2135, %v2127, %v2132
        %v2137 = vmul.f32 %v2103, %v2126
        %v2138 = vmul.f32 %v2104, %v2136
        %v2140 = vperm.slane %v2092, 0
        %v2142 = vmul.f32 %v2137, %v2140
        %v2143 = vmul.f32 %v2138, %v2140
        %v2145 = vperm.slane %v2094, 0
        %v2147 = vadd.f32 %v2142, %v2145
        %v2148 = vadd.f32 %v2143, %v2145
        %s2149 = scalar_lea.vmem %s7, 32
        %v2150 = vld [vmem:[%s2149] sm:$0xff]
        %v2151 = vld [vmem:[%s2149 + $0x8] sm:$0xff]
        %v2152 = vld [vmem:[%s2149 + $0x10] sm:$0xff]
        %v2153 = vld [vmem:[%s2149 + $0x18] sm:$0xff]
        %s2154 = scalar_lea.vmem [#allocation8], 1
        %v2155 = vld [vmem:[%s2154] sm:$0x1]
        %v2157 = vperm.slane %v2155, 0
        %v2160 = vsel %vm633, %v2147, 0
        %v2163 = vsel %vm633, %v2148, 0
        %2165 = vmatpush.msra.mxu0 0.0
        %2166 = vmatpush.msra.mxu0 0.0
        %2167 = vmatpush.msra.mxu0 0.0
        %2168 = vmatpush.msra.mxu0 0.0
        %2169 = vmatpush.msra.mxu0 0.0
        %2170 = vmatpush.msra.mxu0 0.0
        %2171 = vmatpush.msra.mxu0 0.0
        %2172 = vmatpush.msra.mxu0 0.0
        %2173 = vmatpush.msra.mxu0 0.0
        %2174 = vmatpush.msra.mxu0 0.0
        %2175 = vmatpush.msra.mxu0 0.0
        %2176 = vmatpush.msra.mxu0 0.0
        %2177 = vmatpush.msra.mxu0 %v2153
        %2178 = vmatpush.msra.mxu0 %v2152
        %2179 = vmatpush.msra.mxu0 %v2151
        %2180 = vmatpush.msra.mxu0 %v2150
        %2181 = vmatmul.f32.gmra.mxu0 %v2160
        %v2182 = vpop.f32.mrf.mxu0
        %v2183 = vadd.f32 %v2157, %v2182
        %2184 = vmatmul.f32.gmra.mxu0 %v2163
        %v2185 = vpop.f32.mrf.mxu0
        %v2186 = vadd.f32 %v2157, %v2185
        %2187 = vdwg.mxu0
        %v2188 = vmax.f32 %v2183, 0.0
        %v2189 = vmax.f32 %v2186, 0.0
        %s2190 = scalar_lea.vmem %s9, 64
        %v2191 = vld [vmem:[%s2190] sm:$0xff]
        %v2192 = vld [vmem:[%s2190 + $0x8] sm:$0xff]
        %v2193 = vld [vmem:[%s2190 + $0x10] sm:$0xff]
        %v2194 = vld [vmem:[%s2190 + $0x18] sm:$0xff]
        %v2195 = vld [vmem:[%s2190 + $0x20] sm:$0xff]
        %v2196 = vld [vmem:[%s2190 + $0x28] sm:$0xff]
        %v2197 = vld [vmem:[%s2190 + $0x30] sm:$0xff]
        %v2198 = vld [vmem:[%s2190 + $0x38] sm:$0xff]
        %s2199 = scalar_lea.vmem %s10, 1
        %v2200 = vld [vmem:[%s2199] sm:$0x1]
        %v2202 = vperm.slane %v2200, 0
        %v2205 = vsel %vm1375, %v2188, 0
        %v2208 = vsel %vm1375, %v2189, 0
        %2210 = vmatpush.msra.mxu0 0.0
        %2211 = vmatpush.msra.mxu0 0.0
        %2212 = vmatpush.msra.mxu0 0.0
        %2213 = vmatpush.msra.mxu0 0.0
        %2214 = vmatpush.msra.mxu0 0.0
        %2215 = vmatpush.msra.mxu0 0.0
        %2216 = vmatpush.msra.mxu0 0.0
        %2217 = vmatpush.msra.mxu0 0.0
        %2218 = vmatpush.msra.mxu0 %v2198
        %2219 = vmatpush.msra.mxu0 %v2197
        %2220 = vmatpush.msra.mxu0 %v2196
        %2221 = vmatpush.msra.mxu0 %v2195
        %2222 = vmatpush.msra.mxu0 %v2194
        %2223 = vmatpush.msra.mxu0 %v2193
        %2224 = vmatpush.msra.mxu0 %v2192
        %2225 = vmatpush.msra.mxu0 %v2191
        %2226 = vmatmul.f32.gmra.mxu0 %v2205
        %v2227 = vpop.f32.mrf.mxu0
        %v2228 = vadd.f32 %v2202, %v2227
        %2229 = vmatmul.f32.gmra.mxu0 %v2208
        %v2230 = vpop.f32.mrf.mxu0
        %v2231 = vadd.f32 %v2202, %v2230
        %2232 = vdwg.mxu0
        %v2233 = vadd.f32 %v2147, %v2228
        %v2234 = vadd.f32 %v2148, %v2231
        %s2235 = scalar_lea.vmem [#allocation9], 1
        %v2236 = vld [vmem:[%s2235] sm:$0x1]
        %s2237 = scalar_lea.vmem [#allocation11], 1
        %v2238 = vld [vmem:[%s2237] sm:$0x1]
        %v2239 = vsel %vm633, %v2233, 0.0
        %2240 = vadd.xlane.f32.xlu0 %v2239
        %v2241 = vpop.xlane.xlu0 %2240
        %v2242 = vsel %vm633, %v2234, 0.0
        %2243 = vadd.xlane.f32.xlu0 %v2242
        %v2244 = vpop.xlane.xlu0 %2243
        %v2245 = vmul.f32 %v2241, %v1275
        %v2246 = vmul.f32 %v2244, %v1275
        %v2247 = vsub.f32 %v2233, %v2245
        %v2248 = vsub.f32 %v2234, %v2246
        %v2249 = vmul.f32 %v2247, %v2247
        %v2250 = vmul.f32 %v2248, %v2248
        %v2251 = vsel %vm633, %v2249, 0.0
        %2252 = vadd.xlane.f32.xlu0 %v2251
        %v2253 = vpop.xlane.xlu0 %2252
        %v2254 = vsel %vm633, %v2250, 0.0
        %2255 = vadd.xlane.f32.xlu0 %v2254
        %v2256 = vpop.xlane.xlu0 %2255
        %v2257 = vmul.f32 %v2253, %v1275
        %v2258 = vmul.f32 %v2256, %v1275
        %v2259 = vadd.f32 %v2257, 1e-05
        %v2260 = vadd.f32 %v2258, 1e-05
        %v2261 = vrsqrt.pop %v2259
        %v2262 = vmul.f32 %v2261, %v2259
        %v2263 = vmul.f32 %v2262, %v2261
        %v2264 = vmul.f32 0.5, %v2263
        %v2265 = vsub.f32 1.5, %v2264
        %v2266 = vmul.f32 %v2261, %v2265
        %vm2267 = vweird.f32 %v2259
        %vm2268 = vweird.f32 %v2261
        %vm2269 = vmor %vm2267, %vm2268
        %v2270 = vsel %vm2269, %v2261, %v2266
        %v2271 = vrsqrt.pop %v2260
        %v2272 = vmul.f32 %v2271, %v2260
        %v2273 = vmul.f32 %v2272, %v2271
        %v2274 = vmul.f32 0.5, %v2273
        %v2275 = vsub.f32 1.5, %v2274
        %v2276 = vmul.f32 %v2271, %v2275
        %vm2277 = vweird.f32 %v2260
        %vm2278 = vweird.f32 %v2271
        %vm2279 = vmor %vm2277, %vm2278
        %v2280 = vsel %vm2279, %v2271, %v2276
        %v2281 = vmul.f32 %v2247, %v2270
        %v2282 = vmul.f32 %v2248, %v2280
        %v2284 = vperm.slane %v2236, 0
        %v2286 = vmul.f32 %v2281, %v2284
        %v2287 = vmul.f32 %v2282, %v2284
        %v2289 = vperm.slane %v2238, 0
        %v2291 = vadd.f32 %v2286, %v2289
        %v2292 = vadd.f32 %v2287, %v2289
        %2293 = vst.msk [vmem:[%s616] sm:$0xff] %vm633, %v2291
        %2294 = vst.msk [vmem:[%s616 + $0x8] sm:$0xff] %vm633, %v2292
        %s2295 = sand.u32 %s367, 1
        %s2296 = scalar_lea.sflag [#allocation4], %s2295
        %s2297 = sand.u32 %s367, 1
        %s2298 = smul.addr %s2297, 16
        %s2299 = scalar_lea.vmem [#allocation12], %s2298
        // Predicated region
        $region105: #{tpu_custom_call.1} parent=79 // pred_check
          %p2300 = pneg %p377
        $region106: #{tpu_custom_call.1} parent=79 // pred_check_branch
          %2302 = sbr.rel (%p2300) target = $region108
        $region107: #{tpu_custom_call.1} parent=79 // pred_region
          %s2303 = smul.u32 2, %s34
          %2305 = vsyncadd %s2296, 0
          %s2306 = smul.addr %s2303, 8
          %s2307 = scalar_lea.hbm %s15, %s2306
          %s2308 = sshll.u32 %s2299, 4
          %s2309 = int_to_ptr.vmem [resolvable:$true] %s2308
          %s2310 = sshll.u32 %s2307, 4
          %s2311 = int_to_ptr.hbm [resolvable:$true] %s2310
          %2316 = dma.vmem_to_hbm [thread:$0]  %s2309, 256, %s2311, %s2296, 128, 128, 8
        $region108: #{tpu_custom_call.1} parent=79 // pred_fallthru
          _
      $region80: #{tpu_custom_call.1} parent=5 // pred_fallthru
        _
      %p2317 = scmp.le.s32.totalorder 2, %s29
      // Predicated region
      $region109: #{tpu_custom_call.1} parent=5 // pred_check
        %p2318 = pneg %p2317
      $region110: #{tpu_custom_call.1} parent=5 // pred_check_branch
        %2320 = sbr.rel (%p2318) target = $region112
      $region111: #{tpu_custom_call.1} parent=5 // pred_region
        %s2321 = ssub.s32 %s29, 2
        // Predicated region
        $region113: #{tpu_custom_call.1} parent=111 // pred_check
          %p2322 = pneg %p383
        $region114: #{tpu_custom_call.1} parent=111 // pred_check_branch
          %2324 = sbr.rel (%p2322) target = $region116
        $region115: #{tpu_custom_call.1} parent=111 // pred_region
          %s2325 = sand.u32 %s368, 1
          %s2326 = scalar_lea.sflag [#allocation4], %s2325
          %s2327 = sand.u32 %s368, 1
          %s2328 = smul.addr %s2327, 16
          %s2329 = scalar_lea.vmem [#allocation12], %s2328
          %2331 = dma.done %s2326, 256
        $region116: #{tpu_custom_call.1} parent=111 // pred_fallthru
          _
      $region112: #{tpu_custom_call.1} parent=5 // pred_fallthru
        _
    $region6: #{tpu_custom_call.1} parent=1 // loop_footer
      %s33 = sadd.s32 1, %s29
    $region7: #{tpu_custom_call.1} parent=1 // loop_footer_branch
      %28 = sbr.rel target = $region3
    $region8: #{tpu_custom_call.1} parent=1 // loop_exit
      _
    %2332 = vsyncpa [#allocation3], 1
    %s2333 = scalar_lea.sflag [#allocation3], 1
    %2334 = vsyncpa %s2333, 1
    %2335 = vsyncpa [#allocation6], 1
    %2336 = vsyncpa [#allocation10], 1
    %2337 = vsyncpa [#allocation4], 1
    %s2338 = scalar_lea.sflag [#allocation4], 1
    %2339 = vsyncpa %s2338, 1

</llo_original>
